<compile_context>
chip_gen: v7x
topology: tpu7x:2x2x1
jax: 0.10.0
libtpu: 0.0.40
codegen_flags: <defaults>
</compile_context>

<pallas_src>
import math
import functools

import jax
import jax.numpy as jnp
from jax import lax
from jax.experimental import pallas as pl
from jax.experimental.pallas import tpu as pltpu

_VMEM_LIMIT = 32 * 1024 * 1024  # raise v5e's 16 MiB default; safe on v7x (64 MiB)


def _pick_tile(dim, preferred, unit):
    """Largest multiple of `unit` that divides `dim` and is <= `preferred`.
    Falls back to the full dim (always a legal block) if none exists."""
    if dim <= preferred:
        return dim
    t = (preferred // unit) * unit
    while t >= unit:
        if dim % t == 0:
            return t
        t -= unit
    return dim


# ---------------------------------------------------------------------------
# Tiled matmul + bias:  y = x @ w + b
#   x: (M, K) f32 (cast to bf16 in-kernel), w: (K, N) bf16, b: (1, N) f32
#   grid = (M//tm, N//tn, K//tk), f32 VMEM accumulator, init/finalize via when.
# Used for both the hoisted LSTM input projection and the decoder Linear.
# ---------------------------------------------------------------------------
def _matmul_bias_kernel(x_ref, w_ref, b_ref, o_ref, acc_ref):
    @pl.when(pl.program_id(2) == 0)
    def _():
        acc_ref[...] = jnp.zeros_like(acc_ref)

    acc_ref[...] += jnp.dot(
        x_ref[...].astype(jnp.bfloat16),
        w_ref[...],
        preferred_element_type=jnp.float32,
    )

    @pl.when(pl.program_id(2) == pl.num_programs(2) - 1)
    def _():
        o_ref[...] = acc_ref[...] + b_ref[...]


def matmul_bias(x, w, b, *, tm=256, tn=256, tk=512):
    M, K = x.shape
    _, N = w.shape
    tm = _pick_tile(M, tm, 8)
    tn = _pick_tile(N, tn, 128)
    tk = _pick_tile(K, tk, 128)
    grid = (M // tm, N // tn, K // tk)
    return pl.pallas_call(
        _matmul_bias_kernel,
        out_shape=jax.ShapeDtypeStruct((M, N), jnp.float32),
        grid_spec=pltpu.PrefetchScalarGridSpec(
            num_scalar_prefetch=0,
            grid=grid,
            in_specs=[
                pl.BlockSpec((tm, tk), lambda i, j, k: (i, k)),
                pl.BlockSpec((tk, tn), lambda i, j, k: (k, j)),
                pl.BlockSpec((1, tn), lambda i, j, k: (0, j)),
            ],
            out_specs=pl.BlockSpec((tm, tn), lambda i, j, k: (i, j)),
            scratch_shapes=[pltpu.VMEM((tm, tn), jnp.float32)],
        ),
        compiler_params=pltpu.CompilerParams(
            dimension_semantics=("parallel", "parallel", "arbitrary"),
            vmem_limit_bytes=_VMEM_LIMIT,
        ),
    )(x, w, b)


# ---------------------------------------------------------------------------
# Recurrent LSTM layer kernel.
#   gates_x: (T, B, 4H) f32 precomputed x@W_ih^T + bias
#   w_hh_t : (H, 4H) bf16
# grid = (B//TB, T//TT); time axis last + "arbitrary" (sequential recurrence),
# batch axis "parallel".  h/c are VMEM-resident across the time axis (constant
# time index_map); TT timesteps run in an unrolled fori_loop and the (TT,TB,H)
# output block is written as one lane-dense slab per chunk.
# ---------------------------------------------------------------------------
def _lstm_chunk_kernel(gx_ref, whh_ref, out_ref, h_ref, c_ref, *, tt, nhid):
    @pl.when(pl.program_id(1) == 0)
    def _():
        # hidden=None in the PyTorch forward -> zero initial state
        h_ref[...] = jnp.zeros_like(h_ref)
        c_ref[...] = jnp.zeros_like(c_ref)

    # Hoist the (constant) recurrent weight load out of the unrolled loop.
    w_hh = whh_ref[...]

    def sigmoid(z):
        # exp + approx reciprocal: both land on the EUP path, f32 math.
        return pl.reciprocal(1.0 + jnp.exp(-z), approx=True)

    def step(s, carry):
        h_prev, c_prev = carry
        gates = gx_ref[s] + jnp.dot(
            h_prev.astype(jnp.bfloat16),
            w_hh,
            preferred_element_type=jnp.float32,
        )  # (TB, 4H) f32
        # PyTorch gate order i, f, g, o; lane-aligned when nhid % 128 == 0.
        i_g = sigmoid(gates[:, 0 * nhid:1 * nhid])
        f_g = sigmoid(gates[:, 1 * nhid:2 * nhid])
        g_g = jnp.tanh(gates[:, 2 * nhid:3 * nhid])
        o_g = sigmoid(gates[:, 3 * nhid:4 * nhid])
        c_new = f_g * c_prev + i_g * g_g
        h_new = o_g * jnp.tanh(c_new)
        out_ref[s] = h_new
        return (h_new, c_new)

    h_fin, c_fin = lax.fori_loop(
        0, tt, step, (h_ref[...], c_ref[...]), unroll=True
    )
    h_ref[...] = h_fin
    c_ref[...] = c_fin


def lstm_layer(gates_x, w_hh_t, *, tt_max=16, tb_max=128):
    """One nn.LSTM layer given precomputed input gates.
    gates_x: (T, B, 4H) f32; w_hh_t: (H, 4H) bf16.
    Returns (outputs (T,B,H), h_T (B,H), c_T (B,H))."""
    T, B, H4 = gates_x.shape
    H = w_hh_t.shape[0]
    assert H4 == 4 * H
    TT = _pick_tile(T, tt_max, 1)
    TB = _pick_tile(B, tb_max, 8)
    grid = (B // TB, T // TT)

    kernel = functools.partial(_lstm_chunk_kernel, tt=TT, nhid=H)
    out_shapes = (
        jax.ShapeDtypeStruct((T, B, H), jnp.float32),  # all timestep outputs
        jax.ShapeDtypeStruct((B, H), jnp.float32),     # h_T
        jax.ShapeDtypeStruct((B, H), jnp.float32),     # c_T
    )
    grid_spec = pltpu.PrefetchScalarGridSpec(
        num_scalar_prefetch=0,
        grid=grid,
        in_specs=[
            pl.BlockSpec((TT, TB, 4 * H), lambda b, t: (t, b, 0)),
            # Constant index_map: W_hh is fetched once and stays VMEM-resident
            # across all time chunks.
            pl.BlockSpec((H, 4 * H), lambda b, t: (0, 0)),
        ],
        out_specs=[
            pl.BlockSpec((TT, TB, H), lambda b, t: (t, b, 0)),
            pl.BlockSpec((TB, H), lambda b, t: (b, 0)),
            pl.BlockSpec((TB, H), lambda b, t: (b, 0)),
        ],
    )
    return pl.pallas_call(
        kernel,
        out_shape=out_shapes,
        grid_spec=grid_spec,
        compiler_params=pltpu.CompilerParams(
            dimension_semantics=("parallel", "arbitrary"),
            vmem_limit_bytes=_VMEM_LIMIT,
        ),
    )(gates_x, w_hh_t)


# ---------------------------------------------------------------------------
# Full RNNModel forward (LSTM variant)
# ---------------------------------------------------------------------------
def rnn_model_forward(x, params):
    T, B, _ = x.shape
    h = x
    h_n, c_n = [], []
    for layer in params["lstm"]:
        I = h.shape[-1]
        # Hoisted input projection: one big MXU GEMM over all T*B rows.
        gx = matmul_bias(h.reshape(T * B, I), layer["w_ih"], layer["b"])
        gx = gx.reshape(T, B, -1)
        h, h_last, c_last = lstm_layer(gx, layer["w_hh"])
        h_n.append(h_last)
        c_n.append(c_last)
        # TODO(synk): nn.LSTM inter-layer dropout and self.dropout(output) are
        # identity in eval mode; training-mode stochastic dropout not emitted.
    H = h.shape[-1]
    dec = matmul_bias(h.reshape(T * B, H), params["dec_w"], params["dec_b"])
    decoded = dec.reshape(T, B, -1)
    hidden = (jnp.stack(h_n, axis=0), jnp.stack(c_n, axis=0))
    return decoded, hidden


# ---------------------------------------------------------------------------
# Pure-JAX f32 reference (same math, nn.LSTM semantics) for correctness check.
# ---------------------------------------------------------------------------
def rnn_model_reference(x, params):
    T, B, _ = x.shape
    h = x
    h_n, c_n = [], []
    for layer in params["lstm"]:
        w_ih = layer["w_ih"].astype(jnp.float32)   # (I, 4H)
        w_hh = layer["w_hh"].astype(jnp.float32)   # (H, 4H)
        b = layer["b"].astype(jnp.float32)         # (1, 4H)
        H = w_hh.shape[0]
        gx = jnp.einsum("tbi,ih->tbh", h, w_ih) + b

        def step(carry, g):
            hp, cp = carry
            gates = g + hp @ w_hh
            i_g = jax.nn.sigmoid(gates[:, 0 * H:1 * H])
            f_g = jax.nn.sigmoid(gates[:, 1 * H:2 * H])
            g_g = jnp.tanh(gates[:, 2 * H:3 * H])
            o_g = jax.nn.sigmoid(gates[:, 3 * H:4 * H])
            c_new = f_g * cp + i_g * g_g
            h_new = o_g * jnp.tanh(c_new)
            return (h_new, c_new), h_new

        init = (jnp.zeros((B, H), jnp.float32), jnp.zeros((B, H), jnp.float32))
        (h_last, c_last), outs = lax.scan(step, init, gx)
        h = outs
        h_n.append(h_last)
        c_n.append(c_last)
    dec = h @ params["dec_w"].astype(jnp.float32) + params["dec_b"]
    return dec, (jnp.stack(h_n, axis=0), jnp.stack(c_n, axis=0))


# ---------------------------------------------------------------------------
# Deterministic parameter init (same shapes / init ranges as PyTorch defaults).
# Matmul weights are stored pre-transposed and in bf16 for the MXU; biases and
# all state stay f32.
# ---------------------------------------------------------------------------
def init_params(key, ninp, nhid, nlayers, nout):
    bound = 1.0 / math.sqrt(nhid)
    layers = []
    for l in range(nlayers):
        in_size = ninp if l == 0 else nhid
        key, k1, k2, k3, k4 = jax.random.split(key, 5)
        w_ih = jax.random.uniform(k1, (4 * nhid, in_size), jnp.float32, -bound, bound)
        w_hh = jax.random.uniform(k2, (4 * nhid, nhid), jnp.float32, -bound, bound)
        b_ih = jax.random.uniform(k3, (4 * nhid,), jnp.float32, -bound, bound)
        b_hh = jax.random.uniform(k4, (4 * nhid,), jnp.float32, -bound, bound)
        layers.append(
            dict(
                w_ih=w_ih.T.astype(jnp.bfloat16),               # (I, 4H)
                w_hh=w_hh.T.astype(jnp.bfloat16),               # (H, 4H)
                b=(b_ih + b_hh)[None, :].astype(jnp.float32),   # (1, 4H)
            )
        )
    key, kd1, kd2 = jax.random.split(key, 3)
    dec_w = jax.random.uniform(kd1, (nout, nhid), jnp.float32, -bound, bound)
    dec_b = jax.random.uniform(kd2, (nout,), jnp.float32, -bound, bound)
    return dict(
        lstm=layers,
        dec_w=dec_w.T.astype(jnp.bfloat16),   # (H, O)
        dec_b=dec_b[None, :].astype(jnp.float32),
    )


if __name__ == "__main__":
    # Small shapes, chosen lane/sublane friendly (nhid, nout multiples of 128
    # so gate slices and decoder stores are lane-dense / unmasked).
    T, B = 8, 8
    ninp, nhid, nlayers, nout = 64, 128, 2, 128

    key = jax.random.PRNGKey(0)
    kx, kp = jax.random.split(key)
    x = jax.random.normal(kx, (T, B, ninp), dtype=jnp.float32)  # (seq, batch, ninp)
    params = init_params(kp, ninp, nhid, nlayers, nout)

    fwd = jax.jit(rnn_model_forward)
    decoded, (h_n, c_n) = fwd(x, params)
    jax.block_until_ready((decoded, h_n, c_n))

    assert decoded.shape == (T, B, nout)
    assert h_n.shape == (nlayers, B, nhid)
    assert c_n.shape == (nlayers, B, nhid)
    assert bool(jnp.all(jnp.isfinite(decoded)))
    assert bool(jnp.all(jnp.isfinite(h_n))) and bool(jnp.all(jnp.isfinite(c_n)))

    # Correctness vs. pure-JAX f32 reference (bf16 MXU + approx reciprocal
    # introduce only small numerical differences).
    ref_dec, (ref_h, ref_c) = jax.jit(rnn_model_reference)(x, params)
    jax.block_until_ready((ref_dec, ref_h, ref_c))
    assert float(jnp.max(jnp.abs(decoded - ref_dec))) < 5e-2
    assert float(jnp.max(jnp.abs(h_n - ref_h))) < 5e-2
    assert float(jnp.max(jnp.abs(c_n - ref_c))) < 5e-2

    print("KERNEL_OK")
</pallas_src>

<mosaic_0001>
module attributes {stable_mosaic.version = 11 : i64} {
  func.func @_matmul_bias_kernel(%arg0: i32, %arg1: i32, %arg2: i32, %arg3: memref<64x64xf32, #tpu.memory_space<vmem>>, %arg4: memref<64x256xbf16, #tpu.memory_space<vmem>>, %arg5: memref<1x256xf32, #tpu.memory_space<vmem>>, %arg6: memref<64x256xf32, #tpu.memory_space<vmem>>, %arg7: memref<64x256xf32, #tpu.memory_space<vmem>>) attributes {dimension_semantics = [#tpu.dimension_semantics<parallel>, #tpu.dimension_semantics<parallel>, #tpu.dimension_semantics<arbitrary>], iteration_bounds = array<i64: 1, 2, 1>, scalar_prefetch = 0 : i64, scratch_operands = 1 : i64, tpu.core_type = #tpu.core_type<tc>, window_params = [{transform_indices = @transform_0, window_bounds = array<i64: 64, 64>}, {transform_indices = @transform_1, window_bounds = array<i64: 64, 256>}, {transform_indices = @transform_2, window_bounds = array<i64: 1, 256>}, {transform_indices = @transform_3, window_bounds = array<i64: 64, 256>}]} {
    %c0_i32 = arith.constant 0 : i32
    %0 = arith.cmpi eq, %arg2, %c0_i32 : i32
    %1 = arith.extui %0 : i1 to i32
    %c0_i32_0 = arith.constant 0 : i32
    %2 = arith.cmpi ne, %1, %c0_i32_0 : i32
    scf.if %2 {
      %cst_10 = arith.constant 0.000000e+00 : f32
      %13 = vector.broadcast %cst_10 : f32 to vector<64x256xf32>
      %c0_11 = arith.constant 0 : index
      %c0_12 = arith.constant 0 : index
      %14 = vector.load %arg7[%c0_11, %c0_12] : memref<64x256xf32, #tpu.memory_space<vmem>>, vector<64x256xf32>
      tpu.vector_store %arg7[%c0_11, %c0_12], %13 {strides = array<i32>} : memref<64x256xf32, #tpu.memory_space<vmem>>, vector<64x256xf32>,
    } else {
    }
    %c0 = arith.constant 0 : index
    %c0_1 = arith.constant 0 : index
    %3 = vector.load %arg7[%c0, %c0_1] : memref<64x256xf32, #tpu.memory_space<vmem>>, vector<64x256xf32>
    %c0_2 = arith.constant 0 : index
    %c0_3 = arith.constant 0 : index
    %4 = vector.load %arg3[%c0_2, %c0_3] : memref<64x64xf32, #tpu.memory_space<vmem>>, vector<64x64xf32>
    %5 = arith.truncf %4 : vector<64x64xf32> to vector<64x64xbf16>
    %c0_4 = arith.constant 0 : index
    %c0_5 = arith.constant 0 : index
    %6 = vector.load %arg4[%c0_4, %c0_5] : memref<64x256xbf16, #tpu.memory_space<vmem>>, vector<64x256xbf16>
    %cst = arith.constant dense<0.000000e+00> : vector<64x256xf32>
    %7 = tpu.matmul %5, %6, %cst {dimension_numbers = #tpu.dot_dimension_numbers<[1], [0], [0], [1], [0, 0, 1, 1], [], []>} : vector<64x64xbf16>, vector<64x256xbf16>, vector<64x256xf32> -> vector<64x256xf32>
    %8 = arith.addf %3, %7 : vector<64x256xf32>
    %c0_6 = arith.constant 0 : index
    %c0_7 = arith.constant 0 : index
    %9 = vector.load %arg7[%c0_6, %c0_7] : memref<64x256xf32, #tpu.memory_space<vmem>>, vector<64x256xf32>
    tpu.vector_store %arg7[%c0_6, %c0_7], %8 {strides = array<i32>} : memref<64x256xf32, #tpu.memory_space<vmem>>, vector<64x256xf32>,
    %c0_i32_8 = arith.constant 0 : i32
    %10 = arith.cmpi eq, %arg2, %c0_i32_8 : i32
    %11 = arith.extui %10 : i1 to i32
    %c0_i32_9 = arith.constant 0 : i32
    %12 = arith.cmpi ne, %11, %c0_i32_9 : i32
    scf.if %12 {
      %c0_10 = arith.constant 0 : index
      %c0_11 = arith.constant 0 : index
      %13 = vector.load %arg7[%c0_10, %c0_11] : memref<64x256xf32, #tpu.memory_space<vmem>>, vector<64x256xf32>
      %c0_12 = arith.constant 0 : index
      %c0_13 = arith.constant 0 : index
      %14 = vector.load %arg5[%c0_12, %c0_13] : memref<1x256xf32, #tpu.memory_space<vmem>>, vector<1x256xf32>
      %15 = vector.broadcast %14 : vector<1x256xf32> to vector<64x256xf32>
      %16 = arith.addf %13, %15 : vector<64x256xf32>
      %c0_14 = arith.constant 0 : index
      %c0_15 = arith.constant 0 : index
      %17 = vector.load %arg6[%c0_14, %c0_15] : memref<64x256xf32, #tpu.memory_space<vmem>>, vector<64x256xf32>
      tpu.vector_store %arg6[%c0_14, %c0_15], %16 {strides = array<i32>} : memref<64x256xf32, #tpu.memory_space<vmem>>, vector<64x256xf32>,
    } else {
    }
    return
  }
  func.func @transform_0(%arg0: i32, %arg1: i32, %arg2: i32) -> (i32, i32) {
    %c0_i32 = arith.constant 0 : i32
    return %arg0, %arg2 : i32, i32
  }
  func.func @transform_1(%arg0: i32, %arg1: i32, %arg2: i32) -> (i32, i32) {
    %c0_i32 = arith.constant 0 : i32
    return %arg2, %arg1 : i32, i32
  }
  func.func @transform_2(%arg0: i32, %arg1: i32, %arg2: i32) -> (i32, i32) {
    %c0_i32 = arith.constant 0 : i32
    %c0_i32_0 = arith.constant 0 : i32
    return %c0_i32, %arg1 : i32, i32
  }
  func.func @transform_3(%arg0: i32, %arg1: i32, %arg2: i32) -> (i32, i32) {
    %c0_i32 = arith.constant 0 : i32
    return %arg0, %arg1 : i32, i32
  }
}

module attributes {stable_mosaic.version = 11 : i64} {
  func.func @_matmul_bias_kernel(%arg0: i32, %arg1: i32, %arg2: i32, %arg3: memref<64x128xf32, #tpu.memory_space<vmem>>, %arg4: memref<128x128xbf16, #tpu.memory_space<vmem>>, %arg5: memref<1x128xf32, #tpu.memory_space<vmem>>, %arg6: memref<64x128xf32, #tpu.memory_space<vmem>>, %arg7: memref<64x128xf32, #tpu.memory_space<vmem>>) attributes {dimension_semantics = [#tpu.dimension_semantics<parallel>, #tpu.dimension_semantics<parallel>, #tpu.dimension_semantics<arbitrary>], iteration_bounds = array<i64: 1, 1, 1>, scalar_prefetch = 0 : i64, scratch_operands = 1 : i64, tpu.core_type = #tpu.core_type<tc>, window_params = [{transform_indices = @transform_0, window_bounds = array<i64: 64, 128>}, {transform_indices = @transform_1, window_bounds = array<i64: 128, 128>}, {transform_indices = @transform_2, window_bounds = array<i64: 1, 128>}, {transform_indices = @transform_3, window_bounds = array<i64: 64, 128>}]} {
    %c0_i32 = arith.constant 0 : i32
    %0 = arith.cmpi eq, %arg2, %c0_i32 : i32
    %1 = arith.extui %0 : i1 to i32
    %c0_i32_0 = arith.constant 0 : i32
    %2 = arith.cmpi ne, %1, %c0_i32_0 : i32
    scf.if %2 {
      %cst_10 = arith.constant 0.000000e+00 : f32
      %13 = vector.broadcast %cst_10 : f32 to vector<64x128xf32>
      %c0_11 = arith.constant 0 : index
      %c0_12 = arith.constant 0 : index
      %14 = vector.load %arg7[%c0_11, %c0_12] : memref<64x128xf32, #tpu.memory_space<vmem>>, vector<64x128xf32>
      tpu.vector_store %arg7[%c0_11, %c0_12], %13 {strides = array<i32>} : memref<64x128xf32, #tpu.memory_space<vmem>>, vector<64x128xf32>,
    } else {
    }
    %c0 = arith.constant 0 : index
    %c0_1 = arith.constant 0 : index
    %3 = vector.load %arg7[%c0, %c0_1] : memref<64x128xf32, #tpu.memory_space<vmem>>, vector<64x128xf32>
    %c0_2 = arith.constant 0 : index
    %c0_3 = arith.constant 0 : index
    %4 = vector.load %arg3[%c0_2, %c0_3] : memref<64x128xf32, #tpu.memory_space<vmem>>, vector<64x128xf32>
    %5 = arith.truncf %4 : vector<64x128xf32> to vector<64x128xbf16>
    %c0_4 = arith.constant 0 : index
    %c0_5 = arith.constant 0 : index
    %6 = vector.load %arg4[%c0_4, %c0_5] : memref<128x128xbf16, #tpu.memory_space<vmem>>, vector<128x128xbf16>
    %cst = arith.constant dense<0.000000e+00> : vector<64x128xf32>
    %7 = tpu.matmul %5, %6, %cst {dimension_numbers = #tpu.dot_dimension_numbers<[1], [0], [0], [1], [0, 0, 1, 1], [], []>} : vector<64x128xbf16>, vector<128x128xbf16>, vector<64x128xf32> -> vector<64x128xf32>
    %8 = arith.addf %3, %7 : vector<64x128xf32>
    %c0_6 = arith.constant 0 : index
    %c0_7 = arith.constant 0 : index
    %9 = vector.load %arg7[%c0_6, %c0_7] : memref<64x128xf32, #tpu.memory_space<vmem>>, vector<64x128xf32>
    tpu.vector_store %arg7[%c0_6, %c0_7], %8 {strides = array<i32>} : memref<64x128xf32, #tpu.memory_space<vmem>>, vector<64x128xf32>,
    %c0_i32_8 = arith.constant 0 : i32
    %10 = arith.cmpi eq, %arg2, %c0_i32_8 : i32
    %11 = arith.extui %10 : i1 to i32
    %c0_i32_9 = arith.constant 0 : i32
    %12 = arith.cmpi ne, %11, %c0_i32_9 : i32
    scf.if %12 {
      %c0_10 = arith.constant 0 : index
      %c0_11 = arith.constant 0 : index
      %13 = vector.load %arg7[%c0_10, %c0_11] : memref<64x128xf32, #tpu.memory_space<vmem>>, vector<64x128xf32>
      %c0_12 = arith.constant 0 : index
      %c0_13 = arith.constant 0 : index
      %14 = vector.load %arg5[%c0_12, %c0_13] : memref<1x128xf32, #tpu.memory_space<vmem>>, vector<1x128xf32>
      %15 = vector.broadcast %14 : vector<1x128xf32> to vector<64x128xf32>
      %16 = arith.addf %13, %15 : vector<64x128xf32>
      %c0_14 = arith.constant 0 : index
      %c0_15 = arith.constant 0 : index
      %17 = vector.load %arg6[%c0_14, %c0_15] : memref<64x128xf32, #tpu.memory_space<vmem>>, vector<64x128xf32>
      tpu.vector_store %arg6[%c0_14, %c0_15], %16 {strides = array<i32>} : memref<64x128xf32, #tpu.memory_space<vmem>>, vector<64x128xf32>,
    } else {
    }
    return
  }
  func.func @transform_0(%arg0: i32, %arg1: i32, %arg2: i32) -> (i32, i32) {
    %c0_i32 = arith.constant 0 : i32
    return %arg0, %arg2 : i32, i32
  }
  func.func @transform_1(%arg0: i32, %arg1: i32, %arg2: i32) -> (i32, i32) {
    %c0_i32 = arith.constant 0 : i32
    return %arg2, %arg1 : i32, i32
  }
  func.func @transform_2(%arg0: i32, %arg1: i32, %arg2: i32) -> (i32, i32) {
    %c0_i32 = arith.constant 0 : i32
    %c0_i32_0 = arith.constant 0 : i32
    return %c0_i32, %arg1 : i32, i32
  }
  func.func @transform_3(%arg0: i32, %arg1: i32, %arg2: i32) -> (i32, i32) {
    %c0_i32 = arith.constant 0 : i32
    return %arg0, %arg1 : i32, i32
  }
}

module attributes {stable_mosaic.version = 11 : i64} {
  func.func @_matmul_bias_kernel(%arg0: i32, %arg1: i32, %arg2: i32, %arg3: memref<64x128xf32, #tpu.memory_space<vmem>>, %arg4: memref<128x256xbf16, #tpu.memory_space<vmem>>, %arg5: memref<1x256xf32, #tpu.memory_space<vmem>>, %arg6: memref<64x256xf32, #tpu.memory_space<vmem>>, %arg7: memref<64x256xf32, #tpu.memory_space<vmem>>) attributes {dimension_semantics = [#tpu.dimension_semantics<parallel>, #tpu.dimension_semantics<parallel>, #tpu.dimension_semantics<arbitrary>], iteration_bounds = array<i64: 1, 2, 1>, scalar_prefetch = 0 : i64, scratch_operands = 1 : i64, tpu.core_type = #tpu.core_type<tc>, window_params = [{transform_indices = @transform_0, window_bounds = array<i64: 64, 128>}, {transform_indices = @transform_1, window_bounds = array<i64: 128, 256>}, {transform_indices = @transform_2, window_bounds = array<i64: 1, 256>}, {transform_indices = @transform_3, window_bounds = array<i64: 64, 256>}]} {
    %c0_i32 = arith.constant 0 : i32
    %0 = arith.cmpi eq, %arg2, %c0_i32 : i32
    %1 = arith.extui %0 : i1 to i32
    %c0_i32_0 = arith.constant 0 : i32
    %2 = arith.cmpi ne, %1, %c0_i32_0 : i32
    scf.if %2 {
      %cst_10 = arith.constant 0.000000e+00 : f32
      %13 = vector.broadcast %cst_10 : f32 to vector<64x256xf32>
      %c0_11 = arith.constant 0 : index
      %c0_12 = arith.constant 0 : index
      %14 = vector.load %arg7[%c0_11, %c0_12] : memref<64x256xf32, #tpu.memory_space<vmem>>, vector<64x256xf32>
      tpu.vector_store %arg7[%c0_11, %c0_12], %13 {strides = array<i32>} : memref<64x256xf32, #tpu.memory_space<vmem>>, vector<64x256xf32>,
    } else {
    }
    %c0 = arith.constant 0 : index
    %c0_1 = arith.constant 0 : index
    %3 = vector.load %arg7[%c0, %c0_1] : memref<64x256xf32, #tpu.memory_space<vmem>>, vector<64x256xf32>
    %c0_2 = arith.constant 0 : index
    %c0_3 = arith.constant 0 : index
    %4 = vector.load %arg3[%c0_2, %c0_3] : memref<64x128xf32, #tpu.memory_space<vmem>>, vector<64x128xf32>
    %5 = arith.truncf %4 : vector<64x128xf32> to vector<64x128xbf16>
    %c0_4 = arith.constant 0 : index
    %c0_5 = arith.constant 0 : index
    %6 = vector.load %arg4[%c0_4, %c0_5] : memref<128x256xbf16, #tpu.memory_space<vmem>>, vector<128x256xbf16>
    %cst = arith.constant dense<0.000000e+00> : vector<64x256xf32>
    %7 = tpu.matmul %5, %6, %cst {dimension_numbers = #tpu.dot_dimension_numbers<[1], [0], [0], [1], [0, 0, 1, 1], [], []>} : vector<64x128xbf16>, vector<128x256xbf16>, vector<64x256xf32> -> vector<64x256xf32>
    %8 = arith.addf %3, %7 : vector<64x256xf32>
    %c0_6 = arith.constant 0 : index
    %c0_7 = arith.constant 0 : index
    %9 = vector.load %arg7[%c0_6, %c0_7] : memref<64x256xf32, #tpu.memory_space<vmem>>, vector<64x256xf32>
    tpu.vector_store %arg7[%c0_6, %c0_7], %8 {strides = array<i32>} : memref<64x256xf32, #tpu.memory_space<vmem>>, vector<64x256xf32>,
    %c0_i32_8 = arith.constant 0 : i32
    %10 = arith.cmpi eq, %arg2, %c0_i32_8 : i32
    %11 = arith.extui %10 : i1 to i32
    %c0_i32_9 = arith.constant 0 : i32
    %12 = arith.cmpi ne, %11, %c0_i32_9 : i32
    scf.if %12 {
      %c0_10 = arith.constant 0 : index
      %c0_11 = arith.constant 0 : index
      %13 = vector.load %arg7[%c0_10, %c0_11] : memref<64x256xf32, #tpu.memory_space<vmem>>, vector<64x256xf32>
      %c0_12 = arith.constant 0 : index
      %c0_13 = arith.constant 0 : index
      %14 = vector.load %arg5[%c0_12, %c0_13] : memref<1x256xf32, #tpu.memory_space<vmem>>, vector<1x256xf32>
      %15 = vector.broadcast %14 : vector<1x256xf32> to vector<64x256xf32>
      %16 = arith.addf %13, %15 : vector<64x256xf32>
      %c0_14 = arith.constant 0 : index
      %c0_15 = arith.constant 0 : index
      %17 = vector.load %arg6[%c0_14, %c0_15] : memref<64x256xf32, #tpu.memory_space<vmem>>, vector<64x256xf32>
      tpu.vector_store %arg6[%c0_14, %c0_15], %16 {strides = array<i32>} : memref<64x256xf32, #tpu.memory_space<vmem>>, vector<64x256xf32>,
    } else {
    }
    return
  }
  func.func @transform_0(%arg0: i32, %arg1: i32, %arg2: i32) -> (i32, i32) {
    %c0_i32 = arith.constant 0 : i32
    return %arg0, %arg2 : i32, i32
  }
  func.func @transform_1(%arg0: i32, %arg1: i32, %arg2: i32) -> (i32, i32) {
    %c0_i32 = arith.constant 0 : i32
    return %arg2, %arg1 : i32, i32
  }
  func.func @transform_2(%arg0: i32, %arg1: i32, %arg2: i32) -> (i32, i32) {
    %c0_i32 = arith.constant 0 : i32
    %c0_i32_0 = arith.constant 0 : i32
    return %c0_i32, %arg1 : i32, i32
  }
  func.func @transform_3(%arg0: i32, %arg1: i32, %arg2: i32) -> (i32, i32) {
    %c0_i32 = arith.constant 0 : i32
    return %arg0, %arg1 : i32, i32
  }
}

module attributes {stable_mosaic.version = 11 : i64} {
  func.func @_lstm_chunk_kernel(%arg0: i32, %arg1: i32, %arg2: memref<8x8x512xf32, #tpu.memory_space<vmem>>, %arg3: memref<128x512xbf16, #tpu.memory_space<vmem>>, %arg4: memref<8x8x128xf32, #tpu.memory_space<vmem>>, %arg5: memref<8x128xf32, #tpu.memory_space<vmem>>, %arg6: memref<8x128xf32, #tpu.memory_space<vmem>>) attributes {dimension_semantics = [#tpu.dimension_semantics<parallel>, #tpu.dimension_semantics<arbitrary>], iteration_bounds = array<i64: 1, 1>, scalar_prefetch = 0 : i64, scratch_operands = 0 : i64, tpu.core_type = #tpu.core_type<tc>, window_params = [{transform_indices = @transform_0, window_bounds = array<i64: 8, 8, 512>}, {pipeline_mode = #tpu.pipeline_mode<synchronous>, transform_indices = @transform_1, window_bounds = array<i64: 128, 512>}, {transform_indices = @transform_2, window_bounds = array<i64: 8, 8, 128>}, {transform_indices = @transform_3, window_bounds = array<i64: 8, 128>}, {transform_indices = @transform_4, window_bounds = array<i64: 8, 128>}]} {
    %c0_i32 = arith.constant 0 : i32
    %0 = arith.cmpi eq, %arg1, %c0_i32 : i32
    %1 = arith.extui %0 : i1 to i32
    %c0_i32_0 = arith.constant 0 : i32
    %2 = arith.cmpi ne, %1, %c0_i32_0 : i32
    scf.if %2 {
      %cst_98 = arith.constant 0.000000e+00 : f32
      %312 = vector.broadcast %cst_98 : f32 to vector<8x128xf32>
      %c0_99 = arith.constant 0 : index
      %c0_100 = arith.constant 0 : index
      %313 = vector.load %arg5[%c0_99, %c0_100] : memref<8x128xf32, #tpu.memory_space<vmem>>, vector<8x128xf32>
      tpu.vector_store %arg5[%c0_99, %c0_100], %312 {strides = array<i32>} : memref<8x128xf32, #tpu.memory_space<vmem>>, vector<8x128xf32>,
      %cst_101 = arith.constant 0.000000e+00 : f32
      %314 = vector.broadcast %cst_101 : f32 to vector<8x128xf32>
      %c0_102 = arith.constant 0 : index
      %c0_103 = arith.constant 0 : index
      %315 = vector.load %arg6[%c0_102, %c0_103] : memref<8x128xf32, #tpu.memory_space<vmem>>, vector<8x128xf32>
      tpu.vector_store %arg6[%c0_102, %c0_103], %314 {strides = array<i32>} : memref<8x128xf32, #tpu.memory_space<vmem>>, vector<8x128xf32>,
    } else {
    }
    %c0 = arith.constant 0 : index
    %c0_1 = arith.constant 0 : index
    %3 = vector.load %arg3[%c0, %c0_1] : memref<128x512xbf16, #tpu.memory_space<vmem>>, vector<128x512xbf16>
    %c0_2 = arith.constant 0 : index
    %c0_3 = arith.constant 0 : index
    %4 = vector.load %arg5[%c0_2, %c0_3] : memref<8x128xf32, #tpu.memory_space<vmem>>, vector<8x128xf32>
    %c0_4 = arith.constant 0 : index
    %c0_5 = arith.constant 0 : index
    %5 = vector.load %arg6[%c0_4, %c0_5] : memref<8x128xf32, #tpu.memory_space<vmem>>, vector<8x128xf32>
    %c0_i32_6 = arith.constant 0 : i32
    %6 = arith.index_cast %c0_i32_6 : i32 to index
    %c0_7 = arith.constant 0 : index
    %c0_8 = arith.constant 0 : index
    %7 = vector.load %arg2[%6, %c0_7, %c0_8] : memref<8x8x512xf32, #tpu.memory_space<vmem>>, vector<1x8x512xf32>
    %8 = vector.shape_cast %7 : vector<1x8x512xf32> to vector<8x512xf32>
    %9 = arith.truncf %4 : vector<8x128xf32> to vector<8x128xbf16>
    %cst = arith.constant dense<0.000000e+00> : vector<8x512xf32>
    %10 = tpu.matmul %9, %3, %cst {dimension_numbers = #tpu.dot_dimension_numbers<[1], [0], [0], [1], [0, 0, 1, 1], [], []>} : vector<8x128xbf16>, vector<128x512xbf16>, vector<8x512xf32> -> vector<8x512xf32>
    %11 = arith.addf %8, %10 : vector<8x512xf32>
    %12 = vector.extract_strided_slice %11 {offsets = [0, 0], sizes = [8, 128], strides = [1, 1]} : vector<8x512xf32> to vector<8x128xf32>
    %cst_9 = arith.constant 0.000000e+00 : f32
    %13 = vector.broadcast %cst_9 : f32 to vector<8x128xf32>
    %14 = arith.subf %13, %12 : vector<8x128xf32>
    %15 = math.exp %14 : vector<8x128xf32>
    %cst_10 = arith.constant 1.000000e+00 : f32
    %16 = vector.broadcast %cst_10 : f32 to vector<8x128xf32>
    %17 = arith.addf %16, %15 : vector<8x128xf32>
    %18 = tpu.reciprocal %17 {approx = true} : vector<8x128xf32> -> vector<8x128xf32>
    %19 = vector.extract_strided_slice %11 {offsets = [0, 128], sizes = [8, 128], strides = [1, 1]} : vector<8x512xf32> to vector<8x128xf32>
    %cst_11 = arith.constant 0.000000e+00 : f32
    %20 = vector.broadcast %cst_11 : f32 to vector<8x128xf32>
    %21 = arith.subf %20, %19 : vector<8x128xf32>
    %22 = math.exp %21 : vector<8x128xf32>
    %cst_12 = arith.constant 1.000000e+00 : f32
    %23 = vector.broadcast %cst_12 : f32 to vector<8x128xf32>
    %24 = arith.addf %23, %22 : vector<8x128xf32>
    %25 = tpu.reciprocal %24 {approx = true} : vector<8x128xf32> -> vector<8x128xf32>
    %26 = vector.extract_strided_slice %11 {offsets = [0, 256], sizes = [8, 128], strides = [1, 1]} : vector<8x512xf32> to vector<8x128xf32>
    %27 = math.tanh %26 : vector<8x128xf32>
    %28 = vector.extract_strided_slice %11 {offsets = [0, 384], sizes = [8, 128], strides = [1, 1]} : vector<8x512xf32> to vector<8x128xf32>
    %cst_13 = arith.constant 0.000000e+00 : f32
    %29 = vector.broadcast %cst_13 : f32 to vector<8x128xf32>
    %30 = arith.subf %29, %28 : vector<8x128xf32>
    %31 = math.exp %30 : vector<8x128xf32>
    %cst_14 = arith.constant 1.000000e+00 : f32
    %32 = vector.broadcast %cst_14 : f32 to vector<8x128xf32>
    %33 = arith.addf %32, %31 : vector<8x128xf32>
    %34 = tpu.reciprocal %33 {approx = true} : vector<8x128xf32> -> vector<8x128xf32>
    %35 = arith.mulf %25, %5 : vector<8x128xf32>
    %36 = arith.mulf %18, %27 : vector<8x128xf32>
    %37 = arith.addf %35, %36 : vector<8x128xf32>
    %38 = math.tanh %37 : vector<8x128xf32>
    %39 = arith.mulf %34, %38 : vector<8x128xf32>
    %40 = arith.index_cast %c0_i32_6 : i32 to index
    %c0_15 = arith.constant 0 : index
    %c0_16 = arith.constant 0 : index
    %41 = vector.load %arg4[%40, %c0_15, %c0_16] : memref<8x8x128xf32, #tpu.memory_space<vmem>>, vector<1x8x128xf32>
    %42 = vector.shape_cast %41 : vector<1x8x128xf32> to vector<8x128xf32>
    %43 = vector.shape_cast %39 : vector<8x128xf32> to vector<1x8x128xf32>
    tpu.vector_store %arg4[%40, %c0_15, %c0_16], %43 {strides = array<i32>} : memref<8x8x128xf32, #tpu.memory_space<vmem>>, vector<1x8x128xf32>,
    %c1_i32 = arith.constant 1 : i32
    %44 = arith.index_cast %c1_i32 : i32 to index
    %c0_17 = arith.constant 0 : index
    %c0_18 = arith.constant 0 : index
    %45 = vector.load %arg2[%44, %c0_17, %c0_18] : memref<8x8x512xf32, #tpu.memory_space<vmem>>, vector<1x8x512xf32>
    %46 = vector.shape_cast %45 : vector<1x8x512xf32> to vector<8x512xf32>
    %47 = arith.truncf %39 : vector<8x128xf32> to vector<8x128xbf16>
    %cst_19 = arith.constant dense<0.000000e+00> : vector<8x512xf32>
    %48 = tpu.matmul %47, %3, %cst_19 {dimension_numbers = #tpu.dot_dimension_numbers<[1], [0], [0], [1], [0, 0, 1, 1], [], []>} : vector<8x128xbf16>, vector<128x512xbf16>, vector<8x512xf32> -> vector<8x512xf32>
    %49 = arith.addf %46, %48 : vector<8x512xf32>
    %50 = vector.extract_strided_slice %49 {offsets = [0, 0], sizes = [8, 128], strides = [1, 1]} : vector<8x512xf32> to vector<8x128xf32>
    %cst_20 = arith.constant 0.000000e+00 : f32
    %51 = vector.broadcast %cst_20 : f32 to vector<8x128xf32>
    %52 = arith.subf %51, %50 : vector<8x128xf32>
    %53 = math.exp %52 : vector<8x128xf32>
    %cst_21 = arith.constant 1.000000e+00 : f32
    %54 = vector.broadcast %cst_21 : f32 to vector<8x128xf32>
    %55 = arith.addf %54, %53 : vector<8x128xf32>
    %56 = tpu.reciprocal %55 {approx = true} : vector<8x128xf32> -> vector<8x128xf32>
    %57 = vector.extract_strided_slice %49 {offsets = [0, 128], sizes = [8, 128], strides = [1, 1]} : vector<8x512xf32> to vector<8x128xf32>
    %cst_22 = arith.constant 0.000000e+00 : f32
    %58 = vector.broadcast %cst_22 : f32 to vector<8x128xf32>
    %59 = arith.subf %58, %57 : vector<8x128xf32>
    %60 = math.exp %59 : vector<8x128xf32>
    %cst_23 = arith.constant 1.000000e+00 : f32
    %61 = vector.broadcast %cst_23 : f32 to vector<8x128xf32>
    %62 = arith.addf %61, %60 : vector<8x128xf32>
    %63 = tpu.reciprocal %62 {approx = true} : vector<8x128xf32> -> vector<8x128xf32>
    %64 = vector.extract_strided_slice %49 {offsets = [0, 256], sizes = [8, 128], strides = [1, 1]} : vector<8x512xf32> to vector<8x128xf32>
    %65 = math.tanh %64 : vector<8x128xf32>
    %66 = vector.extract_strided_slice %49 {offsets = [0, 384], sizes = [8, 128], strides = [1, 1]} : vector<8x512xf32> to vector<8x128xf32>
    %cst_24 = arith.constant 0.000000e+00 : f32
    %67 = vector.broadcast %cst_24 : f32 to vector<8x128xf32>
    %68 = arith.subf %67, %66 : vector<8x128xf32>
    %69 = math.exp %68 : vector<8x128xf32>
    %cst_25 = arith.constant 1.000000e+00 : f32
    %70 = vector.broadcast %cst_25 : f32 to vector<8x128xf32>
    %71 = arith.addf %70, %69 : vector<8x128xf32>
    %72 = tpu.reciprocal %71 {approx = true} : vector<8x128xf32> -> vector<8x128xf32>
    %73 = arith.mulf %63, %37 : vector<8x128xf32>
    %74 = arith.mulf %56, %65 : vector<8x128xf32>
    %75 = arith.addf %73, %74 : vector<8x128xf32>
    %76 = math.tanh %75 : vector<8x128xf32>
    %77 = arith.mulf %72, %76 : vector<8x128xf32>
    %78 = arith.index_cast %c1_i32 : i32 to index
    %c0_26 = arith.constant 0 : index
    %c0_27 = arith.constant 0 : index
    %79 = vector.load %arg4[%78, %c0_26, %c0_27] : memref<8x8x128xf32, #tpu.memory_space<vmem>>, vector<1x8x128xf32>
    %80 = vector.shape_cast %79 : vector<1x8x128xf32> to vector<8x128xf32>
    %81 = vector.shape_cast %77 : vector<8x128xf32> to vector<1x8x128xf32>
    tpu.vector_store %arg4[%78, %c0_26, %c0_27], %81 {strides = array<i32>} : memref<8x8x128xf32, #tpu.memory_space<vmem>>, vector<1x8x128xf32>,
    %c2_i32 = arith.constant 2 : i32
    %82 = arith.index_cast %c2_i32 : i32 to index
    %c0_28 = arith.constant 0 : index
    %c0_29 = arith.constant 0 : index
    %83 = vector.load %arg2[%82, %c0_28, %c0_29] : memref<8x8x512xf32, #tpu.memory_space<vmem>>, vector<1x8x512xf32>
    %84 = vector.shape_cast %83 : vector<1x8x512xf32> to vector<8x512xf32>
    %85 = arith.truncf %77 : vector<8x128xf32> to vector<8x128xbf16>
    %cst_30 = arith.constant dense<0.000000e+00> : vector<8x512xf32>
    %86 = tpu.matmul %85, %3, %cst_30 {dimension_numbers = #tpu.dot_dimension_numbers<[1], [0], [0], [1], [0, 0, 1, 1], [], []>} : vector<8x128xbf16>, vector<128x512xbf16>, vector<8x512xf32> -> vector<8x512xf32>
    %87 = arith.addf %84, %86 : vector<8x512xf32>
    %88 = vector.extract_strided_slice %87 {offsets = [0, 0], sizes = [8, 128], strides = [1, 1]} : vector<8x512xf32> to vector<8x128xf32>
    %cst_31 = arith.constant 0.000000e+00 : f32
    %89 = vector.broadcast %cst_31 : f32 to vector<8x128xf32>
    %90 = arith.subf %89, %88 : vector<8x128xf32>
    %91 = math.exp %90 : vector<8x128xf32>
    %cst_32 = arith.constant 1.000000e+00 : f32
    %92 = vector.broadcast %cst_32 : f32 to vector<8x128xf32>
    %93 = arith.addf %92, %91 : vector<8x128xf32>
    %94 = tpu.reciprocal %93 {approx = true} : vector<8x128xf32> -> vector<8x128xf32>
    %95 = vector.extract_strided_slice %87 {offsets = [0, 128], sizes = [8, 128], strides = [1, 1]} : vector<8x512xf32> to vector<8x128xf32>
    %cst_33 = arith.constant 0.000000e+00 : f32
    %96 = vector.broadcast %cst_33 : f32 to vector<8x128xf32>
    %97 = arith.subf %96, %95 : vector<8x128xf32>
    %98 = math.exp %97 : vector<8x128xf32>
    %cst_34 = arith.constant 1.000000e+00 : f32
    %99 = vector.broadcast %cst_34 : f32 to vector<8x128xf32>
    %100 = arith.addf %99, %98 : vector<8x128xf32>
    %101 = tpu.reciprocal %100 {approx = true} : vector<8x128xf32> -> vector<8x128xf32>
    %102 = vector.extract_strided_slice %87 {offsets = [0, 256], sizes = [8, 128], strides = [1, 1]} : vector<8x512xf32> to vector<8x128xf32>
    %103 = math.tanh %102 : vector<8x128xf32>
    %104 = vector.extract_strided_slice %87 {offsets = [0, 384], sizes = [8, 128], strides = [1, 1]} : vector<8x512xf32> to vector<8x128xf32>
    %cst_35 = arith.constant 0.000000e+00 : f32
    %105 = vector.broadcast %cst_35 : f32 to vector<8x128xf32>
    %106 = arith.subf %105, %104 : vector<8x128xf32>
    %107 = math.exp %106 : vector<8x128xf32>
    %cst_36 = arith.constant 1.000000e+00 : f32
    %108 = vector.broadcast %cst_36 : f32 to vector<8x128xf32>
    %109 = arith.addf %108, %107 : vector<8x128xf32>
    %110 = tpu.reciprocal %109 {approx = true} : vector<8x128xf32> -> vector<8x128xf32>
    %111 = arith.mulf %101, %75 : vector<8x128xf32>
    %112 = arith.mulf %94, %103 : vector<8x128xf32>
    %113 = arith.addf %111, %112 : vector<8x128xf32>
    %114 = math.tanh %113 : vector<8x128xf32>
    %115 = arith.mulf %110, %114 : vector<8x128xf32>
    %116 = arith.index_cast %c2_i32 : i32 to index
    %c0_37 = arith.constant 0 : index
    %c0_38 = arith.constant 0 : index
    %117 = vector.load %arg4[%116, %c0_37, %c0_38] : memref<8x8x128xf32, #tpu.memory_space<vmem>>, vector<1x8x128xf32>
    %118 = vector.shape_cast %117 : vector<1x8x128xf32> to vector<8x128xf32>
    %119 = vector.shape_cast %115 : vector<8x128xf32> to vector<1x8x128xf32>
    tpu.vector_store %arg4[%116, %c0_37, %c0_38], %119 {strides = array<i32>} : memref<8x8x128xf32, #tpu.memory_space<vmem>>, vector<1x8x128xf32>,
    %c3_i32 = arith.constant 3 : i32
    %120 = arith.index_cast %c3_i32 : i32 to index
    %c0_39 = arith.constant 0 : index
    %c0_40 = arith.constant 0 : index
    %121 = vector.load %arg2[%120, %c0_39, %c0_40] : memref<8x8x512xf32, #tpu.memory_space<vmem>>, vector<1x8x512xf32>
    %122 = vector.shape_cast %121 : vector<1x8x512xf32> to vector<8x512xf32>
    %123 = arith.truncf %115 : vector<8x128xf32> to vector<8x128xbf16>
    %cst_41 = arith.constant dense<0.000000e+00> : vector<8x512xf32>
    %124 = tpu.matmul %123, %3, %cst_41 {dimension_numbers = #tpu.dot_dimension_numbers<[1], [0], [0], [1], [0, 0, 1, 1], [], []>} : vector<8x128xbf16>, vector<128x512xbf16>, vector<8x512xf32> -> vector<8x512xf32>
    %125 = arith.addf %122, %124 : vector<8x512xf32>
    %126 = vector.extract_strided_slice %125 {offsets = [0, 0], sizes = [8, 128], strides = [1, 1]} : vector<8x512xf32> to vector<8x128xf32>
    %cst_42 = arith.constant 0.000000e+00 : f32
    %127 = vector.broadcast %cst_42 : f32 to vector<8x128xf32>
    %128 = arith.subf %127, %126 : vector<8x128xf32>
    %129 = math.exp %128 : vector<8x128xf32>
    %cst_43 = arith.constant 1.000000e+00 : f32
    %130 = vector.broadcast %cst_43 : f32 to vector<8x128xf32>
    %131 = arith.addf %130, %129 : vector<8x128xf32>
    %132 = tpu.reciprocal %131 {approx = true} : vector<8x128xf32> -> vector<8x128xf32>
    %133 = vector.extract_strided_slice %125 {offsets = [0, 128], sizes = [8, 128], strides = [1, 1]} : vector<8x512xf32> to vector<8x128xf32>
    %cst_44 = arith.constant 0.000000e+00 : f32
    %134 = vector.broadcast %cst_44 : f32 to vector<8x128xf32>
    %135 = arith.subf %134, %133 : vector<8x128xf32>
    %136 = math.exp %135 : vector<8x128xf32>
    %cst_45 = arith.constant 1.000000e+00 : f32
    %137 = vector.broadcast %cst_45 : f32 to vector<8x128xf32>
    %138 = arith.addf %137, %136 : vector<8x128xf32>
    %139 = tpu.reciprocal %138 {approx = true} : vector<8x128xf32> -> vector<8x128xf32>
    %140 = vector.extract_strided_slice %125 {offsets = [0, 256], sizes = [8, 128], strides = [1, 1]} : vector<8x512xf32> to vector<8x128xf32>
    %141 = math.tanh %140 : vector<8x128xf32>
    %142 = vector.extract_strided_slice %125 {offsets = [0, 384], sizes = [8, 128], strides = [1, 1]} : vector<8x512xf32> to vector<8x128xf32>
    %cst_46 = arith.constant 0.000000e+00 : f32
    %143 = vector.broadcast %cst_46 : f32 to vector<8x128xf32>
    %144 = arith.subf %143, %142 : vector<8x128xf32>
    %145 = math.exp %144 : vector<8x128xf32>
    %cst_47 = arith.constant 1.000000e+00 : f32
    %146 = vector.broadcast %cst_47 : f32 to vector<8x128xf32>
    %147 = arith.addf %146, %145 : vector<8x128xf32>
    %148 = tpu.reciprocal %147 {approx = true} : vector<8x128xf32> -> vector<8x128xf32>
    %149 = arith.mulf %139, %113 : vector<8x128xf32>
    %150 = arith.mulf %132, %141 : vector<8x128xf32>
    %151 = arith.addf %149, %150 : vector<8x128xf32>
    %152 = math.tanh %151 : vector<8x128xf32>
    %153 = arith.mulf %148, %152 : vector<8x128xf32>
    %154 = arith.index_cast %c3_i32 : i32 to index
    %c0_48 = arith.constant 0 : index
    %c0_49 = arith.constant 0 : index
    %155 = vector.load %arg4[%154, %c0_48, %c0_49] : memref<8x8x128xf32, #tpu.memory_space<vmem>>, vector<1x8x128xf32>
    %156 = vector.shape_cast %155 : vector<1x8x128xf32> to vector<8x128xf32>
    %157 = vector.shape_cast %153 : vector<8x128xf32> to vector<1x8x128xf32>
    tpu.vector_store %arg4[%154, %c0_48, %c0_49], %157 {strides = array<i32>} : memref<8x8x128xf32, #tpu.memory_space<vmem>>, vector<1x8x128xf32>,
    %c4_i32 = arith.constant 4 : i32
    %158 = arith.index_cast %c4_i32 : i32 to index
    %c0_50 = arith.constant 0 : index
    %c0_51 = arith.constant 0 : index
    %159 = vector.load %arg2[%158, %c0_50, %c0_51] : memref<8x8x512xf32, #tpu.memory_space<vmem>>, vector<1x8x512xf32>
    %160 = vector.shape_cast %159 : vector<1x8x512xf32> to vector<8x512xf32>
    %161 = arith.truncf %153 : vector<8x128xf32> to vector<8x128xbf16>
    %cst_52 = arith.constant dense<0.000000e+00> : vector<8x512xf32>
    %162 = tpu.matmul %161, %3, %cst_52 {dimension_numbers = #tpu.dot_dimension_numbers<[1], [0], [0], [1], [0, 0, 1, 1], [], []>} : vector<8x128xbf16>, vector<128x512xbf16>, vector<8x512xf32> -> vector<8x512xf32>
    %163 = arith.addf %160, %162 : vector<8x512xf32>
    %164 = vector.extract_strided_slice %163 {offsets = [0, 0], sizes = [8, 128], strides = [1, 1]} : vector<8x512xf32> to vector<8x128xf32>
    %cst_53 = arith.constant 0.000000e+00 : f32
    %165 = vector.broadcast %cst_53 : f32 to vector<8x128xf32>
    %166 = arith.subf %165, %164 : vector<8x128xf32>
    %167 = math.exp %166 : vector<8x128xf32>
    %cst_54 = arith.constant 1.000000e+00 : f32
    %168 = vector.broadcast %cst_54 : f32 to vector<8x128xf32>
    %169 = arith.addf %168, %167 : vector<8x128xf32>
    %170 = tpu.reciprocal %169 {approx = true} : vector<8x128xf32> -> vector<8x128xf32>
    %171 = vector.extract_strided_slice %163 {offsets = [0, 128], sizes = [8, 128], strides = [1, 1]} : vector<8x512xf32> to vector<8x128xf32>
    %cst_55 = arith.constant 0.000000e+00 : f32
    %172 = vector.broadcast %cst_55 : f32 to vector<8x128xf32>
    %173 = arith.subf %172, %171 : vector<8x128xf32>
    %174 = math.exp %173 : vector<8x128xf32>
    %cst_56 = arith.constant 1.000000e+00 : f32
    %175 = vector.broadcast %cst_56 : f32 to vector<8x128xf32>
    %176 = arith.addf %175, %174 : vector<8x128xf32>
    %177 = tpu.reciprocal %176 {approx = true} : vector<8x128xf32> -> vector<8x128xf32>
    %178 = vector.extract_strided_slice %163 {offsets = [0, 256], sizes = [8, 128], strides = [1, 1]} : vector<8x512xf32> to vector<8x128xf32>
    %179 = math.tanh %178 : vector<8x128xf32>
    %180 = vector.extract_strided_slice %163 {offsets = [0, 384], sizes = [8, 128], strides = [1, 1]} : vector<8x512xf32> to vector<8x128xf32>
    %cst_57 = arith.constant 0.000000e+00 : f32
    %181 = vector.broadcast %cst_57 : f32 to vector<8x128xf32>
    %182 = arith.subf %181, %180 : vector<8x128xf32>
    %183 = math.exp %182 : vector<8x128xf32>
    %cst_58 = arith.constant 1.000000e+00 : f32
    %184 = vector.broadcast %cst_58 : f32 to vector<8x128xf32>
    %185 = arith.addf %184, %183 : vector<8x128xf32>
    %186 = tpu.reciprocal %185 {approx = true} : vector<8x128xf32> -> vector<8x128xf32>
    %187 = arith.mulf %177, %151 : vector<8x128xf32>
    %188 = arith.mulf %170, %179 : vector<8x128xf32>
    %189 = arith.addf %187, %188 : vector<8x128xf32>
    %190 = math.tanh %189 : vector<8x128xf32>
    %191 = arith.mulf %186, %190 : vector<8x128xf32>
    %192 = arith.index_cast %c4_i32 : i32 to index
    %c0_59 = arith.constant 0 : index
    %c0_60 = arith.constant 0 : index
    %193 = vector.load %arg4[%192, %c0_59, %c0_60] : memref<8x8x128xf32, #tpu.memory_space<vmem>>, vector<1x8x128xf32>
    %194 = vector.shape_cast %193 : vector<1x8x128xf32> to vector<8x128xf32>
    %195 = vector.shape_cast %191 : vector<8x128xf32> to vector<1x8x128xf32>
    tpu.vector_store %arg4[%192, %c0_59, %c0_60], %195 {strides = array<i32>} : memref<8x8x128xf32, #tpu.memory_space<vmem>>, vector<1x8x128xf32>,
    %c5_i32 = arith.constant 5 : i32
    %196 = arith.index_cast %c5_i32 : i32 to index
    %c0_61 = arith.constant 0 : index
    %c0_62 = arith.constant 0 : index
    %197 = vector.load %arg2[%196, %c0_61, %c0_62] : memref<8x8x512xf32, #tpu.memory_space<vmem>>, vector<1x8x512xf32>
    %198 = vector.shape_cast %197 : vector<1x8x512xf32> to vector<8x512xf32>
    %199 = arith.truncf %191 : vector<8x128xf32> to vector<8x128xbf16>
    %cst_63 = arith.constant dense<0.000000e+00> : vector<8x512xf32>
    %200 = tpu.matmul %199, %3, %cst_63 {dimension_numbers = #tpu.dot_dimension_numbers<[1], [0], [0], [1], [0, 0, 1, 1], [], []>} : vector<8x128xbf16>, vector<128x512xbf16>, vector<8x512xf32> -> vector<8x512xf32>
    %201 = arith.addf %198, %200 : vector<8x512xf32>
    %202 = vector.extract_strided_slice %201 {offsets = [0, 0], sizes = [8, 128], strides = [1, 1]} : vector<8x512xf32> to vector<8x128xf32>
    %cst_64 = arith.constant 0.000000e+00 : f32
    %203 = vector.broadcast %cst_64 : f32 to vector<8x128xf32>
    %204 = arith.subf %203, %202 : vector<8x128xf32>
    %205 = math.exp %204 : vector<8x128xf32>
    %cst_65 = arith.constant 1.000000e+00 : f32
    %206 = vector.broadcast %cst_65 : f32 to vector<8x128xf32>
    %207 = arith.addf %206, %205 : vector<8x128xf32>
    %208 = tpu.reciprocal %207 {approx = true} : vector<8x128xf32> -> vector<8x128xf32>
    %209 = vector.extract_strided_slice %201 {offsets = [0, 128], sizes = [8, 128], strides = [1, 1]} : vector<8x512xf32> to vector<8x128xf32>
    %cst_66 = arith.constant 0.000000e+00 : f32
    %210 = vector.broadcast %cst_66 : f32 to vector<8x128xf32>
    %211 = arith.subf %210, %209 : vector<8x128xf32>
    %212 = math.exp %211 : vector<8x128xf32>
    %cst_67 = arith.constant 1.000000e+00 : f32
    %213 = vector.broadcast %cst_67 : f32 to vector<8x128xf32>
    %214 = arith.addf %213, %212 : vector<8x128xf32>
    %215 = tpu.reciprocal %214 {approx = true} : vector<8x128xf32> -> vector<8x128xf32>
    %216 = vector.extract_strided_slice %201 {offsets = [0, 256], sizes = [8, 128], strides = [1, 1]} : vector<8x512xf32> to vector<8x128xf32>
    %217 = math.tanh %216 : vector<8x128xf32>
    %218 = vector.extract_strided_slice %201 {offsets = [0, 384], sizes = [8, 128], strides = [1, 1]} : vector<8x512xf32> to vector<8x128xf32>
    %cst_68 = arith.constant 0.000000e+00 : f32
    %219 = vector.broadcast %cst_68 : f32 to vector<8x128xf32>
    %220 = arith.subf %219, %218 : vector<8x128xf32>
    %221 = math.exp %220 : vector<8x128xf32>
    %cst_69 = arith.constant 1.000000e+00 : f32
    %222 = vector.broadcast %cst_69 : f32 to vector<8x128xf32>
    %223 = arith.addf %222, %221 : vector<8x128xf32>
    %224 = tpu.reciprocal %223 {approx = true} : vector<8x128xf32> -> vector<8x128xf32>
    %225 = arith.mulf %215, %189 : vector<8x128xf32>
    %226 = arith.mulf %208, %217 : vector<8x128xf32>
    %227 = arith.addf %225, %226 : vector<8x128xf32>
    %228 = math.tanh %227 : vector<8x128xf32>
    %229 = arith.mulf %224, %228 : vector<8x128xf32>
    %230 = arith.index_cast %c5_i32 : i32 to index
    %c0_70 = arith.constant 0 : index
    %c0_71 = arith.constant 0 : index
    %231 = vector.load %arg4[%230, %c0_70, %c0_71] : memref<8x8x128xf32, #tpu.memory_space<vmem>>, vector<1x8x128xf32>
    %232 = vector.shape_cast %231 : vector<1x8x128xf32> to vector<8x128xf32>
    %233 = vector.shape_cast %229 : vector<8x128xf32> to vector<1x8x128xf32>
    tpu.vector_store %arg4[%230, %c0_70, %c0_71], %233 {strides = array<i32>} : memref<8x8x128xf32, #tpu.memory_space<vmem>>, vector<1x8x128xf32>,
    %c6_i32 = arith.constant 6 : i32
    %234 = arith.index_cast %c6_i32 : i32 to index
    %c0_72 = arith.constant 0 : index
    %c0_73 = arith.constant 0 : index
    %235 = vector.load %arg2[%234, %c0_72, %c0_73] : memref<8x8x512xf32, #tpu.memory_space<vmem>>, vector<1x8x512xf32>
    %236 = vector.shape_cast %235 : vector<1x8x512xf32> to vector<8x512xf32>
    %237 = arith.truncf %229 : vector<8x128xf32> to vector<8x128xbf16>
    %cst_74 = arith.constant dense<0.000000e+00> : vector<8x512xf32>
    %238 = tpu.matmul %237, %3, %cst_74 {dimension_numbers = #tpu.dot_dimension_numbers<[1], [0], [0], [1], [0, 0, 1, 1], [], []>} : vector<8x128xbf16>, vector<128x512xbf16>, vector<8x512xf32> -> vector<8x512xf32>
    %239 = arith.addf %236, %238 : vector<8x512xf32>
    %240 = vector.extract_strided_slice %239 {offsets = [0, 0], sizes = [8, 128], strides = [1, 1]} : vector<8x512xf32> to vector<8x128xf32>
    %cst_75 = arith.constant 0.000000e+00 : f32
    %241 = vector.broadcast %cst_75 : f32 to vector<8x128xf32>
    %242 = arith.subf %241, %240 : vector<8x128xf32>
    %243 = math.exp %242 : vector<8x128xf32>
    %cst_76 = arith.constant 1.000000e+00 : f32
    %244 = vector.broadcast %cst_76 : f32 to vector<8x128xf32>
    %245 = arith.addf %244, %243 : vector<8x128xf32>
    %246 = tpu.reciprocal %245 {approx = true} : vector<8x128xf32> -> vector<8x128xf32>
    %247 = vector.extract_strided_slice %239 {offsets = [0, 128], sizes = [8, 128], strides = [1, 1]} : vector<8x512xf32> to vector<8x128xf32>
    %cst_77 = arith.constant 0.000000e+00 : f32
    %248 = vector.broadcast %cst_77 : f32 to vector<8x128xf32>
    %249 = arith.subf %248, %247 : vector<8x128xf32>
    %250 = math.exp %249 : vector<8x128xf32>
    %cst_78 = arith.constant 1.000000e+00 : f32
    %251 = vector.broadcast %cst_78 : f32 to vector<8x128xf32>
    %252 = arith.addf %251, %250 : vector<8x128xf32>
    %253 = tpu.reciprocal %252 {approx = true} : vector<8x128xf32> -> vector<8x128xf32>
    %254 = vector.extract_strided_slice %239 {offsets = [0, 256], sizes = [8, 128], strides = [1, 1]} : vector<8x512xf32> to vector<8x128xf32>
    %255 = math.tanh %254 : vector<8x128xf32>
    %256 = vector.extract_strided_slice %239 {offsets = [0, 384], sizes = [8, 128], strides = [1, 1]} : vector<8x512xf32> to vector<8x128xf32>
    %cst_79 = arith.constant 0.000000e+00 : f32
    %257 = vector.broadcast %cst_79 : f32 to vector<8x128xf32>
    %258 = arith.subf %257, %256 : vector<8x128xf32>
    %259 = math.exp %258 : vector<8x128xf32>
    %cst_80 = arith.constant 1.000000e+00 : f32
    %260 = vector.broadcast %cst_80 : f32 to vector<8x128xf32>
    %261 = arith.addf %260, %259 : vector<8x128xf32>
    %262 = tpu.reciprocal %261 {approx = true} : vector<8x128xf32> -> vector<8x128xf32>
    %263 = arith.mulf %253, %227 : vector<8x128xf32>
    %264 = arith.mulf %246, %255 : vector<8x128xf32>
    %265 = arith.addf %263, %264 : vector<8x128xf32>
    %266 = math.tanh %265 : vector<8x128xf32>
    %267 = arith.mulf %262, %266 : vector<8x128xf32>
    %268 = arith.index_cast %c6_i32 : i32 to index
    %c0_81 = arith.constant 0 : index
    %c0_82 = arith.constant 0 : index
    %269 = vector.load %arg4[%268, %c0_81, %c0_82] : memref<8x8x128xf32, #tpu.memory_space<vmem>>, vector<1x8x128xf32>
    %270 = vector.shape_cast %269 : vector<1x8x128xf32> to vector<8x128xf32>
    %271 = vector.shape_cast %267 : vector<8x128xf32> to vector<1x8x128xf32>
    tpu.vector_store %arg4[%268, %c0_81, %c0_82], %271 {strides = array<i32>} : memref<8x8x128xf32, #tpu.memory_space<vmem>>, vector<1x8x128xf32>,
    %c7_i32 = arith.constant 7 : i32
    %272 = arith.index_cast %c7_i32 : i32 to index
    %c0_83 = arith.constant 0 : index
    %c0_84 = arith.constant 0 : index
    %273 = vector.load %arg2[%272, %c0_83, %c0_84] : memref<8x8x512xf32, #tpu.memory_space<vmem>>, vector<1x8x512xf32>
    %274 = vector.shape_cast %273 : vector<1x8x512xf32> to vector<8x512xf32>
    %275 = arith.truncf %267 : vector<8x128xf32> to vector<8x128xbf16>
    %cst_85 = arith.constant dense<0.000000e+00> : vector<8x512xf32>
    %276 = tpu.matmul %275, %3, %cst_85 {dimension_numbers = #tpu.dot_dimension_numbers<[1], [0], [0], [1], [0, 0, 1, 1], [], []>} : vector<8x128xbf16>, vector<128x512xbf16>, vector<8x512xf32> -> vector<8x512xf32>
    %277 = arith.addf %274, %276 : vector<8x512xf32>
    %278 = vector.extract_strided_slice %277 {offsets = [0, 0], sizes = [8, 128], strides = [1, 1]} : vector<8x512xf32> to vector<8x128xf32>
    %cst_86 = arith.constant 0.000000e+00 : f32
    %279 = vector.broadcast %cst_86 : f32 to vector<8x128xf32>
    %280 = arith.subf %279, %278 : vector<8x128xf32>
    %281 = math.exp %280 : vector<8x128xf32>
    %cst_87 = arith.constant 1.000000e+00 : f32
    %282 = vector.broadcast %cst_87 : f32 to vector<8x128xf32>
    %283 = arith.addf %282, %281 : vector<8x128xf32>
    %284 = tpu.reciprocal %283 {approx = true} : vector<8x128xf32> -> vector<8x128xf32>
    %285 = vector.extract_strided_slice %277 {offsets = [0, 128], sizes = [8, 128], strides = [1, 1]} : vector<8x512xf32> to vector<8x128xf32>
    %cst_88 = arith.constant 0.000000e+00 : f32
    %286 = vector.broadcast %cst_88 : f32 to vector<8x128xf32>
    %287 = arith.subf %286, %285 : vector<8x128xf32>
    %288 = math.exp %287 : vector<8x128xf32>
    %cst_89 = arith.constant 1.000000e+00 : f32
    %289 = vector.broadcast %cst_89 : f32 to vector<8x128xf32>
    %290 = arith.addf %289, %288 : vector<8x128xf32>
    %291 = tpu.reciprocal %290 {approx = true} : vector<8x128xf32> -> vector<8x128xf32>
    %292 = vector.extract_strided_slice %277 {offsets = [0, 256], sizes = [8, 128], strides = [1, 1]} : vector<8x512xf32> to vector<8x128xf32>
    %293 = math.tanh %292 : vector<8x128xf32>
    %294 = vector.extract_strided_slice %277 {offsets = [0, 384], sizes = [8, 128], strides = [1, 1]} : vector<8x512xf32> to vector<8x128xf32>
    %cst_90 = arith.constant 0.000000e+00 : f32
    %295 = vector.broadcast %cst_90 : f32 to vector<8x128xf32>
    %296 = arith.subf %295, %294 : vector<8x128xf32>
    %297 = math.exp %296 : vector<8x128xf32>
    %cst_91 = arith.constant 1.000000e+00 : f32
    %298 = vector.broadcast %cst_91 : f32 to vector<8x128xf32>
    %299 = arith.addf %298, %297 : vector<8x128xf32>
    %300 = tpu.reciprocal %299 {approx = true} : vector<8x128xf32> -> vector<8x128xf32>
    %301 = arith.mulf %291, %265 : vector<8x128xf32>
    %302 = arith.mulf %284, %293 : vector<8x128xf32>
    %303 = arith.addf %301, %302 : vector<8x128xf32>
    %304 = math.tanh %303 : vector<8x128xf32>
    %305 = arith.mulf %300, %304 : vector<8x128xf32>
    %306 = arith.index_cast %c7_i32 : i32 to index
    %c0_92 = arith.constant 0 : index
    %c0_93 = arith.constant 0 : index
    %307 = vector.load %arg4[%306, %c0_92, %c0_93] : memref<8x8x128xf32, #tpu.memory_space<vmem>>, vector<1x8x128xf32>
    %308 = vector.shape_cast %307 : vector<1x8x128xf32> to vector<8x128xf32>
    %309 = vector.shape_cast %305 : vector<8x128xf32> to vector<1x8x128xf32>
    tpu.vector_store %arg4[%306, %c0_92, %c0_93], %309 {strides = array<i32>} : memref<8x8x128xf32, #tpu.memory_space<vmem>>, vector<1x8x128xf32>,
    %c8_i32 = arith.constant 8 : i32
    %c0_94 = arith.constant 0 : index
    %c0_95 = arith.constant 0 : index
    %310 = vector.load %arg5[%c0_94, %c0_95] : memref<8x128xf32, #tpu.memory_space<vmem>>, vector<8x128xf32>
    tpu.vector_store %arg5[%c0_94, %c0_95], %305 {strides = array<i32>} : memref<8x128xf32, #tpu.memory_space<vmem>>, vector<8x128xf32>,
    %c0_96 = arith.constant 0 : index
    %c0_97 = arith.constant 0 : index
    %311 = vector.load %arg6[%c0_96, %c0_97] : memref<8x128xf32, #tpu.memory_space<vmem>>, vector<8x128xf32>
    tpu.vector_store %arg6[%c0_96, %c0_97], %303 {strides = array<i32>} : memref<8x128xf32, #tpu.memory_space<vmem>>, vector<8x128xf32>,
    return
  }
  func.func @transform_0(%arg0: i32, %arg1: i32) -> (i32, i32, i32) {
    %c0_i32 = arith.constant 0 : i32
    %c0_i32_0 = arith.constant 0 : i32
    return %arg1, %arg0, %c0_i32 : i32, i32, i32
  }
  func.func @transform_1(%arg0: i32, %arg1: i32) -> (i32, i32) {
    %c0_i32 = arith.constant 0 : i32
    %c0_i32_0 = arith.constant 0 : i32
    %c0_i32_1 = arith.constant 0 : i32
    return %c0_i32, %c0_i32_0 : i32, i32
  }
  func.func @transform_2(%arg0: i32, %arg1: i32) -> (i32, i32, i32) {
    %c0_i32 = arith.constant 0 : i32
    %c0_i32_0 = arith.constant 0 : i32
    return %arg1, %arg0, %c0_i32 : i32, i32, i32
  }
  func.func @transform_3(%arg0: i32, %arg1: i32) -> (i32, i32) {
    %c0_i32 = arith.constant 0 : i32
    %c0_i32_0 = arith.constant 0 : i32
    return %arg0, %c0_i32 : i32, i32
  }
  func.func @transform_4(%arg0: i32, %arg1: i32) -> (i32, i32) {
    %c0_i32 = arith.constant 0 : i32
    %c0_i32_0 = arith.constant 0 : i32
    return %arg0, %c0_i32 : i32, i32
  }
}

</mosaic_0001>

<llo_original>
// kernel: rnn_model_forward.7
$region0: #{rnn_model_forward.7}
  #allocation0 [shape = 'u32[]', space=smem, size = 0x4, offset = 0x4, fixed_abs, tag = 'smem constant byte address 0x4 - core index']
  #allocation1 [shape = 'u32[144,128]{1,0:T(1,128)}', space=vmem, size = 0x12000, scoped, tag = 'internal scratch']
  #allocation2 [shape = 'f32[64,256]{1,0:T(8,128)}', space=vmem, size = 0x10000, scoped, tag = 'scratch operand']
  %s0 = inlined_call_operand.vmem [shape: f32[64,128], index: 0, kind: input, shape index: {}]
  %s1 = inlined_call_operand.vmem [shape: bf16[128,512], index: 1, kind: input, shape index: {}]
  %s2 = inlined_call_operand.vmem [shape: f32[1,512], index: 2, kind: input, shape index: {}]
  %s3 = inlined_call_operand.vmem [shape: f32[64,512], index: 3, kind: output, shape index: {}]
  %s4 = sld [smem:[#allocation0]]
  $region110: #{rnn_model_forward.7} parent=0
    _
  %s6 = ssub.s32 1, %s4
  %s7 = scalar_select 0, %s6, %s4
  $region1: #{rnn_model_forward.7} parent=0
    #allocation3 [shape = 'u8[131072]{0}', space=vmem, size = 0x20000, scoped, tag = 'input window, operand 1']
    #allocation4 [shape = 'u8[131072]{0}', space=vmem, size = 0x20000, scoped, tag = 'output window, operand 0']
    loop: start=0, step=1, limit=4
    $region2: #{rnn_model_forward.7} parent=1 // loop_pre_header
      _
    $region3: #{rnn_model_forward.7} parent=1 // loop_header
      %s9 = sphi 0, %s13
      %p10 = scmp.ge.s32.totalorder %s9, 4
      %s16 = sphi 0, %s35
      %s17 = sphi 0, %s31
      %s18 = sphi 0, %s27
      %s19 = sphi 0, %s16
      %s20 = sphi 0, %s17
      %s21 = sphi 0, %s18
      %s22 = sphi 0, %s19
      %s23 = sphi 0, %s20
      %s24 = sphi 0, %s21
      %s40 = sphi 0, %s42
      %s43 = sphi 0, %s40
      %s44 = sphi 0, %s43
      %s60 = sphi 0, %s44
      %s68 = sphi 0, %s70
      %s71 = sphi 0, %s68
      %s72 = sphi 0, %s71
      %s88 = sphi 0, %s72
      %s94 = sphi 0, %s96
      %s97 = sphi 0, %s94
      %s98 = sphi 0, %s97
      %s114 = sphi 0, %s98
      %s122 = sphi 0, %s124
      %s125 = sphi 0, %s122
      %s126 = sphi 0, %s125
      %s142 = sphi 0, %s126
    $region4: #{rnn_model_forward.7} parent=1 // loop_header_branch
      %12 = sbr.rel (%p10) target = $region8
    $region5: #{rnn_model_forward.7} parent=1 // loop_body
      %s14 = ssub.s32 %s9, 1
      %s15 = ssub.s32 %s9, 2
      %s25 = sadd.s32 1, %s18
      %p26 = scmp.ge.s32.totalorder %s25, 1
      %s27 = scalar_select %p26, 0, %s25
      %s28 = sadd.s32 1, %s17
      %s29 = scalar_select %p26, %s28, %s17
      %p30 = scmp.ge.s32.totalorder %s29, 2
      %s31 = scalar_select %p30, 0, %s29
      %s32 = sadd.s32 1, %s16
      %s33 = scalar_select %p30, %s32, %s16
      %p34 = scmp.ge.s32.totalorder %s33, 1
      %s35 = scalar_select %p34, 0, %s33
      %s36 = ssub.s32 %s16, %s35
      %s37 = ssub.s32 %s18, %s27
      %s38 = sor.u32 %s36, %s37
      %p39 = scmp.eq.s32.totalorder %s38, 0
      %s41 = sadd.s32 %s40, 1
      %s42 = scalar_select %p39, %s40, %s41
      %p45 = pneg %p39
      %p46 = scmp.eq.s32.totalorder %s9, 1
      %p47 = por %p45, %p46
      %p48 = scmp.ne.s32.totalorder %s40, %s43
      %p49 = scmp.eq.s32.totalorder %s9, 0
      %p50 = por %p48, %p49
      %p51 = scmp.ne.s32.totalorder %s40, %s43
      %p52 = scmp.eq.s32.totalorder %s14, 1
      %p53 = por %p51, %p52
      %p54 = scmp.ne.s32.totalorder %s43, %s44
      %p55 = scmp.eq.s32.totalorder %s14, 0
      %p56 = por %p54, %p55
      %p57 = scmp.ne.s32.totalorder %s43, %s44
      %p58 = scmp.eq.s32.totalorder %s15, 1
      %p59 = por %p57, %p58
      %p61 = scmp.ne.s32.totalorder %s44, %s60
      %p62 = scmp.eq.s32.totalorder %s15, 0
      %p63 = por %p61, %p62
      %s64 = ssub.s32 %s18, %s27
      %s65 = ssub.s32 %s17, %s31
      %s66 = sor.u32 %s64, %s65
      %p67 = scmp.eq.s32.totalorder %s66, 0
      %s69 = sadd.s32 %s68, 1
      %s70 = scalar_select %p67, %s68, %s69
      %p73 = pneg %p67
      %p74 = scmp.eq.s32.totalorder %s9, 1
      %p75 = por %p73, %p74
      %p76 = scmp.ne.s32.totalorder %s68, %s71
      %p77 = scmp.eq.s32.totalorder %s9, 0
      %p78 = por %p76, %p77
      %p79 = scmp.ne.s32.totalorder %s68, %s71
      %p80 = scmp.eq.s32.totalorder %s14, 1
      %p81 = por %p79, %p80
      %p82 = scmp.ne.s32.totalorder %s71, %s72
      %p83 = scmp.eq.s32.totalorder %s14, 0
      %p84 = por %p82, %p83
      %p85 = scmp.ne.s32.totalorder %s71, %s72
      %p86 = scmp.eq.s32.totalorder %s15, 1
      %p87 = por %p85, %p86
      %p89 = scmp.ne.s32.totalorder %s72, %s88
      %p90 = scmp.eq.s32.totalorder %s15, 0
      %p91 = por %p89, %p90
      %s92 = ssub.s32 %s17, %s31
      %p93 = scmp.eq.s32.totalorder %s92, 0
      %s95 = sadd.s32 %s94, 1
      %s96 = scalar_select %p93, %s94, %s95
      %p99 = pneg %p93
      %p100 = scmp.eq.s32.totalorder %s9, 1
      %p101 = por %p99, %p100
      %p102 = scmp.ne.s32.totalorder %s94, %s97
      %p103 = scmp.eq.s32.totalorder %s9, 0
      %p104 = por %p102, %p103
      %p105 = scmp.ne.s32.totalorder %s94, %s97
      %p106 = scmp.eq.s32.totalorder %s14, 1
      %p107 = por %p105, %p106
      %p108 = scmp.ne.s32.totalorder %s97, %s98
      %p109 = scmp.eq.s32.totalorder %s14, 0
      %p110 = por %p108, %p109
      %p111 = scmp.ne.s32.totalorder %s97, %s98
      %p112 = scmp.eq.s32.totalorder %s15, 1
      %p113 = por %p111, %p112
      %p115 = scmp.ne.s32.totalorder %s98, %s114
      %p116 = scmp.eq.s32.totalorder %s15, 0
      %p117 = por %p115, %p116
      %s118 = ssub.s32 %s16, %s35
      %s119 = ssub.s32 %s17, %s31
      %s120 = sor.u32 %s118, %s119
      %p121 = scmp.eq.s32.totalorder %s120, 0
      %s123 = sadd.s32 %s122, 1
      %s124 = scalar_select %p121, %s122, %s123
      %p127 = pneg %p121
      %p128 = scmp.eq.s32.totalorder %s9, 1
      %p129 = por %p127, %p128
      %p130 = scmp.ne.s32.totalorder %s122, %s125
      %p131 = scmp.eq.s32.totalorder %s9, 0
      %p132 = por %p130, %p131
      %p133 = scmp.ne.s32.totalorder %s122, %s125
      %p134 = scmp.eq.s32.totalorder %s14, 1
      %p135 = por %p133, %p134
      %p136 = scmp.ne.s32.totalorder %s125, %s126
      %p137 = scmp.eq.s32.totalorder %s14, 0
      %p138 = por %p136, %p137
      %p139 = scmp.ne.s32.totalorder %s125, %s126
      %p140 = scmp.eq.s32.totalorder %s15, 1
      %p141 = por %p139, %p140
      %p143 = scmp.ne.s32.totalorder %s126, %s142
      %p144 = scmp.eq.s32.totalorder %s15, 0
      %p145 = por %p143, %p144
      %p146 = scmp.le.s32.totalorder 1, %s9
      %p147 = scmp.lt.s32.totalorder %s9, 3
      %p148 = pnand %p146, %p147
      %p149 = pneg %p148
      // Predicated region
      $region9: #{rnn_model_forward.7} parent=5 // pred_check
        _
      $region10: #{rnn_model_forward.7} parent=5 // pred_check_branch
        %151 = sbr.rel (%p148) target = $region12
      $region11: #{rnn_model_forward.7} parent=5 // pred_region
        %s152 = ssub.s32 %s9, 1
        // Predicated region
        $region13: #{rnn_model_forward.7} parent=11 // pred_check
          %p153 = pneg %p56
        $region14: #{rnn_model_forward.7} parent=11 // pred_check_branch
          %155 = sbr.rel (%p153) target = $region16
        $region15: #{rnn_model_forward.7} parent=11 // pred_region
          %s156 = smul.u32 8, %s19
          %p157 = scmp.lt.s32.totalorder %s156, 7
          %s158 = scalar_select %p157, %s156, 7
          %p159 = scmp.lt.s32.totalorder %s21, 0
          %s160 = scalar_select %p159, %s21, 0
          %s161 = sadd.s32 %s160, %s158
          %s162 = smul.addr %s161, 8
          %s163 = scalar_lea.vmem %s0, %s162
          %s164 = smul.u32 8, %s19
        $region16: #{rnn_model_forward.7} parent=11 // pred_fallthru
          _
      $region12: #{rnn_model_forward.7} parent=5 // pred_fallthru
        _
      %p165 = scmp.lt.s32.totalorder %s9, 2
      // Predicated region
      $region17: #{rnn_model_forward.7} parent=5 // pred_check
        %p166 = pneg %p165
      $region18: #{rnn_model_forward.7} parent=5 // pred_check_branch
        %168 = sbr.rel (%p166) target = $region20
      $region19: #{rnn_model_forward.7} parent=5 // pred_region
        // Predicated region
        $region21: #{rnn_model_forward.7} parent=19 // pred_check
          %p169 = pneg %p78
        $region22: #{rnn_model_forward.7} parent=19 // pred_check_branch
          %171 = sbr.rel (%p169) target = $region24
        $region23: #{rnn_model_forward.7} parent=19 // pred_region
          %s172 = sand.u32 %s68, 1
          %s173 = sand.u32 %s68, 1
          %s174 = smul.addr %s173, 128
          %s175 = scalar_lea.vmem [#allocation3], %s174
          %s176 = smul.u32 16, %s18
          %s177 = smul.u32 2, %s17
          %s178 = smul.addr %s176, 4
          %s179 = sadd.s32 %s177, %s178
          %s180 = smul.addr %s179, 4
          %s181 = scalar_lea.vmem %s1, %s180
          // Predicated region
          $region25: #{rnn_model_forward.7} parent=23 // pred_check
            _
          $region26: #{rnn_model_forward.7} parent=23 // pred_check_branch
            %183 = sbr.rel (0) target = $region28
          $region27: #{rnn_model_forward.7} parent=23 // pred_region
            // Predicated region
            $region29: #{rnn_model_forward.7} parent=27 // pred_check
              _
            $region30: #{rnn_model_forward.7} parent=27 // pred_check_branch
              %185 = sbr.rel (0) target = $region32
            $region31: #{rnn_model_forward.7} parent=27 // pred_region
              // Predicated region
              $region44: #{rnn_model_forward.7} parent=31 // pred_check
                _
              $region45: #{rnn_model_forward.7} parent=31 // pred_check_branch
                %230 = sbr.rel (0) target = $region47
              $region46: #{rnn_model_forward.7} parent=31 // pred_region
                loop: start=0, step=1, limit=1
                $region48: #{rnn_model_forward.7} parent=46 // loop_pre_header
                  _
                $region49: #{rnn_model_forward.7} parent=46 // loop_header
                  %s232 = sphi 0, %s236
                  %p233 = scmp.ge.s32.totalorder %s232, 1
                  %s237 = sphi %s181, %s181
                  %s238 = sphi %s175, %s175
                $region50: #{rnn_model_forward.7} parent=46 // loop_header_branch
                  %235 = sbr.rel (%p233) target = $region54
                $region51: #{rnn_model_forward.7} parent=46 // loop_body
                  %v239 = vld [vmem:[%s237] sm:$0xff]
                  %240 = vst [vmem:[%s238] sm:$0xff] %v239
                  %v241 = vld [vmem:[%s237 + $0x10] sm:$0xff]
                  %242 = vst [vmem:[%s238 + $0x8] sm:$0xff] %v241
                  %v243 = vld [vmem:[%s237 + $0x20] sm:$0xff]
                  %244 = vst [vmem:[%s238 + $0x10] sm:$0xff] %v243
                  %v245 = vld [vmem:[%s237 + $0x30] sm:$0xff]
                  %246 = vst [vmem:[%s238 + $0x18] sm:$0xff] %v245
                  %v247 = vld [vmem:[%s237 + $0x40] sm:$0xff]
                  %248 = vst [vmem:[%s238 + $0x20] sm:$0xff] %v247
                  %v249 = vld [vmem:[%s237 + $0x50] sm:$0xff]
                  %250 = vst [vmem:[%s238 + $0x28] sm:$0xff] %v249
                  %v251 = vld [vmem:[%s237 + $0x60] sm:$0xff]
                  %252 = vst [vmem:[%s238 + $0x30] sm:$0xff] %v251
                  %v253 = vld [vmem:[%s237 + $0x70] sm:$0xff]
                  %254 = vst [vmem:[%s238 + $0x38] sm:$0xff] %v253
                  %v255 = vld [vmem:[%s237 + $0x80] sm:$0xff]
                  %256 = vst [vmem:[%s238 + $0x40] sm:$0xff] %v255
                  %v257 = vld [vmem:[%s237 + $0x90] sm:$0xff]
                  %258 = vst [vmem:[%s238 + $0x48] sm:$0xff] %v257
                  %v259 = vld [vmem:[%s237 + $0xa0] sm:$0xff]
                  %260 = vst [vmem:[%s238 + $0x50] sm:$0xff] %v259
                  %v261 = vld [vmem:[%s237 + $0xb0] sm:$0xff]
                  %262 = vst [vmem:[%s238 + $0x58] sm:$0xff] %v261
                  %v263 = vld [vmem:[%s237 + $0xc0] sm:$0xff]
                  %264 = vst [vmem:[%s238 + $0x60] sm:$0xff] %v263
                  %v265 = vld [vmem:[%s237 + $0xd0] sm:$0xff]
                  %266 = vst [vmem:[%s238 + $0x68] sm:$0xff] %v265
                  %v267 = vld [vmem:[%s237 + $0xe0] sm:$0xff]
                  %268 = vst [vmem:[%s238 + $0x70] sm:$0xff] %v267
                  %v269 = vld [vmem:[%s237 + $0xf0] sm:$0xff]
                  %270 = vst [vmem:[%s238 + $0x78] sm:$0xff] %v269
                $region52: #{rnn_model_forward.7} parent=46 // loop_footer
                  %s236 = sadd.s32 1, %s232
                $region53: #{rnn_model_forward.7} parent=46 // loop_footer_branch
                  %231 = sbr.rel target = $region49
                $region54: #{rnn_model_forward.7} parent=46 // loop_exit
                  _
              $region47: #{rnn_model_forward.7} parent=31 // pred_fallthru
                _
              // Predicated region
              $region55: #{rnn_model_forward.7} parent=31 // pred_check
                _
              $region56: #{rnn_model_forward.7} parent=31 // pred_check_branch
                %272 = sbr.rel target = $region58
              $region57: #{rnn_model_forward.7} parent=31 // pred_region
                _
              $region58: #{rnn_model_forward.7} parent=31 // pred_fallthru
                _
            $region32: #{rnn_model_forward.7} parent=27 // pred_fallthru
              _
            // Predicated region
            $region33: #{rnn_model_forward.7} parent=27 // pred_check
              _
            $region34: #{rnn_model_forward.7} parent=27 // pred_check_branch
              %187 = sbr.rel target = $region36
            $region35: #{rnn_model_forward.7} parent=27 // pred_region
              loop: start=0, step=1, limit=1
              $region37: #{rnn_model_forward.7} parent=35 // loop_pre_header
                _
              $region38: #{rnn_model_forward.7} parent=35 // loop_header
                %s190 = sphi 0, %s194
                %p191 = scmp.ge.s32.totalorder %s190, 1
                %s195 = sphi %s181, %s181
                %s196 = sphi %s175, %s175
              $region39: #{rnn_model_forward.7} parent=35 // loop_header_branch
                %193 = sbr.rel (%p191) target = $region43
              $region40: #{rnn_model_forward.7} parent=35 // loop_body
                %v197 = vld [vmem:[%s195] sm:$0xff]
                %198 = vst [vmem:[%s196] sm:$0xff] %v197
                %v199 = vld [vmem:[%s195 + $0x10] sm:$0xff]
                %200 = vst [vmem:[%s196 + $0x8] sm:$0xff] %v199
                %v201 = vld [vmem:[%s195 + $0x20] sm:$0xff]
                %202 = vst [vmem:[%s196 + $0x10] sm:$0xff] %v201
                %v203 = vld [vmem:[%s195 + $0x30] sm:$0xff]
                %204 = vst [vmem:[%s196 + $0x18] sm:$0xff] %v203
                %v205 = vld [vmem:[%s195 + $0x40] sm:$0xff]
                %206 = vst [vmem:[%s196 + $0x20] sm:$0xff] %v205
                %v207 = vld [vmem:[%s195 + $0x50] sm:$0xff]
                %208 = vst [vmem:[%s196 + $0x28] sm:$0xff] %v207
                %v209 = vld [vmem:[%s195 + $0x60] sm:$0xff]
                %210 = vst [vmem:[%s196 + $0x30] sm:$0xff] %v209
                %v211 = vld [vmem:[%s195 + $0x70] sm:$0xff]
                %212 = vst [vmem:[%s196 + $0x38] sm:$0xff] %v211
                %v213 = vld [vmem:[%s195 + $0x80] sm:$0xff]
                %214 = vst [vmem:[%s196 + $0x40] sm:$0xff] %v213
                %v215 = vld [vmem:[%s195 + $0x90] sm:$0xff]
                %216 = vst [vmem:[%s196 + $0x48] sm:$0xff] %v215
                %v217 = vld [vmem:[%s195 + $0xa0] sm:$0xff]
                %218 = vst [vmem:[%s196 + $0x50] sm:$0xff] %v217
                %v219 = vld [vmem:[%s195 + $0xb0] sm:$0xff]
                %220 = vst [vmem:[%s196 + $0x58] sm:$0xff] %v219
                %v221 = vld [vmem:[%s195 + $0xc0] sm:$0xff]
                %222 = vst [vmem:[%s196 + $0x60] sm:$0xff] %v221
                %v223 = vld [vmem:[%s195 + $0xd0] sm:$0xff]
                %224 = vst [vmem:[%s196 + $0x68] sm:$0xff] %v223
                %v225 = vld [vmem:[%s195 + $0xe0] sm:$0xff]
                %226 = vst [vmem:[%s196 + $0x70] sm:$0xff] %v225
                %v227 = vld [vmem:[%s195 + $0xf0] sm:$0xff]
                %228 = vst [vmem:[%s196 + $0x78] sm:$0xff] %v227
              $region41: #{rnn_model_forward.7} parent=35 // loop_footer
                %s194 = sadd.s32 1, %s190
              $region42: #{rnn_model_forward.7} parent=35 // loop_footer_branch
                %189 = sbr.rel target = $region38
              $region43: #{rnn_model_forward.7} parent=35 // loop_exit
                _
            $region36: #{rnn_model_forward.7} parent=27 // pred_fallthru
              _
          $region28: #{rnn_model_forward.7} parent=23 // pred_fallthru
            _
          %273 = vnop
        $region24: #{rnn_model_forward.7} parent=19 // pred_fallthru
          _
        // Predicated region
        $region59: #{rnn_model_forward.7} parent=19 // pred_check
          %p274 = pneg %p104
        $region60: #{rnn_model_forward.7} parent=19 // pred_check_branch
          %276 = sbr.rel (%p274) target = $region62
        $region61: #{rnn_model_forward.7} parent=19 // pred_region
          %s277 = smul.u32 2, %s17
          %p278 = scmp.lt.s32.totalorder %s277, 3
          %s279 = scalar_select %p278, %s277, 3
          %s280 = scalar_lea.vmem %s2, %s279
          %s281 = smul.u32 2, %s17
        $region62: #{rnn_model_forward.7} parent=19 // pred_fallthru
          _
      $region20: #{rnn_model_forward.7} parent=5 // pred_fallthru
        _
      %p282 = scmp.le.s32.totalorder 1, %s9
      %p283 = scmp.lt.s32.totalorder %s9, 3
      %p284 = pnand %p282, %p283
      %p285 = pneg %p284
      // Predicated region
      $region63: #{rnn_model_forward.7} parent=5 // pred_check
        _
      $region64: #{rnn_model_forward.7} parent=5 // pred_check_branch
        %287 = sbr.rel (%p284) target = $region66
      $region65: #{rnn_model_forward.7} parent=5 // pred_region
        %s288 = ssub.s32 %s9, 1
        %s289 = sand.u32 %s71, 1
        %s290 = sand.u32 %s71, 1
        %s291 = smul.addr %s290, 128
        %s292 = scalar_lea.vmem [#allocation3], %s291
        // Predicated region
        $region67: #{rnn_model_forward.7} parent=65 // pred_check
          %p293 = pneg %p84
        $region68: #{rnn_model_forward.7} parent=65 // pred_check_branch
          %295 = sbr.rel (%p293) target = $region70
        $region69: #{rnn_model_forward.7} parent=65 // pred_region
          _
        $region70: #{rnn_model_forward.7} parent=65 // pred_fallthru
          _
        %s296 = smul.u32 8, %s19
        %p297 = scmp.lt.s32.totalorder %s296, 7
        %s298 = scalar_select %p297, %s296, 7
        %p299 = scmp.lt.s32.totalorder %s21, 0
        %s300 = scalar_select %p299, %s21, 0
        %s301 = sadd.s32 %s300, %s298
        %s302 = smul.addr %s301, 8
        %s303 = scalar_lea.vmem %s0, %s302
        %p304 = pneg %p56
        %p305 = pneg %p53
        %s306 = sand.u32 %s71, 1
        %s307 = sand.u32 %s71, 1
        %s308 = smul.addr %s307, 128
        %s309 = scalar_lea.vmem [#allocation3], %s308
        %p310 = pneg %p84
        %p311 = pneg %p81
        %s312 = smul.u32 2, %s20
        %p313 = scmp.lt.s32.totalorder %s312, 3
        %s314 = scalar_select %p313, %s312, 3
        %s315 = scalar_lea.vmem %s2, %s314
        %p316 = pneg %p110
        %p317 = pneg %p107
        %p318 = pneg %p138
        %p319 = pneg %p135
        %s320 = sand.u32 %s125, 1
        %s321 = sand.u32 %s125, 1
        %s322 = smul.addr %s321, 128
        %s323 = scalar_lea.vmem [#allocation4], %s322
        %s324 = smul.u32 8, %s19
        %p325 = scmp.lt.s32.totalorder %s324, 7
        %s326 = scalar_select %p325, %s324, 7
        %p327 = scmp.lt.s32.totalorder %s21, 0
        %s328 = scalar_select %p327, %s21, 0
        %s329 = sadd.s32 %s328, %s326
        %s330 = smul.addr %s329, 8
        %s331 = scalar_lea.vmem %s0, %s330
        %s332 = smul.u32 8, %s19
        %s333 = smul.u32 16, %s21
        %s334 = smul.u32 2, %s20
        %s335 = smul.u32 2, %s20
        %p336 = scmp.lt.s32.totalorder %s335, 3
        %s337 = scalar_select %p336, %s335, 3
        %s338 = scalar_lea.vmem %s2, %s337
        %s339 = smul.u32 2, %s20
        %s340 = smul.u32 8, %s19
        %s341 = smul.u32 2, %s20
        %p343 = scmp.eq.s32.totalorder %s21, 0
        // Predicated region
        $region71: #{rnn_model_forward.7} parent=65 // pred_check
          %p344 = pneg %p343
        $region72: #{rnn_model_forward.7} parent=65 // pred_check_branch
          %346 = sbr.rel (%p344) target = $region74
        $region73: #{rnn_model_forward.7} parent=65 // pred_region
          %347 = vst [vmem:[#allocation2] sm:$0xff] 0.0
          %348 = vst [vmem:[#allocation2 + $0x8] sm:$0xff] 0.0
          %349 = vst [vmem:[#allocation2 + $0x10] sm:$0xff] 0.0
          %350 = vst [vmem:[#allocation2 + $0x18] sm:$0xff] 0.0
          %351 = vst [vmem:[#allocation2 + $0x20] sm:$0xff] 0.0
          %352 = vst [vmem:[#allocation2 + $0x28] sm:$0xff] 0.0
          %353 = vst [vmem:[#allocation2 + $0x30] sm:$0xff] 0.0
          %354 = vst [vmem:[#allocation2 + $0x38] sm:$0xff] 0.0
          %355 = vst [vmem:[#allocation2 + $0x40] sm:$0xff] 0.0
          %356 = vst [vmem:[#allocation2 + $0x48] sm:$0xff] 0.0
          %357 = vst [vmem:[#allocation2 + $0x50] sm:$0xff] 0.0
          %358 = vst [vmem:[#allocation2 + $0x58] sm:$0xff] 0.0
          %359 = vst [vmem:[#allocation2 + $0x60] sm:$0xff] 0.0
          %360 = vst [vmem:[#allocation2 + $0x68] sm:$0xff] 0.0
          %361 = vst [vmem:[#allocation2 + $0x70] sm:$0xff] 0.0
          %362 = vst [vmem:[#allocation2 + $0x78] sm:$0xff] 0.0
        $region74: #{rnn_model_forward.7} parent=65 // pred_fallthru
          _
        %v363 = vld [vmem:[#allocation2] sm:$0xff]
        %v364 = vld [vmem:[#allocation2 + $0x8] sm:$0xff]
        %v365 = vld [vmem:[#allocation2 + $0x10] sm:$0xff]
        %v366 = vld [vmem:[#allocation2 + $0x18] sm:$0xff]
        %v367 = vld [vmem:[#allocation2 + $0x20] sm:$0xff]
        %v368 = vld [vmem:[#allocation2 + $0x28] sm:$0xff]
        %v369 = vld [vmem:[#allocation2 + $0x30] sm:$0xff]
        %v370 = vld [vmem:[#allocation2 + $0x38] sm:$0xff]
        %v371 = vld [vmem:[#allocation2 + $0x40] sm:$0xff]
        %v372 = vld [vmem:[#allocation2 + $0x48] sm:$0xff]
        %v373 = vld [vmem:[#allocation2 + $0x50] sm:$0xff]
        %v374 = vld [vmem:[#allocation2 + $0x58] sm:$0xff]
        %v375 = vld [vmem:[#allocation2 + $0x60] sm:$0xff]
        %v376 = vld [vmem:[#allocation2 + $0x68] sm:$0xff]
        %v377 = vld [vmem:[#allocation2 + $0x70] sm:$0xff]
        %v378 = vld [vmem:[#allocation2 + $0x78] sm:$0xff]
        %v379 = vld [vmem:[%s331] sm:$0xff]
        %v380 = vld [vmem:[%s331 + $0x8] sm:$0xff]
        %v381 = vld [vmem:[%s331 + $0x10] sm:$0xff]
        %v382 = vld [vmem:[%s331 + $0x18] sm:$0xff]
        %v383 = vld [vmem:[%s331 + $0x20] sm:$0xff]
        %v384 = vld [vmem:[%s331 + $0x28] sm:$0xff]
        %v385 = vld [vmem:[%s331 + $0x30] sm:$0xff]
        %v386 = vld [vmem:[%s331 + $0x38] sm:$0xff]
        %v387 = vpack.c.bf16 %v380, %v379
        %v388 = vpack.c.bf16 %v382, %v381
        %v389 = vpack.c.bf16 %v384, %v383
        %v390 = vpack.c.bf16 %v386, %v385
        %v391 = vld [vmem:[%s292] sm:$0xff]
        %v392 = vld [vmem:[%s292 + $0x8] sm:$0xff]
        %v393 = vld [vmem:[%s292 + $0x10] sm:$0xff]
        %v394 = vld [vmem:[%s292 + $0x18] sm:$0xff]
        %v395 = vld [vmem:[%s292 + $0x20] sm:$0xff]
        %v396 = vld [vmem:[%s292 + $0x28] sm:$0xff]
        %v397 = vld [vmem:[%s292 + $0x30] sm:$0xff]
        %v398 = vld [vmem:[%s292 + $0x38] sm:$0xff]
        %v399 = vld [vmem:[%s292 + $0x40] sm:$0xff]
        %v400 = vld [vmem:[%s292 + $0x48] sm:$0xff]
        %v401 = vld [vmem:[%s292 + $0x50] sm:$0xff]
        %v402 = vld [vmem:[%s292 + $0x58] sm:$0xff]
        %v403 = vld [vmem:[%s292 + $0x60] sm:$0xff]
        %v404 = vld [vmem:[%s292 + $0x68] sm:$0xff]
        %v405 = vld [vmem:[%s292 + $0x70] sm:$0xff]
        %v406 = vld [vmem:[%s292 + $0x78] sm:$0xff]
        %v423 = vunpack.c.l.b16 %v391
        %v424 = vunpack.c.h.b16 %v391
        %v425 = vunpack.c.l.b16 %v392
        %v426 = vunpack.c.h.b16 %v392
        %v427 = vunpack.c.l.b16 %v393
        %v428 = vunpack.c.h.b16 %v393
        %v429 = vunpack.c.l.b16 %v394
        %v430 = vunpack.c.h.b16 %v394
        %v431 = vunpack.c.l.b16 %v395
        %v432 = vunpack.c.h.b16 %v395
        %v433 = vunpack.c.l.b16 %v396
        %v434 = vunpack.c.h.b16 %v396
        %v435 = vunpack.c.l.b16 %v397
        %v436 = vunpack.c.h.b16 %v397
        %v437 = vunpack.c.l.b16 %v398
        %v438 = vunpack.c.h.b16 %v398
        %v439 = vunpack.c.l.b16 %v399
        %v440 = vunpack.c.h.b16 %v399
        %v441 = vunpack.c.l.b16 %v400
        %v442 = vunpack.c.h.b16 %v400
        %v443 = vunpack.c.l.b16 %v401
        %v444 = vunpack.c.h.b16 %v401
        %v445 = vunpack.c.l.b16 %v402
        %v446 = vunpack.c.h.b16 %v402
        %v447 = vunpack.c.l.b16 %v403
        %v448 = vunpack.c.h.b16 %v403
        %v449 = vunpack.c.l.b16 %v404
        %v450 = vunpack.c.h.b16 %v404
        %v451 = vunpack.c.l.b16 %v405
        %v452 = vunpack.c.h.b16 %v405
        %v453 = vunpack.c.l.b16 %v406
        %v454 = vunpack.c.h.b16 %v406
        %v455 = vpack.c.b16 %v425, %v423
        %v456 = vpack.c.b16 %v426, %v424
        %v457 = vpack.c.b16 %v429, %v427
        %v458 = vpack.c.b16 %v430, %v428
        %v459 = vpack.c.b16 %v433, %v431
        %v460 = vpack.c.b16 %v434, %v432
        %v461 = vpack.c.b16 %v437, %v435
        %v462 = vpack.c.b16 %v438, %v436
        %v463 = vpack.c.b16 %v441, %v439
        %v464 = vpack.c.b16 %v442, %v440
        %v465 = vpack.c.b16 %v445, %v443
        %v466 = vpack.c.b16 %v446, %v444
        %v467 = vpack.c.b16 %v449, %v447
        %v468 = vpack.c.b16 %v450, %v448
        %v469 = vpack.c.b16 %v453, %v451
        %v470 = vpack.c.b16 %v454, %v452
        %487 = vmatprep.subr.bf16.mxu0 %v456
        %488 = vmatpush1.bf16.msra.mxu0 %v455
        %489 = vmatprep.subr.bf16.mxu0 %v458
        %490 = vmatpush1.bf16.msra.mxu0 %v457
        %491 = vmatprep.subr.bf16.mxu0 %v460
        %492 = vmatpush1.bf16.msra.mxu0 %v459
        %493 = vmatprep.subr.bf16.mxu0 %v462
        %494 = vmatpush1.bf16.msra.mxu0 %v461
        %495 = vmatprep.subr.bf16.mxu0 %v464
        %496 = vmatpush1.bf16.msra.mxu0 %v463
        %497 = vmatprep.subr.bf16.mxu0 %v466
        %498 = vmatpush1.bf16.msra.mxu0 %v465
        %499 = vmatprep.subr.bf16.mxu0 %v468
        %500 = vmatpush1.bf16.msra.mxu0 %v467
        %501 = vmatprep.subr.bf16.mxu0 %v470
        %502 = vmatpush1.bf16.msra.mxu0 %v469
        %503 = vmatprep.subr.bf16.mxu0 0
        %504 = vmatpush1.bf16.msra.mxu0 0
        %505 = vmatprep.subr.bf16.mxu0 0
        %506 = vmatpush1.bf16.msra.mxu0 0
        %507 = vmatprep.subr.bf16.mxu0 0
        %508 = vmatpush1.bf16.msra.mxu0 0
        %509 = vmatprep.subr.bf16.mxu0 0
        %510 = vmatpush1.bf16.msra.mxu0 0
        %511 = vmatprep.subr.bf16.mxu0 0
        %512 = vmatpush1.bf16.msra.mxu0 0
        %513 = vmatprep.subr.bf16.mxu0 0
        %514 = vmatpush1.bf16.msra.mxu0 0
        %515 = vmatprep.subr.bf16.mxu0 0
        %516 = vmatpush1.bf16.msra.mxu0 0
        %517 = vmatprep.subr.bf16.mxu0 0
        %518 = vmatpush1.bf16.msra.mxu0 0
        %519 = vmatprep.mubr.bf16.mxu0 0
        %520 = vmatmul.mubr.bf16.gmra.mrb[0].mxu0 %v387
        %v521 = vpop.f32.mrb[0].mxu0
        %v522 = vadd.f32 0.0, %v521
        %v523 = vpop.f32.mrb[0].mxu0
        %v524 = vadd.f32 0.0, %v523
        %v525 = vpop.f32.mrb[0].mxu0
        %v526 = vadd.f32 0.0, %v525
        %v527 = vpop.f32.mrb[0].mxu0
        %v528 = vadd.f32 0.0, %v527
        %529 = vmatprep.mubr.bf16.mxu0 0
        %530 = vmatmul.mubr.bf16.gmra.mrb[0].mxu0 %v388
        %v531 = vpop.f32.mrb[0].mxu0
        %v532 = vadd.f32 0.0, %v531
        %v533 = vpop.f32.mrb[0].mxu0
        %v534 = vadd.f32 0.0, %v533
        %v535 = vpop.f32.mrb[0].mxu0
        %v536 = vadd.f32 0.0, %v535
        %v537 = vpop.f32.mrb[0].mxu0
        %v538 = vadd.f32 0.0, %v537
        %539 = vmatprep.mubr.bf16.mxu0 0
        %540 = vmatmul.mubr.bf16.gmra.mrb[0].mxu0 %v389
        %v541 = vpop.f32.mrb[0].mxu0
        %v542 = vadd.f32 0.0, %v541
        %v543 = vpop.f32.mrb[0].mxu0
        %v544 = vadd.f32 0.0, %v543
        %v545 = vpop.f32.mrb[0].mxu0
        %v546 = vadd.f32 0.0, %v545
        %v547 = vpop.f32.mrb[0].mxu0
        %v548 = vadd.f32 0.0, %v547
        %549 = vmatprep.mubr.bf16.mxu0 0
        %550 = vmatmul.mubr.bf16.gmra.mrb[0].mxu0 %v390
        %v551 = vpop.f32.mrb[0].mxu0
        %v552 = vadd.f32 0.0, %v551
        %v553 = vpop.f32.mrb[0].mxu0
        %v554 = vadd.f32 0.0, %v553
        %v555 = vpop.f32.mrb[0].mxu0
        %v556 = vadd.f32 0.0, %v555
        %v557 = vpop.f32.mrb[0].mxu0
        %v558 = vadd.f32 0.0, %v557
        %559 = vdwg.mxu0
        %v560 = vadd.f32 %v363, %v522
        %v561 = vadd.f32 %v364, %v524
        %v562 = vadd.f32 %v365, %v526
        %v563 = vadd.f32 %v366, %v528
        %v564 = vadd.f32 %v367, %v532
        %v565 = vadd.f32 %v368, %v534
        %v566 = vadd.f32 %v369, %v536
        %v567 = vadd.f32 %v370, %v538
        %v568 = vadd.f32 %v371, %v542
        %v569 = vadd.f32 %v372, %v544
        %v570 = vadd.f32 %v373, %v546
        %v571 = vadd.f32 %v374, %v548
        %v572 = vadd.f32 %v375, %v552
        %v573 = vadd.f32 %v376, %v554
        %v574 = vadd.f32 %v377, %v556
        %v575 = vadd.f32 %v378, %v558
        %576 = vst [vmem:[#allocation2] sm:$0xff] %v560
        %577 = vst [vmem:[#allocation2 + $0x8] sm:$0xff] %v561
        %578 = vst [vmem:[#allocation2 + $0x10] sm:$0xff] %v562
        %579 = vst [vmem:[#allocation2 + $0x18] sm:$0xff] %v563
        %580 = vst [vmem:[#allocation2 + $0x20] sm:$0xff] %v564
        %581 = vst [vmem:[#allocation2 + $0x28] sm:$0xff] %v565
        %582 = vst [vmem:[#allocation2 + $0x30] sm:$0xff] %v566
        %583 = vst [vmem:[#allocation2 + $0x38] sm:$0xff] %v567
        %584 = vst [vmem:[#allocation2 + $0x40] sm:$0xff] %v568
        %585 = vst [vmem:[#allocation2 + $0x48] sm:$0xff] %v569
        %586 = vst [vmem:[#allocation2 + $0x50] sm:$0xff] %v570
        %587 = vst [vmem:[#allocation2 + $0x58] sm:$0xff] %v571
        %588 = vst [vmem:[#allocation2 + $0x60] sm:$0xff] %v572
        %589 = vst [vmem:[#allocation2 + $0x68] sm:$0xff] %v573
        %590 = vst [vmem:[#allocation2 + $0x70] sm:$0xff] %v574
        %591 = vst [vmem:[#allocation2 + $0x78] sm:$0xff] %v575
        // Predicated region
        $region75: #{rnn_model_forward.7} parent=65 // pred_check
          %p592 = pneg %p343
        $region76: #{rnn_model_forward.7} parent=65 // pred_check_branch
          %594 = sbr.rel (%p592) target = $region78
        $region77: #{rnn_model_forward.7} parent=65 // pred_region
          %v595 = vld [vmem:[#allocation2] sm:$0xff]
          %v596 = vld [vmem:[#allocation2 + $0x8] sm:$0xff]
          %v597 = vld [vmem:[#allocation2 + $0x10] sm:$0xff]
          %v598 = vld [vmem:[#allocation2 + $0x18] sm:$0xff]
          %v599 = vld [vmem:[#allocation2 + $0x20] sm:$0xff]
          %v600 = vld [vmem:[#allocation2 + $0x28] sm:$0xff]
          %v601 = vld [vmem:[#allocation2 + $0x30] sm:$0xff]
          %v602 = vld [vmem:[#allocation2 + $0x38] sm:$0xff]
          %v603 = vld [vmem:[#allocation2 + $0x40] sm:$0xff]
          %v604 = vld [vmem:[#allocation2 + $0x48] sm:$0xff]
          %v605 = vld [vmem:[#allocation2 + $0x50] sm:$0xff]
          %v606 = vld [vmem:[#allocation2 + $0x58] sm:$0xff]
          %v607 = vld [vmem:[#allocation2 + $0x60] sm:$0xff]
          %v608 = vld [vmem:[#allocation2 + $0x68] sm:$0xff]
          %v609 = vld [vmem:[#allocation2 + $0x70] sm:$0xff]
          %v610 = vld [vmem:[#allocation2 + $0x78] sm:$0xff]
          %v611 = vld [vmem:[%s338] sm:$0x3]
          %v613 = vlaneseq
          %v614 = vshrl.u32 %v613, 7
          %v615 = vsub.s32 0, %v614
          %v616 = vrot.slane %v611, %v615
          %v617 = vlaneseq
          %v618 = vshrl.u32 %v617, 7
          %v619 = vsub.s32 1, %v618
          %v620 = vrot.slane %v611, %v619
          %v623 = vadd.f32 %v595, %v616
          %v624 = vadd.f32 %v596, %v620
          %v625 = vadd.f32 %v597, %v616
          %v626 = vadd.f32 %v598, %v620
          %v627 = vadd.f32 %v599, %v616
          %v628 = vadd.f32 %v600, %v620
          %v629 = vadd.f32 %v601, %v616
          %v630 = vadd.f32 %v602, %v620
          %v631 = vadd.f32 %v603, %v616
          %v632 = vadd.f32 %v604, %v620
          %v633 = vadd.f32 %v605, %v616
          %v634 = vadd.f32 %v606, %v620
          %v635 = vadd.f32 %v607, %v616
          %v636 = vadd.f32 %v608, %v620
          %v637 = vadd.f32 %v609, %v616
          %v638 = vadd.f32 %v610, %v620
          %639 = vst [vmem:[%s323] sm:$0xff] %v623
          %640 = vst [vmem:[%s323 + $0x8] sm:$0xff] %v624
          %641 = vst [vmem:[%s323 + $0x10] sm:$0xff] %v625
          %642 = vst [vmem:[%s323 + $0x18] sm:$0xff] %v626
          %643 = vst [vmem:[%s323 + $0x20] sm:$0xff] %v627
          %644 = vst [vmem:[%s323 + $0x28] sm:$0xff] %v628
          %645 = vst [vmem:[%s323 + $0x30] sm:$0xff] %v629
          %646 = vst [vmem:[%s323 + $0x38] sm:$0xff] %v630
          %647 = vst [vmem:[%s323 + $0x40] sm:$0xff] %v631
          %648 = vst [vmem:[%s323 + $0x48] sm:$0xff] %v632
          %649 = vst [vmem:[%s323 + $0x50] sm:$0xff] %v633
          %650 = vst [vmem:[%s323 + $0x58] sm:$0xff] %v634
          %651 = vst [vmem:[%s323 + $0x60] sm:$0xff] %v635
          %652 = vst [vmem:[%s323 + $0x68] sm:$0xff] %v636
          %653 = vst [vmem:[%s323 + $0x70] sm:$0xff] %v637
          %654 = vst [vmem:[%s323 + $0x78] sm:$0xff] %v638
        $region78: #{rnn_model_forward.7} parent=65 // pred_fallthru
          _
        %s655 = sand.u32 %s125, 1
        %s656 = sand.u32 %s125, 1
        %s657 = smul.addr %s656, 128
        %s658 = scalar_lea.vmem [#allocation4], %s657
        // Predicated region
        $region79: #{rnn_model_forward.7} parent=65 // pred_check
          %p659 = pneg %p135
        $region80: #{rnn_model_forward.7} parent=65 // pred_check_branch
          %661 = sbr.rel (%p659) target = $region82
        $region81: #{rnn_model_forward.7} parent=65 // pred_region
          %s662 = smul.u32 8, %s19
          %s663 = smul.u32 2, %s20
          %s664 = smul.addr %s662, 4
          %s665 = sadd.s32 %s663, %s664
          %s666 = smul.addr %s665, 8
          %s667 = scalar_lea.vmem %s3, %s666
          // Predicated region
          $region83: #{rnn_model_forward.7} parent=81 // pred_check
            _
          $region84: #{rnn_model_forward.7} parent=81 // pred_check_branch
            %669 = sbr.rel (0) target = $region86
          $region85: #{rnn_model_forward.7} parent=81 // pred_region
            // Predicated region
            $region87: #{rnn_model_forward.7} parent=85 // pred_check
              _
            $region88: #{rnn_model_forward.7} parent=85 // pred_check_branch
              %671 = sbr.rel (0) target = $region90
            $region89: #{rnn_model_forward.7} parent=85 // pred_region
              loop: start=0, step=1, limit=1
              $region91: #{rnn_model_forward.7} parent=89 // loop_pre_header
                _
              $region92: #{rnn_model_forward.7} parent=89 // loop_header
                %s673 = sphi 0, %s677
                %p674 = scmp.ge.s32.totalorder %s673, 1
                %s678 = sphi %s658, %s658
                %s679 = sphi %s667, %s667
              $region93: #{rnn_model_forward.7} parent=89 // loop_header_branch
                %676 = sbr.rel (%p674) target = $region97
              $region94: #{rnn_model_forward.7} parent=89 // loop_body
                %v680 = vld [vmem:[%s678] sm:$0xff]
                %681 = vst [vmem:[%s679] sm:$0xff] %v680
                %v682 = vld [vmem:[%s678 + $0x8] sm:$0xff]
                %683 = vst [vmem:[%s679 + $0x8] sm:$0xff] %v682
                %v684 = vld [vmem:[%s678 + $0x10] sm:$0xff]
                %685 = vst [vmem:[%s679 + $0x20] sm:$0xff] %v684
                %v686 = vld [vmem:[%s678 + $0x18] sm:$0xff]
                %687 = vst [vmem:[%s679 + $0x28] sm:$0xff] %v686
                %v688 = vld [vmem:[%s678 + $0x20] sm:$0xff]
                %689 = vst [vmem:[%s679 + $0x40] sm:$0xff] %v688
                %v690 = vld [vmem:[%s678 + $0x28] sm:$0xff]
                %691 = vst [vmem:[%s679 + $0x48] sm:$0xff] %v690
                %v692 = vld [vmem:[%s678 + $0x30] sm:$0xff]
                %693 = vst [vmem:[%s679 + $0x60] sm:$0xff] %v692
                %v694 = vld [vmem:[%s678 + $0x38] sm:$0xff]
                %695 = vst [vmem:[%s679 + $0x68] sm:$0xff] %v694
                %v696 = vld [vmem:[%s678 + $0x40] sm:$0xff]
                %697 = vst [vmem:[%s679 + $0x80] sm:$0xff] %v696
                %v698 = vld [vmem:[%s678 + $0x48] sm:$0xff]
                %699 = vst [vmem:[%s679 + $0x88] sm:$0xff] %v698
                %v700 = vld [vmem:[%s678 + $0x50] sm:$0xff]
                %701 = vst [vmem:[%s679 + $0xa0] sm:$0xff] %v700
                %v702 = vld [vmem:[%s678 + $0x58] sm:$0xff]
                %703 = vst [vmem:[%s679 + $0xa8] sm:$0xff] %v702
                %v704 = vld [vmem:[%s678 + $0x60] sm:$0xff]
                %705 = vst [vmem:[%s679 + $0xc0] sm:$0xff] %v704
                %v706 = vld [vmem:[%s678 + $0x68] sm:$0xff]
                %707 = vst [vmem:[%s679 + $0xc8] sm:$0xff] %v706
                %v708 = vld [vmem:[%s678 + $0x70] sm:$0xff]
                %709 = vst [vmem:[%s679 + $0xe0] sm:$0xff] %v708
                %v710 = vld [vmem:[%s678 + $0x78] sm:$0xff]
                %711 = vst [vmem:[%s679 + $0xe8] sm:$0xff] %v710
              $region95: #{rnn_model_forward.7} parent=89 // loop_footer
                %s677 = sadd.s32 1, %s673
              $region96: #{rnn_model_forward.7} parent=89 // loop_footer_branch
                %672 = sbr.rel target = $region92
              $region97: #{rnn_model_forward.7} parent=89 // loop_exit
                _
            $region90: #{rnn_model_forward.7} parent=85 // pred_fallthru
              _
            // Predicated region
            $region98: #{rnn_model_forward.7} parent=85 // pred_check
              _
            $region99: #{rnn_model_forward.7} parent=85 // pred_check_branch
              %713 = sbr.rel target = $region101
            $region100: #{rnn_model_forward.7} parent=85 // pred_region
              _
            $region101: #{rnn_model_forward.7} parent=85 // pred_fallthru
              _
          $region86: #{rnn_model_forward.7} parent=81 // pred_fallthru
            _
          %714 = vnop
        $region82: #{rnn_model_forward.7} parent=65 // pred_fallthru
          _
      $region66: #{rnn_model_forward.7} parent=5 // pred_fallthru
        _
      %p715 = scmp.le.s32.totalorder 2, %s9
      // Predicated region
      $region102: #{rnn_model_forward.7} parent=5 // pred_check
        %p716 = pneg %p715
      $region103: #{rnn_model_forward.7} parent=5 // pred_check_branch
        %718 = sbr.rel (%p716) target = $region105
      $region104: #{rnn_model_forward.7} parent=5 // pred_region
        %s719 = ssub.s32 %s9, 2
        // Predicated region
        $region106: #{rnn_model_forward.7} parent=104 // pred_check
          %p720 = pneg %p141
        $region107: #{rnn_model_forward.7} parent=104 // pred_check_branch
          %722 = sbr.rel (%p720) target = $region109
        $region108: #{rnn_model_forward.7} parent=104 // pred_region
          %s723 = sand.u32 %s126, 1
          %s724 = sand.u32 %s126, 1
          %s725 = smul.addr %s724, 128
          %s726 = scalar_lea.vmem [#allocation4], %s725
        $region109: #{rnn_model_forward.7} parent=104 // pred_fallthru
          _
      $region105: #{rnn_model_forward.7} parent=5 // pred_fallthru
        _
    $region6: #{rnn_model_forward.7} parent=1 // loop_footer
      %s13 = sadd.s32 1, %s9
    $region7: #{rnn_model_forward.7} parent=1 // loop_footer_branch
      %8 = sbr.rel target = $region3
    $region8: #{rnn_model_forward.7} parent=1 // loop_exit
      _

// kernel: rnn_model_forward.9
$region0: #{rnn_model_forward.9}
  #allocation0 [shape = 'u32[]', space=smem, size = 0x4, offset = 0x4, fixed_abs, tag = 'smem constant byte address 0x4 - core index']
  #allocation1 [shape = 'u32[144,128]{1,0:T(1,128)}', space=vmem, size = 0x12000, scoped, tag = 'internal scratch']
  #allocation2 [shape = 'f32[64,128]{1,0:T(8,128)}', space=vmem, size = 0x8000, scoped, tag = 'scratch operand']
  %s0 = inlined_call_operand.vmem [shape: f32[64,128], index: 0, kind: input, shape index: {}]
  %s1 = inlined_call_operand.vmem [shape: bf16[128,128], index: 1, kind: input, shape index: {}]
  %s2 = inlined_call_operand.vmem [shape: f32[1,128], index: 2, kind: input, shape index: {}]
  %s3 = inlined_call_operand.hbm [shape: f32[64,128], index: 3, kind: output, shape index: {}]
  %s4 = sld [smem:[#allocation0]]
  $region30: #{rnn_model_forward.9} parent=0
    _
  %s6 = ssub.s32 1, %s4
  %s7 = scalar_select 0, %s6, %s4
  $region1: #{rnn_model_forward.9} parent=0
    #allocation3 [shape = 'u8[32768]{0}', space=vmem, size = 0x8000, scoped, tag = 'output window, operand 0, single buffered']
    #allocation4 [shape = 's32[1]{0}', space=sflag, size = 0x4, scoped, tag = 'scoped memory for rnn_model_forward.9']
    %8 = vsyncpa [#allocation4], 0
    // Predicated region
    $region2: #{rnn_model_forward.9} parent=1 // pred_check
      _
    $region3: #{rnn_model_forward.9} parent=1 // pred_check_branch
      %10 = sbr.rel (0) target = $region5
    $region4: #{rnn_model_forward.9} parent=1 // pred_region
      _
    $region5: #{rnn_model_forward.9} parent=1 // pred_fallthru
      _
    // Predicated region
    $region6: #{rnn_model_forward.9} parent=1 // pred_check
      _
    $region7: #{rnn_model_forward.9} parent=1 // pred_check_branch
      %12 = sbr.rel (0) target = $region9
    $region8: #{rnn_model_forward.9} parent=1 // pred_region
      _
    $region9: #{rnn_model_forward.9} parent=1 // pred_fallthru
      _
    // Predicated region
    $region10: #{rnn_model_forward.9} parent=1 // pred_check
      _
    $region11: #{rnn_model_forward.9} parent=1 // pred_check_branch
      %14 = sbr.rel (0) target = $region13
    $region12: #{rnn_model_forward.9} parent=1 // pred_region
      _
    $region13: #{rnn_model_forward.9} parent=1 // pred_fallthru
      _
    %p16 = scmp.eq.s32.totalorder 0, 0
    // Predicated region
    $region14: #{rnn_model_forward.9} parent=1 // pred_check
      %p17 = pneg %p16
    $region15: #{rnn_model_forward.9} parent=1 // pred_check_branch
      %19 = sbr.rel (%p17) target = $region17
    $region16: #{rnn_model_forward.9} parent=1 // pred_region
      %20 = vst [vmem:[#allocation2] sm:$0xff] 0.0
      %21 = vst [vmem:[#allocation2 + $0x8] sm:$0xff] 0.0
      %22 = vst [vmem:[#allocation2 + $0x10] sm:$0xff] 0.0
      %23 = vst [vmem:[#allocation2 + $0x18] sm:$0xff] 0.0
      %24 = vst [vmem:[#allocation2 + $0x20] sm:$0xff] 0.0
      %25 = vst [vmem:[#allocation2 + $0x28] sm:$0xff] 0.0
      %26 = vst [vmem:[#allocation2 + $0x30] sm:$0xff] 0.0
      %27 = vst [vmem:[#allocation2 + $0x38] sm:$0xff] 0.0
    $region17: #{rnn_model_forward.9} parent=1 // pred_fallthru
      _
    %v28 = vld [vmem:[#allocation2] sm:$0xff]
    %v29 = vld [vmem:[#allocation2 + $0x8] sm:$0xff]
    %v30 = vld [vmem:[#allocation2 + $0x10] sm:$0xff]
    %v31 = vld [vmem:[#allocation2 + $0x18] sm:$0xff]
    %v32 = vld [vmem:[#allocation2 + $0x20] sm:$0xff]
    %v33 = vld [vmem:[#allocation2 + $0x28] sm:$0xff]
    %v34 = vld [vmem:[#allocation2 + $0x30] sm:$0xff]
    %v35 = vld [vmem:[#allocation2 + $0x38] sm:$0xff]
    %v36 = vld [vmem:[%s0] sm:$0xff]
    %v37 = vld [vmem:[%s0 + $0x8] sm:$0xff]
    %v38 = vld [vmem:[%s0 + $0x10] sm:$0xff]
    %v39 = vld [vmem:[%s0 + $0x18] sm:$0xff]
    %v40 = vld [vmem:[%s0 + $0x20] sm:$0xff]
    %v41 = vld [vmem:[%s0 + $0x28] sm:$0xff]
    %v42 = vld [vmem:[%s0 + $0x30] sm:$0xff]
    %v43 = vld [vmem:[%s0 + $0x38] sm:$0xff]
    %v44 = vpack.c.bf16 %v37, %v36
    %v45 = vpack.c.bf16 %v39, %v38
    %v46 = vpack.c.bf16 %v41, %v40
    %v47 = vpack.c.bf16 %v43, %v42
    %v48 = vld [vmem:[%s1] sm:$0xf]
    %v49 = vld [vmem:[%s1 + $0x4] sm:$0xf]
    %v50 = vld [vmem:[%s1 + $0x8] sm:$0xf]
    %v51 = vld [vmem:[%s1 + $0xc] sm:$0xf]
    %v52 = vld [vmem:[%s1 + $0x10] sm:$0xf]
    %v53 = vld [vmem:[%s1 + $0x14] sm:$0xf]
    %v54 = vld [vmem:[%s1 + $0x18] sm:$0xf]
    %v55 = vld [vmem:[%s1 + $0x1c] sm:$0xf]
    %v56 = vld [vmem:[%s1 + $0x20] sm:$0xf]
    %v57 = vld [vmem:[%s1 + $0x24] sm:$0xf]
    %v58 = vld [vmem:[%s1 + $0x28] sm:$0xf]
    %v59 = vld [vmem:[%s1 + $0x2c] sm:$0xf]
    %v60 = vld [vmem:[%s1 + $0x30] sm:$0xf]
    %v61 = vld [vmem:[%s1 + $0x34] sm:$0xf]
    %v62 = vld [vmem:[%s1 + $0x38] sm:$0xf]
    %v63 = vld [vmem:[%s1 + $0x3c] sm:$0xf]
    %v80 = vunpack.c.l.b16 %v48
    %v81 = vunpack.c.l.b16 %v49
    %v82 = vunpack.c.l.b16 %v50
    %v83 = vunpack.c.l.b16 %v51
    %v84 = vunpack.c.l.b16 %v52
    %v85 = vunpack.c.l.b16 %v53
    %v86 = vunpack.c.l.b16 %v54
    %v87 = vunpack.c.l.b16 %v55
    %v88 = vunpack.c.l.b16 %v56
    %v89 = vunpack.c.l.b16 %v57
    %v90 = vunpack.c.l.b16 %v58
    %v91 = vunpack.c.l.b16 %v59
    %v92 = vunpack.c.l.b16 %v60
    %v93 = vunpack.c.l.b16 %v61
    %v94 = vunpack.c.l.b16 %v62
    %v95 = vunpack.c.l.b16 %v63
    %v96 = vpack.c.b16 %v81, %v80
    %v97 = vpack.c.b16 %v83, %v82
    %v98 = vpack.c.b16 %v85, %v84
    %v99 = vpack.c.b16 %v87, %v86
    %v100 = vpack.c.b16 %v89, %v88
    %v101 = vpack.c.b16 %v91, %v90
    %v102 = vpack.c.b16 %v93, %v92
    %v103 = vpack.c.b16 %v95, %v94
    %112 = vmatprep.subr.bf16.mxu0 0
    %113 = vmatpush1.bf16.msra.mxu0 %v96
    %114 = vmatprep.subr.bf16.mxu0 0
    %115 = vmatpush1.bf16.msra.mxu0 %v97
    %116 = vmatprep.subr.bf16.mxu0 0
    %117 = vmatpush1.bf16.msra.mxu0 %v98
    %118 = vmatprep.subr.bf16.mxu0 0
    %119 = vmatpush1.bf16.msra.mxu0 %v99
    %120 = vmatprep.subr.bf16.mxu0 0
    %121 = vmatpush1.bf16.msra.mxu0 %v100
    %122 = vmatprep.subr.bf16.mxu0 0
    %123 = vmatpush1.bf16.msra.mxu0 %v101
    %124 = vmatprep.subr.bf16.mxu0 0
    %125 = vmatpush1.bf16.msra.mxu0 %v102
    %126 = vmatprep.subr.bf16.mxu0 0
    %127 = vmatpush1.bf16.msra.mxu0 %v103
    %128 = vmatprep.subr.bf16.mxu0 0
    %129 = vmatpush1.bf16.msra.mxu0 0
    %130 = vmatprep.subr.bf16.mxu0 0
    %131 = vmatpush1.bf16.msra.mxu0 0
    %132 = vmatprep.subr.bf16.mxu0 0
    %133 = vmatpush1.bf16.msra.mxu0 0
    %134 = vmatprep.subr.bf16.mxu0 0
    %135 = vmatpush1.bf16.msra.mxu0 0
    %136 = vmatprep.subr.bf16.mxu0 0
    %137 = vmatpush1.bf16.msra.mxu0 0
    %138 = vmatprep.subr.bf16.mxu0 0
    %139 = vmatpush1.bf16.msra.mxu0 0
    %140 = vmatprep.subr.bf16.mxu0 0
    %141 = vmatpush1.bf16.msra.mxu0 0
    %142 = vmatprep.subr.bf16.mxu0 0
    %143 = vmatpush1.bf16.msra.mxu0 0
    %144 = vmatprep.mubr.bf16.mxu0 0
    %145 = vmatmul.mubr.bf16.gmra.mrb[0].mxu0 %v44
    %v146 = vpop.f32.mrb[0].mxu0
    %v147 = vadd.f32 0.0, %v146
    %v148 = vpop.f32.mrb[0].mxu0
    %v149 = vpop.f32.mrb[0].mxu0
    %v150 = vadd.f32 0.0, %v149
    %v151 = vpop.f32.mrb[0].mxu0
    %152 = vmatprep.mubr.bf16.mxu0 0
    %153 = vmatmul.mubr.bf16.gmra.mrb[0].mxu0 %v45
    %v154 = vpop.f32.mrb[0].mxu0
    %v155 = vadd.f32 0.0, %v154
    %v156 = vpop.f32.mrb[0].mxu0
    %v157 = vpop.f32.mrb[0].mxu0
    %v158 = vadd.f32 0.0, %v157
    %v159 = vpop.f32.mrb[0].mxu0
    %160 = vmatprep.mubr.bf16.mxu0 0
    %161 = vmatmul.mubr.bf16.gmra.mrb[0].mxu0 %v46
    %v162 = vpop.f32.mrb[0].mxu0
    %v163 = vadd.f32 0.0, %v162
    %v164 = vpop.f32.mrb[0].mxu0
    %v165 = vpop.f32.mrb[0].mxu0
    %v166 = vadd.f32 0.0, %v165
    %v167 = vpop.f32.mrb[0].mxu0
    %168 = vmatprep.mubr.bf16.mxu0 0
    %169 = vmatmul.mubr.bf16.gmra.mrb[0].mxu0 %v47
    %v170 = vpop.f32.mrb[0].mxu0
    %v171 = vadd.f32 0.0, %v170
    %v172 = vpop.f32.mrb[0].mxu0
    %v173 = vpop.f32.mrb[0].mxu0
    %v174 = vadd.f32 0.0, %v173
    %v175 = vpop.f32.mrb[0].mxu0
    %176 = vdwg.mxu0
    %v177 = vadd.f32 %v28, %v147
    %v178 = vadd.f32 %v29, %v150
    %v179 = vadd.f32 %v30, %v155
    %v180 = vadd.f32 %v31, %v158
    %v181 = vadd.f32 %v32, %v163
    %v182 = vadd.f32 %v33, %v166
    %v183 = vadd.f32 %v34, %v171
    %v184 = vadd.f32 %v35, %v174
    %185 = vst [vmem:[#allocation2] sm:$0xff] %v177
    %186 = vst [vmem:[#allocation2 + $0x8] sm:$0xff] %v178
    %187 = vst [vmem:[#allocation2 + $0x10] sm:$0xff] %v179
    %188 = vst [vmem:[#allocation2 + $0x18] sm:$0xff] %v180
    %189 = vst [vmem:[#allocation2 + $0x20] sm:$0xff] %v181
    %190 = vst [vmem:[#allocation2 + $0x28] sm:$0xff] %v182
    %191 = vst [vmem:[#allocation2 + $0x30] sm:$0xff] %v183
    %192 = vst [vmem:[#allocation2 + $0x38] sm:$0xff] %v184
    // Predicated region
    $region18: #{rnn_model_forward.9} parent=1 // pred_check
      %p193 = pneg %p16
    $region19: #{rnn_model_forward.9} parent=1 // pred_check_branch
      %195 = sbr.rel (%p193) target = $region21
    $region20: #{rnn_model_forward.9} parent=1 // pred_region
      %v196 = vld [vmem:[#allocation2] sm:$0xff]
      %v197 = vld [vmem:[#allocation2 + $0x8] sm:$0xff]
      %v198 = vld [vmem:[#allocation2 + $0x10] sm:$0xff]
      %v199 = vld [vmem:[#allocation2 + $0x18] sm:$0xff]
      %v200 = vld [vmem:[#allocation2 + $0x20] sm:$0xff]
      %v201 = vld [vmem:[#allocation2 + $0x28] sm:$0xff]
      %v202 = vld [vmem:[#allocation2 + $0x30] sm:$0xff]
      %v203 = vld [vmem:[#allocation2 + $0x38] sm:$0xff]
      %v204 = vld [vmem:[%s2] sm:$0x1]
      %v206 = vlaneseq
      %v207 = vshrl.u32 %v206, 7
      %v208 = vsub.s32 0, %v207
      %v209 = vrot.slane %v204, %v208
      %v211 = vadd.f32 %v196, %v209
      %v212 = vadd.f32 %v197, %v209
      %v213 = vadd.f32 %v198, %v209
      %v214 = vadd.f32 %v199, %v209
      %v215 = vadd.f32 %v200, %v209
      %v216 = vadd.f32 %v201, %v209
      %v217 = vadd.f32 %v202, %v209
      %v218 = vadd.f32 %v203, %v209
      %219 = vst [vmem:[#allocation3] sm:$0xff] %v211
      %220 = vst [vmem:[#allocation3 + $0x8] sm:$0xff] %v212
      %221 = vst [vmem:[#allocation3 + $0x10] sm:$0xff] %v213
      %222 = vst [vmem:[#allocation3 + $0x18] sm:$0xff] %v214
      %223 = vst [vmem:[#allocation3 + $0x20] sm:$0xff] %v215
      %224 = vst [vmem:[#allocation3 + $0x28] sm:$0xff] %v216
      %225 = vst [vmem:[#allocation3 + $0x30] sm:$0xff] %v217
      %226 = vst [vmem:[#allocation3 + $0x38] sm:$0xff] %v218
    $region21: #{rnn_model_forward.9} parent=1 // pred_fallthru
      _
    // Predicated region
    $region22: #{rnn_model_forward.9} parent=1 // pred_check
      _
    $region23: #{rnn_model_forward.9} parent=1 // pred_check_branch
      %228 = sbr.rel (0) target = $region25
    $region24: #{rnn_model_forward.9} parent=1 // pred_region
      %s230 = ssub.s32 1024, 1024
      %231 = vsyncadd [#allocation4], %s230
      %s232 = sshll.u32 [#allocation3], 4
      %s233 = int_to_ptr.vmem [resolvable:$true] %s232
      %238 = dma.vmem_to_hbm [thread:$0]  %s233, 1024, %s3, [#allocation4], 128, 128, 8
    $region25: #{rnn_model_forward.9} parent=1 // pred_fallthru
      _
    // Predicated region
    $region26: #{rnn_model_forward.9} parent=1 // pred_check
      _
    $region27: #{rnn_model_forward.9} parent=1 // pred_check_branch
      %240 = sbr.rel (0) target = $region29
    $region28: #{rnn_model_forward.9} parent=1 // pred_region
      %241 = dma.done [#allocation4], 1024
    $region29: #{rnn_model_forward.9} parent=1 // pred_fallthru
      _
    %242 = vsyncpa [#allocation4], 1

// kernel: rnn_model_forward.5
$region0: #{rnn_model_forward.5}
  #allocation0 [shape = 'u32[]', space=smem, size = 0x4, offset = 0x4, fixed_abs, tag = 'smem constant byte address 0x4 - core index']
  #allocation1 [shape = 'u32[144,128]{1,0:T(1,128)}', space=vmem, size = 0x12000, scoped, tag = 'internal scratch']
  #allocation2 [shape = 'f32[64,256]{1,0:T(8,128)}', space=vmem, size = 0x10000, scoped, tag = 'scratch operand']
  %s0 = inlined_call_operand.hbm [shape: f32[64,64], index: 0, kind: input, shape index: {}]
  %s1 = inlined_call_operand.hbm [shape: bf16[64,512], index: 1, kind: input, shape index: {}]
  %s2 = inlined_call_operand.hbm [shape: f32[1,512], index: 2, kind: input, shape index: {}]
  %s3 = inlined_call_operand.vmem [shape: f32[64,512], index: 3, kind: output, shape index: {}]
  %s4 = sld [smem:[#allocation0]]
  $region84: #{rnn_model_forward.5} parent=0
    _
  %s6 = ssub.s32 1, %s4
  %s7 = scalar_select 0, %s6, %s4
  $region1: #{rnn_model_forward.5} parent=0
    #allocation3 [shape = 'u8[32768]{0}', space=vmem, size = 0x8000, scoped, tag = 'input window, operand 0, single buffered']
    #allocation4 [shape = 's32[2]{0}', space=sflag, size = 0x8, scoped, tag = 'scoped memory for rnn_model_forward.5']
    #allocation5 [shape = 'u8[65536]{0}', space=vmem, size = 0x10000, scoped, tag = 'input window, operand 1']
    #allocation6 [shape = 's32[2]{0}', space=sflag, size = 0x8, scoped, tag = 'scoped memory for rnn_model_forward.5']
    #allocation7 [shape = 'u8[2048]{0}', space=vmem, size = 0x800, scoped, tag = 'input window, operand 2']
    #allocation8 [shape = 'u8[131072]{0}', space=vmem, size = 0x20000, scoped, tag = 'output window, operand 0']
    %8 = vsyncpa [#allocation4], 0
    %9 = vsyncpa [#allocation6], 0
    %s10 = scalar_lea.sflag [#allocation6], 1
    %11 = vsyncpa %s10, 0
    loop: start=0, step=1, limit=4
    $region2: #{rnn_model_forward.5} parent=1 // loop_pre_header
      _
    $region3: #{rnn_model_forward.5} parent=1 // loop_header
      %s13 = sphi 0, %s17
      %p14 = scmp.ge.s32.totalorder %s13, 4
      %s20 = sphi 0, %s39
      %s21 = sphi 0, %s35
      %s22 = sphi 0, %s31
      %s23 = sphi 0, %s20
      %s24 = sphi 0, %s21
      %s25 = sphi 0, %s22
      %s26 = sphi 0, %s23
      %s27 = sphi 0, %s24
      %s28 = sphi 0, %s25
      %s44 = sphi 0, %s46
      %s47 = sphi 0, %s44
      %s48 = sphi 0, %s47
      %s64 = sphi 0, %s48
      %s72 = sphi 0, %s74
      %s75 = sphi 0, %s72
      %s76 = sphi 0, %s75
      %s92 = sphi 0, %s76
      %s98 = sphi 0, %s100
      %s101 = sphi 0, %s98
      %s102 = sphi 0, %s101
      %s118 = sphi 0, %s102
      %s126 = sphi 0, %s128
      %s129 = sphi 0, %s126
      %s130 = sphi 0, %s129
      %s146 = sphi 0, %s130
    $region4: #{rnn_model_forward.5} parent=1 // loop_header_branch
      %16 = sbr.rel (%p14) target = $region8
    $region5: #{rnn_model_forward.5} parent=1 // loop_body
      %s18 = ssub.s32 %s13, 1
      %s19 = ssub.s32 %s13, 2
      %s29 = sadd.s32 1, %s22
      %p30 = scmp.ge.s32.totalorder %s29, 1
      %s31 = scalar_select %p30, 0, %s29
      %s32 = sadd.s32 1, %s21
      %s33 = scalar_select %p30, %s32, %s21
      %p34 = scmp.ge.s32.totalorder %s33, 2
      %s35 = scalar_select %p34, 0, %s33
      %s36 = sadd.s32 1, %s20
      %s37 = scalar_select %p34, %s36, %s20
      %p38 = scmp.ge.s32.totalorder %s37, 1
      %s39 = scalar_select %p38, 0, %s37
      %s40 = ssub.s32 %s20, %s39
      %s41 = ssub.s32 %s22, %s31
      %s42 = sor.u32 %s40, %s41
      %p43 = scmp.eq.s32.totalorder %s42, 0
      %s45 = sadd.s32 %s44, 1
      %s46 = scalar_select %p43, %s44, %s45
      %p49 = pneg %p43
      %p50 = scmp.eq.s32.totalorder %s13, 1
      %p51 = por %p49, %p50
      %p52 = scmp.ne.s32.totalorder %s44, %s47
      %p53 = scmp.eq.s32.totalorder %s13, 0
      %p54 = por %p52, %p53
      %p55 = scmp.ne.s32.totalorder %s44, %s47
      %p56 = scmp.eq.s32.totalorder %s18, 1
      %p57 = por %p55, %p56
      %p58 = scmp.ne.s32.totalorder %s47, %s48
      %p59 = scmp.eq.s32.totalorder %s18, 0
      %p60 = por %p58, %p59
      %p61 = scmp.ne.s32.totalorder %s47, %s48
      %p62 = scmp.eq.s32.totalorder %s19, 1
      %p63 = por %p61, %p62
      %p65 = scmp.ne.s32.totalorder %s48, %s64
      %p66 = scmp.eq.s32.totalorder %s19, 0
      %p67 = por %p65, %p66
      %s68 = ssub.s32 %s22, %s31
      %s69 = ssub.s32 %s21, %s35
      %s70 = sor.u32 %s68, %s69
      %p71 = scmp.eq.s32.totalorder %s70, 0
      %s73 = sadd.s32 %s72, 1
      %s74 = scalar_select %p71, %s72, %s73
      %p77 = pneg %p71
      %p78 = scmp.eq.s32.totalorder %s13, 1
      %p79 = por %p77, %p78
      %p80 = scmp.ne.s32.totalorder %s72, %s75
      %p81 = scmp.eq.s32.totalorder %s13, 0
      %p82 = por %p80, %p81
      %p83 = scmp.ne.s32.totalorder %s72, %s75
      %p84 = scmp.eq.s32.totalorder %s18, 1
      %p85 = por %p83, %p84
      %p86 = scmp.ne.s32.totalorder %s75, %s76
      %p87 = scmp.eq.s32.totalorder %s18, 0
      %p88 = por %p86, %p87
      %p89 = scmp.ne.s32.totalorder %s75, %s76
      %p90 = scmp.eq.s32.totalorder %s19, 1
      %p91 = por %p89, %p90
      %p93 = scmp.ne.s32.totalorder %s76, %s92
      %p94 = scmp.eq.s32.totalorder %s19, 0
      %p95 = por %p93, %p94
      %s96 = ssub.s32 %s21, %s35
      %p97 = scmp.eq.s32.totalorder %s96, 0
      %s99 = sadd.s32 %s98, 1
      %s100 = scalar_select %p97, %s98, %s99
      %p103 = pneg %p97
      %p104 = scmp.eq.s32.totalorder %s13, 1
      %p105 = por %p103, %p104
      %p106 = scmp.ne.s32.totalorder %s98, %s101
      %p107 = scmp.eq.s32.totalorder %s13, 0
      %p108 = por %p106, %p107
      %p109 = scmp.ne.s32.totalorder %s98, %s101
      %p110 = scmp.eq.s32.totalorder %s18, 1
      %p111 = por %p109, %p110
      %p112 = scmp.ne.s32.totalorder %s101, %s102
      %p113 = scmp.eq.s32.totalorder %s18, 0
      %p114 = por %p112, %p113
      %p115 = scmp.ne.s32.totalorder %s101, %s102
      %p116 = scmp.eq.s32.totalorder %s19, 1
      %p117 = por %p115, %p116
      %p119 = scmp.ne.s32.totalorder %s102, %s118
      %p120 = scmp.eq.s32.totalorder %s19, 0
      %p121 = por %p119, %p120
      %s122 = ssub.s32 %s20, %s39
      %s123 = ssub.s32 %s21, %s35
      %s124 = sor.u32 %s122, %s123
      %p125 = scmp.eq.s32.totalorder %s124, 0
      %s127 = sadd.s32 %s126, 1
      %s128 = scalar_select %p125, %s126, %s127
      %p131 = pneg %p125
      %p132 = scmp.eq.s32.totalorder %s13, 1
      %p133 = por %p131, %p132
      %p134 = scmp.ne.s32.totalorder %s126, %s129
      %p135 = scmp.eq.s32.totalorder %s13, 0
      %p136 = por %p134, %p135
      %p137 = scmp.ne.s32.totalorder %s126, %s129
      %p138 = scmp.eq.s32.totalorder %s18, 1
      %p139 = por %p137, %p138
      %p140 = scmp.ne.s32.totalorder %s129, %s130
      %p141 = scmp.eq.s32.totalorder %s18, 0
      %p142 = por %p140, %p141
      %p143 = scmp.ne.s32.totalorder %s129, %s130
      %p144 = scmp.eq.s32.totalorder %s19, 1
      %p145 = por %p143, %p144
      %p147 = scmp.ne.s32.totalorder %s130, %s146
      %p148 = scmp.eq.s32.totalorder %s19, 0
      %p149 = por %p147, %p148
      %p150 = scmp.le.s32.totalorder 1, %s13
      %p151 = scmp.lt.s32.totalorder %s13, 3
      %p152 = pnand %p150, %p151
      %p153 = pneg %p152
      // Predicated region
      $region9: #{rnn_model_forward.5} parent=5 // pred_check
        _
      $region10: #{rnn_model_forward.5} parent=5 // pred_check_branch
        %155 = sbr.rel (%p152) target = $region12
      $region11: #{rnn_model_forward.5} parent=5 // pred_region
        %s156 = ssub.s32 %s13, 1
        // Predicated region
        $region13: #{rnn_model_forward.5} parent=11 // pred_check
          %p157 = pneg %p60
        $region14: #{rnn_model_forward.5} parent=11 // pred_check_branch
          %159 = sbr.rel (%p157) target = $region16
        $region15: #{rnn_model_forward.5} parent=11 // pred_region
          %s160 = smul.u32 8, %s23
          %s162 = ssub.s32 1024, 1024
          %163 = vsyncadd [#allocation4], %s162
          %s164 = sadd.s32 %s25, %s160
          %s165 = smul.addr %s164, 128
          %s166 = scalar_lea.hbm %s0, %s165
          %s167 = sshll.u32 [#allocation3], 4
          %s168 = int_to_ptr.vmem [resolvable:$true] %s167
          %173 = dma.hbm_to_vmem [thread:$0]  %s166, 1024, %s168, [#allocation4], 128, 128, 8
        $region16: #{rnn_model_forward.5} parent=11 // pred_fallthru
          _
      $region12: #{rnn_model_forward.5} parent=5 // pred_fallthru
        _
      %p174 = scmp.lt.s32.totalorder %s13, 2
      // Predicated region
      $region17: #{rnn_model_forward.5} parent=5 // pred_check
        %p175 = pneg %p174
      $region18: #{rnn_model_forward.5} parent=5 // pred_check_branch
        %177 = sbr.rel (%p175) target = $region20
      $region19: #{rnn_model_forward.5} parent=5 // pred_region
        // Predicated region
        $region21: #{rnn_model_forward.5} parent=19 // pred_check
          %p178 = pneg %p82
        $region22: #{rnn_model_forward.5} parent=19 // pred_check_branch
          %180 = sbr.rel (%p178) target = $region24
        $region23: #{rnn_model_forward.5} parent=19 // pred_region
          %s181 = sand.u32 %s13, 1
          %s182 = scalar_lea.sflag [#allocation6], %s181
          %s183 = sand.u32 %s72, 1
          %s184 = smul.addr %s183, 64
          %s185 = scalar_lea.vmem [#allocation5], %s184
          %s186 = smul.u32 8, %s22
          %s187 = smul.u32 2, %s21
          %s189 = ssub.s32 1024, 1024
          %190 = vsyncadd %s182, %s189
          %s191 = smul.addr %s186, 4
          %s192 = sadd.s32 %s187, %s191
          %s193 = smul.addr %s192, 64
          %s194 = scalar_lea.hbm %s1, %s193
          %s195 = sshll.u32 %s185, 4
          %s196 = int_to_ptr.vmem [resolvable:$true] %s195
          %201 = dma.hbm_to_vmem [thread:$0]  %s194, 1024, %s196, %s182, 256, 128, 8
        $region24: #{rnn_model_forward.5} parent=19 // pred_fallthru
          _
        // Predicated region
        $region25: #{rnn_model_forward.5} parent=19 // pred_check
          %p202 = pneg %p108
        $region26: #{rnn_model_forward.5} parent=19 // pred_check_branch
          %204 = sbr.rel (%p202) target = $region28
        $region27: #{rnn_model_forward.5} parent=19 // pred_region
          %s205 = sand.u32 %s13, 1
          %s206 = scalar_lea.sflag [#allocation6], %s205
          %s207 = sand.u32 %s98, 1
          %s208 = smul.addr %s207, 2
          %s209 = scalar_lea.vmem [#allocation7], %s208
          %s210 = smul.u32 2, %s21
          %s212 = ssub.s32 32, 32
          %213 = vsyncadd %s206, %s212
          %s214 = smul.addr %s210, 16
          %s215 = scalar_lea.hbm %s2, %s214
          %s217 = sshll.u32 %s209, 4
          %s218 = int_to_ptr.vmem [resolvable:$true] %s217
          %220 = dma.hbm_to_vmem [thread:$0]  %s215, 32, %s218, %s206
        $region28: #{rnn_model_forward.5} parent=19 // pred_fallthru
          _
      $region20: #{rnn_model_forward.5} parent=5 // pred_fallthru
        _
      %p221 = scmp.le.s32.totalorder 1, %s13
      %p222 = scmp.lt.s32.totalorder %s13, 3
      %p223 = pnand %p221, %p222
      %p224 = pneg %p223
      // Predicated region
      $region29: #{rnn_model_forward.5} parent=5 // pred_check
        _
      $region30: #{rnn_model_forward.5} parent=5 // pred_check_branch
        %226 = sbr.rel (%p223) target = $region32
      $region31: #{rnn_model_forward.5} parent=5 // pred_region
        %s227 = ssub.s32 %s13, 1
        // Predicated region
        $region33: #{rnn_model_forward.5} parent=31 // pred_check
          %p228 = pneg %p60
        $region34: #{rnn_model_forward.5} parent=31 // pred_check_branch
          %230 = sbr.rel (%p228) target = $region36
        $region35: #{rnn_model_forward.5} parent=31 // pred_region
          %231 = dma.done [#allocation4], 1024
        $region36: #{rnn_model_forward.5} parent=31 // pred_fallthru
          _
        %s232 = sand.u32 %s18, 1
        %s233 = scalar_lea.sflag [#allocation6], %s232
        %s234 = sand.u32 %s75, 1
        %s235 = smul.addr %s234, 64
        %s236 = scalar_lea.vmem [#allocation5], %s235
        // Predicated region
        $region37: #{rnn_model_forward.5} parent=31 // pred_check
          %p237 = pneg %p88
        $region38: #{rnn_model_forward.5} parent=31 // pred_check_branch
          %239 = sbr.rel (%p237) target = $region40
        $region39: #{rnn_model_forward.5} parent=31 // pred_region
          %240 = dma.done %s233, 1024
        $region40: #{rnn_model_forward.5} parent=31 // pred_fallthru
          _
        %s241 = sand.u32 %s18, 1
        %s242 = scalar_lea.sflag [#allocation6], %s241
        %s243 = sand.u32 %s101, 1
        %s244 = smul.addr %s243, 2
        %s245 = scalar_lea.vmem [#allocation7], %s244
        // Predicated region
        $region41: #{rnn_model_forward.5} parent=31 // pred_check
          %p246 = pneg %p114
        $region42: #{rnn_model_forward.5} parent=31 // pred_check_branch
          %248 = sbr.rel (%p246) target = $region44
        $region43: #{rnn_model_forward.5} parent=31 // pred_region
          %249 = dma.done %s242, 32
        $region44: #{rnn_model_forward.5} parent=31 // pred_fallthru
          _
        %p250 = pneg %p60
        %p251 = pneg %p57
        %s252 = sand.u32 %s18, 1
        %s253 = scalar_lea.sflag [#allocation6], %s252
        %s254 = sand.u32 %s75, 1
        %s255 = smul.addr %s254, 64
        %s256 = scalar_lea.vmem [#allocation5], %s255
        %p257 = pneg %p88
        %p258 = pneg %p85
        %s259 = sand.u32 %s18, 1
        %s260 = scalar_lea.sflag [#allocation6], %s259
        %s261 = sand.u32 %s101, 1
        %s262 = smul.addr %s261, 2
        %s263 = scalar_lea.vmem [#allocation7], %s262
        %p264 = pneg %p114
        %p265 = pneg %p111
        %p266 = pneg %p142
        %p267 = pneg %p139
        %s268 = sand.u32 %s129, 1
        %s269 = sand.u32 %s129, 1
        %s270 = smul.addr %s269, 128
        %s271 = scalar_lea.vmem [#allocation8], %s270
        %s272 = smul.u32 8, %s23
        %s273 = smul.u32 8, %s25
        %s274 = smul.u32 2, %s24
        %s275 = smul.u32 2, %s24
        %s276 = smul.u32 8, %s23
        %s277 = smul.u32 2, %s24
        %p279 = scmp.eq.s32.totalorder %s25, 0
        // Predicated region
        $region45: #{rnn_model_forward.5} parent=31 // pred_check
          %p280 = pneg %p279
        $region46: #{rnn_model_forward.5} parent=31 // pred_check_branch
          %282 = sbr.rel (%p280) target = $region48
        $region47: #{rnn_model_forward.5} parent=31 // pred_region
          %283 = vst [vmem:[#allocation2] sm:$0xff] 0.0
          %284 = vst [vmem:[#allocation2 + $0x8] sm:$0xff] 0.0
          %285 = vst [vmem:[#allocation2 + $0x10] sm:$0xff] 0.0
          %286 = vst [vmem:[#allocation2 + $0x18] sm:$0xff] 0.0
          %287 = vst [vmem:[#allocation2 + $0x20] sm:$0xff] 0.0
          %288 = vst [vmem:[#allocation2 + $0x28] sm:$0xff] 0.0
          %289 = vst [vmem:[#allocation2 + $0x30] sm:$0xff] 0.0
          %290 = vst [vmem:[#allocation2 + $0x38] sm:$0xff] 0.0
          %291 = vst [vmem:[#allocation2 + $0x40] sm:$0xff] 0.0
          %292 = vst [vmem:[#allocation2 + $0x48] sm:$0xff] 0.0
          %293 = vst [vmem:[#allocation2 + $0x50] sm:$0xff] 0.0
          %294 = vst [vmem:[#allocation2 + $0x58] sm:$0xff] 0.0
          %295 = vst [vmem:[#allocation2 + $0x60] sm:$0xff] 0.0
          %296 = vst [vmem:[#allocation2 + $0x68] sm:$0xff] 0.0
          %297 = vst [vmem:[#allocation2 + $0x70] sm:$0xff] 0.0
          %298 = vst [vmem:[#allocation2 + $0x78] sm:$0xff] 0.0
        $region48: #{rnn_model_forward.5} parent=31 // pred_fallthru
          _
        %v299 = vld [vmem:[#allocation2] sm:$0xff]
        %v300 = vld [vmem:[#allocation2 + $0x8] sm:$0xff]
        %v301 = vld [vmem:[#allocation2 + $0x10] sm:$0xff]
        %v302 = vld [vmem:[#allocation2 + $0x18] sm:$0xff]
        %v303 = vld [vmem:[#allocation2 + $0x20] sm:$0xff]
        %v304 = vld [vmem:[#allocation2 + $0x28] sm:$0xff]
        %v305 = vld [vmem:[#allocation2 + $0x30] sm:$0xff]
        %v306 = vld [vmem:[#allocation2 + $0x38] sm:$0xff]
        %v307 = vld [vmem:[#allocation2 + $0x40] sm:$0xff]
        %v308 = vld [vmem:[#allocation2 + $0x48] sm:$0xff]
        %v309 = vld [vmem:[#allocation2 + $0x50] sm:$0xff]
        %v310 = vld [vmem:[#allocation2 + $0x58] sm:$0xff]
        %v311 = vld [vmem:[#allocation2 + $0x60] sm:$0xff]
        %v312 = vld [vmem:[#allocation2 + $0x68] sm:$0xff]
        %v313 = vld [vmem:[#allocation2 + $0x70] sm:$0xff]
        %v314 = vld [vmem:[#allocation2 + $0x78] sm:$0xff]
        %v315 = vld [vmem:[#allocation3] sm:$0xff]
        %v316 = vld [vmem:[#allocation3 + $0x8] sm:$0xff]
        %v317 = vld [vmem:[#allocation3 + $0x10] sm:$0xff]
        %v318 = vld [vmem:[#allocation3 + $0x18] sm:$0xff]
        %v319 = vld [vmem:[#allocation3 + $0x20] sm:$0xff]
        %v320 = vld [vmem:[#allocation3 + $0x28] sm:$0xff]
        %v321 = vld [vmem:[#allocation3 + $0x30] sm:$0xff]
        %v322 = vld [vmem:[#allocation3 + $0x38] sm:$0xff]
        %v323 = vpack.c.bf16 %v316, %v315
        %v324 = vpack.c.bf16 %v318, %v317
        %v325 = vpack.c.bf16 %v320, %v319
        %v326 = vpack.c.bf16 %v322, %v321
        %v327 = vld [vmem:[%s236] sm:$0xff]
        %v328 = vld [vmem:[%s236 + $0x8] sm:$0xff]
        %v329 = vld [vmem:[%s236 + $0x10] sm:$0xff]
        %v330 = vld [vmem:[%s236 + $0x18] sm:$0xff]
        %v331 = vld [vmem:[%s236 + $0x20] sm:$0xff]
        %v332 = vld [vmem:[%s236 + $0x28] sm:$0xff]
        %v333 = vld [vmem:[%s236 + $0x30] sm:$0xff]
        %v334 = vld [vmem:[%s236 + $0x38] sm:$0xff]
        %v343 = vunpack.c.l.b16 %v327
        %v344 = vunpack.c.h.b16 %v327
        %v345 = vunpack.c.l.b16 %v328
        %v346 = vunpack.c.h.b16 %v328
        %v347 = vunpack.c.l.b16 %v329
        %v348 = vunpack.c.h.b16 %v329
        %v349 = vunpack.c.l.b16 %v330
        %v350 = vunpack.c.h.b16 %v330
        %v351 = vunpack.c.l.b16 %v331
        %v352 = vunpack.c.h.b16 %v331
        %v353 = vunpack.c.l.b16 %v332
        %v354 = vunpack.c.h.b16 %v332
        %v355 = vunpack.c.l.b16 %v333
        %v356 = vunpack.c.h.b16 %v333
        %v357 = vunpack.c.l.b16 %v334
        %v358 = vunpack.c.h.b16 %v334
        %v359 = vpack.c.b16 %v345, %v343
        %v360 = vpack.c.b16 %v346, %v344
        %v361 = vpack.c.b16 %v349, %v347
        %v362 = vpack.c.b16 %v350, %v348
        %v363 = vpack.c.b16 %v353, %v351
        %v364 = vpack.c.b16 %v354, %v352
        %v365 = vpack.c.b16 %v357, %v355
        %v366 = vpack.c.b16 %v358, %v356
        %vm375 = vcmask 523264
        %v377 = vsel %vm375, %v323, 0
        %v380 = vsel %vm375, %v324, 0
        %v383 = vsel %vm375, %v325, 0
        %v386 = vsel %vm375, %v326, 0
        %388 = vmatprep.subr.bf16.mxu0 %v360
        %389 = vmatpush1.bf16.msra.mxu0 %v359
        %390 = vmatprep.subr.bf16.mxu0 %v362
        %391 = vmatpush1.bf16.msra.mxu0 %v361
        %392 = vmatprep.subr.bf16.mxu0 %v364
        %393 = vmatpush1.bf16.msra.mxu0 %v363
        %394 = vmatprep.subr.bf16.mxu0 %v366
        %395 = vmatpush1.bf16.msra.mxu0 %v365
        %396 = vmatprep.subr.bf16.mxu0 0
        %397 = vmatpush1.bf16.msra.mxu0 0
        %398 = vmatprep.subr.bf16.mxu0 0
        %399 = vmatpush1.bf16.msra.mxu0 0
        %400 = vmatprep.subr.bf16.mxu0 0
        %401 = vmatpush1.bf16.msra.mxu0 0
        %402 = vmatprep.subr.bf16.mxu0 0
        %403 = vmatpush1.bf16.msra.mxu0 0
        %404 = vmatprep.subr.bf16.mxu0 0
        %405 = vmatpush1.bf16.msra.mxu0 0
        %406 = vmatprep.subr.bf16.mxu0 0
        %407 = vmatpush1.bf16.msra.mxu0 0
        %408 = vmatprep.subr.bf16.mxu0 0
        %409 = vmatpush1.bf16.msra.mxu0 0
        %410 = vmatprep.subr.bf16.mxu0 0
        %411 = vmatpush1.bf16.msra.mxu0 0
        %412 = vmatprep.subr.bf16.mxu0 0
        %413 = vmatpush1.bf16.msra.mxu0 0
        %414 = vmatprep.subr.bf16.mxu0 0
        %415 = vmatpush1.bf16.msra.mxu0 0
        %416 = vmatprep.subr.bf16.mxu0 0
        %417 = vmatpush1.bf16.msra.mxu0 0
        %418 = vmatprep.subr.bf16.mxu0 0
        %419 = vmatpush1.bf16.msra.mxu0 0
        %420 = vmatprep.mubr.bf16.mxu0 0
        %421 = vmatmul.mubr.bf16.gmra.mrb[0].mxu0 %v377
        %v422 = vpop.f32.mrb[0].mxu0
        %v423 = vadd.f32 0.0, %v422
        %v424 = vpop.f32.mrb[0].mxu0
        %v425 = vadd.f32 0.0, %v424
        %v426 = vpop.f32.mrb[0].mxu0
        %v427 = vadd.f32 0.0, %v426
        %v428 = vpop.f32.mrb[0].mxu0
        %v429 = vadd.f32 0.0, %v428
        %430 = vmatprep.mubr.bf16.mxu0 0
        %431 = vmatmul.mubr.bf16.gmra.mrb[0].mxu0 %v380
        %v432 = vpop.f32.mrb[0].mxu0
        %v433 = vadd.f32 0.0, %v432
        %v434 = vpop.f32.mrb[0].mxu0
        %v435 = vadd.f32 0.0, %v434
        %v436 = vpop.f32.mrb[0].mxu0
        %v437 = vadd.f32 0.0, %v436
        %v438 = vpop.f32.mrb[0].mxu0
        %v439 = vadd.f32 0.0, %v438
        %440 = vmatprep.mubr.bf16.mxu0 0
        %441 = vmatmul.mubr.bf16.gmra.mrb[0].mxu0 %v383
        %v442 = vpop.f32.mrb[0].mxu0
        %v443 = vadd.f32 0.0, %v442
        %v444 = vpop.f32.mrb[0].mxu0
        %v445 = vadd.f32 0.0, %v444
        %v446 = vpop.f32.mrb[0].mxu0
        %v447 = vadd.f32 0.0, %v446
        %v448 = vpop.f32.mrb[0].mxu0
        %v449 = vadd.f32 0.0, %v448
        %450 = vmatprep.mubr.bf16.mxu0 0
        %451 = vmatmul.mubr.bf16.gmra.mrb[0].mxu0 %v386
        %v452 = vpop.f32.mrb[0].mxu0
        %v453 = vadd.f32 0.0, %v452
        %v454 = vpop.f32.mrb[0].mxu0
        %v455 = vadd.f32 0.0, %v454
        %v456 = vpop.f32.mrb[0].mxu0
        %v457 = vadd.f32 0.0, %v456
        %v458 = vpop.f32.mrb[0].mxu0
        %v459 = vadd.f32 0.0, %v458
        %460 = vdwg.mxu0
        %v461 = vadd.f32 %v299, %v423
        %v462 = vadd.f32 %v300, %v425
        %v463 = vadd.f32 %v301, %v427
        %v464 = vadd.f32 %v302, %v429
        %v465 = vadd.f32 %v303, %v433
        %v466 = vadd.f32 %v304, %v435
        %v467 = vadd.f32 %v305, %v437
        %v468 = vadd.f32 %v306, %v439
        %v469 = vadd.f32 %v307, %v443
        %v470 = vadd.f32 %v308, %v445
        %v471 = vadd.f32 %v309, %v447
        %v472 = vadd.f32 %v310, %v449
        %v473 = vadd.f32 %v311, %v453
        %v474 = vadd.f32 %v312, %v455
        %v475 = vadd.f32 %v313, %v457
        %v476 = vadd.f32 %v314, %v459
        %477 = vst [vmem:[#allocation2] sm:$0xff] %v461
        %478 = vst [vmem:[#allocation2 + $0x8] sm:$0xff] %v462
        %479 = vst [vmem:[#allocation2 + $0x10] sm:$0xff] %v463
        %480 = vst [vmem:[#allocation2 + $0x18] sm:$0xff] %v464
        %481 = vst [vmem:[#allocation2 + $0x20] sm:$0xff] %v465
        %482 = vst [vmem:[#allocation2 + $0x28] sm:$0xff] %v466
        %483 = vst [vmem:[#allocation2 + $0x30] sm:$0xff] %v467
        %484 = vst [vmem:[#allocation2 + $0x38] sm:$0xff] %v468
        %485 = vst [vmem:[#allocation2 + $0x40] sm:$0xff] %v469
        %486 = vst [vmem:[#allocation2 + $0x48] sm:$0xff] %v470
        %487 = vst [vmem:[#allocation2 + $0x50] sm:$0xff] %v471
        %488 = vst [vmem:[#allocation2 + $0x58] sm:$0xff] %v472
        %489 = vst [vmem:[#allocation2 + $0x60] sm:$0xff] %v473
        %490 = vst [vmem:[#allocation2 + $0x68] sm:$0xff] %v474
        %491 = vst [vmem:[#allocation2 + $0x70] sm:$0xff] %v475
        %492 = vst [vmem:[#allocation2 + $0x78] sm:$0xff] %v476
        // Predicated region
        $region49: #{rnn_model_forward.5} parent=31 // pred_check
          %p493 = pneg %p279
        $region50: #{rnn_model_forward.5} parent=31 // pred_check_branch
          %495 = sbr.rel (%p493) target = $region52
        $region51: #{rnn_model_forward.5} parent=31 // pred_region
          %v496 = vld [vmem:[#allocation2] sm:$0xff]
          %v497 = vld [vmem:[#allocation2 + $0x8] sm:$0xff]
          %v498 = vld [vmem:[#allocation2 + $0x10] sm:$0xff]
          %v499 = vld [vmem:[#allocation2 + $0x18] sm:$0xff]
          %v500 = vld [vmem:[#allocation2 + $0x20] sm:$0xff]
          %v501 = vld [vmem:[#allocation2 + $0x28] sm:$0xff]
          %v502 = vld [vmem:[#allocation2 + $0x30] sm:$0xff]
          %v503 = vld [vmem:[#allocation2 + $0x38] sm:$0xff]
          %v504 = vld [vmem:[#allocation2 + $0x40] sm:$0xff]
          %v505 = vld [vmem:[#allocation2 + $0x48] sm:$0xff]
          %v506 = vld [vmem:[#allocation2 + $0x50] sm:$0xff]
          %v507 = vld [vmem:[#allocation2 + $0x58] sm:$0xff]
          %v508 = vld [vmem:[#allocation2 + $0x60] sm:$0xff]
          %v509 = vld [vmem:[#allocation2 + $0x68] sm:$0xff]
          %v510 = vld [vmem:[#allocation2 + $0x70] sm:$0xff]
          %v511 = vld [vmem:[#allocation2 + $0x78] sm:$0xff]
          %v512 = vld [vmem:[%s245] sm:$0x3]
          %v514 = vlaneseq
          %v515 = vshrl.u32 %v514, 7
          %v516 = vsub.s32 0, %v515
          %v517 = vrot.slane %v512, %v516
          %v518 = vlaneseq
          %v519 = vshrl.u32 %v518, 7
          %v520 = vsub.s32 1, %v519
          %v521 = vrot.slane %v512, %v520
          %v524 = vadd.f32 %v496, %v517
          %v525 = vadd.f32 %v497, %v521
          %v526 = vadd.f32 %v498, %v517
          %v527 = vadd.f32 %v499, %v521
          %v528 = vadd.f32 %v500, %v517
          %v529 = vadd.f32 %v501, %v521
          %v530 = vadd.f32 %v502, %v517
          %v531 = vadd.f32 %v503, %v521
          %v532 = vadd.f32 %v504, %v517
          %v533 = vadd.f32 %v505, %v521
          %v534 = vadd.f32 %v506, %v517
          %v535 = vadd.f32 %v507, %v521
          %v536 = vadd.f32 %v508, %v517
          %v537 = vadd.f32 %v509, %v521
          %v538 = vadd.f32 %v510, %v517
          %v539 = vadd.f32 %v511, %v521
          %540 = vst [vmem:[%s271] sm:$0xff] %v524
          %541 = vst [vmem:[%s271 + $0x8] sm:$0xff] %v525
          %542 = vst [vmem:[%s271 + $0x10] sm:$0xff] %v526
          %543 = vst [vmem:[%s271 + $0x18] sm:$0xff] %v527
          %544 = vst [vmem:[%s271 + $0x20] sm:$0xff] %v528
          %545 = vst [vmem:[%s271 + $0x28] sm:$0xff] %v529
          %546 = vst [vmem:[%s271 + $0x30] sm:$0xff] %v530
          %547 = vst [vmem:[%s271 + $0x38] sm:$0xff] %v531
          %548 = vst [vmem:[%s271 + $0x40] sm:$0xff] %v532
          %549 = vst [vmem:[%s271 + $0x48] sm:$0xff] %v533
          %550 = vst [vmem:[%s271 + $0x50] sm:$0xff] %v534
          %551 = vst [vmem:[%s271 + $0x58] sm:$0xff] %v535
          %552 = vst [vmem:[%s271 + $0x60] sm:$0xff] %v536
          %553 = vst [vmem:[%s271 + $0x68] sm:$0xff] %v537
          %554 = vst [vmem:[%s271 + $0x70] sm:$0xff] %v538
          %555 = vst [vmem:[%s271 + $0x78] sm:$0xff] %v539
        $region52: #{rnn_model_forward.5} parent=31 // pred_fallthru
          _
        %s556 = sand.u32 %s129, 1
        %s557 = sand.u32 %s129, 1
        %s558 = smul.addr %s557, 128
        %s559 = scalar_lea.vmem [#allocation8], %s558
        // Predicated region
        $region53: #{rnn_model_forward.5} parent=31 // pred_check
          %p560 = pneg %p139
        $region54: #{rnn_model_forward.5} parent=31 // pred_check_branch
          %562 = sbr.rel (%p560) target = $region56
        $region55: #{rnn_model_forward.5} parent=31 // pred_region
          %s563 = smul.u32 8, %s23
          %s564 = smul.u32 2, %s24
          %s565 = smul.addr %s563, 4
          %s566 = sadd.s32 %s564, %s565
          %s567 = smul.addr %s566, 8
          %s568 = scalar_lea.vmem %s3, %s567
          // Predicated region
          $region57: #{rnn_model_forward.5} parent=55 // pred_check
            _
          $region58: #{rnn_model_forward.5} parent=55 // pred_check_branch
            %570 = sbr.rel (0) target = $region60
          $region59: #{rnn_model_forward.5} parent=55 // pred_region
            // Predicated region
            $region61: #{rnn_model_forward.5} parent=59 // pred_check
              _
            $region62: #{rnn_model_forward.5} parent=59 // pred_check_branch
              %572 = sbr.rel (0) target = $region64
            $region63: #{rnn_model_forward.5} parent=59 // pred_region
              loop: start=0, step=1, limit=1
              $region65: #{rnn_model_forward.5} parent=63 // loop_pre_header
                _
              $region66: #{rnn_model_forward.5} parent=63 // loop_header
                %s574 = sphi 0, %s578
                %p575 = scmp.ge.s32.totalorder %s574, 1
                %s579 = sphi %s559, %s559
                %s580 = sphi %s568, %s568
              $region67: #{rnn_model_forward.5} parent=63 // loop_header_branch
                %577 = sbr.rel (%p575) target = $region71
              $region68: #{rnn_model_forward.5} parent=63 // loop_body
                %v581 = vld [vmem:[%s579] sm:$0xff]
                %582 = vst [vmem:[%s580] sm:$0xff] %v581
                %v583 = vld [vmem:[%s579 + $0x8] sm:$0xff]
                %584 = vst [vmem:[%s580 + $0x8] sm:$0xff] %v583
                %v585 = vld [vmem:[%s579 + $0x10] sm:$0xff]
                %586 = vst [vmem:[%s580 + $0x20] sm:$0xff] %v585
                %v587 = vld [vmem:[%s579 + $0x18] sm:$0xff]
                %588 = vst [vmem:[%s580 + $0x28] sm:$0xff] %v587
                %v589 = vld [vmem:[%s579 + $0x20] sm:$0xff]
                %590 = vst [vmem:[%s580 + $0x40] sm:$0xff] %v589
                %v591 = vld [vmem:[%s579 + $0x28] sm:$0xff]
                %592 = vst [vmem:[%s580 + $0x48] sm:$0xff] %v591
                %v593 = vld [vmem:[%s579 + $0x30] sm:$0xff]
                %594 = vst [vmem:[%s580 + $0x60] sm:$0xff] %v593
                %v595 = vld [vmem:[%s579 + $0x38] sm:$0xff]
                %596 = vst [vmem:[%s580 + $0x68] sm:$0xff] %v595
                %v597 = vld [vmem:[%s579 + $0x40] sm:$0xff]
                %598 = vst [vmem:[%s580 + $0x80] sm:$0xff] %v597
                %v599 = vld [vmem:[%s579 + $0x48] sm:$0xff]
                %600 = vst [vmem:[%s580 + $0x88] sm:$0xff] %v599
                %v601 = vld [vmem:[%s579 + $0x50] sm:$0xff]
                %602 = vst [vmem:[%s580 + $0xa0] sm:$0xff] %v601
                %v603 = vld [vmem:[%s579 + $0x58] sm:$0xff]
                %604 = vst [vmem:[%s580 + $0xa8] sm:$0xff] %v603
                %v605 = vld [vmem:[%s579 + $0x60] sm:$0xff]
                %606 = vst [vmem:[%s580 + $0xc0] sm:$0xff] %v605
                %v607 = vld [vmem:[%s579 + $0x68] sm:$0xff]
                %608 = vst [vmem:[%s580 + $0xc8] sm:$0xff] %v607
                %v609 = vld [vmem:[%s579 + $0x70] sm:$0xff]
                %610 = vst [vmem:[%s580 + $0xe0] sm:$0xff] %v609
                %v611 = vld [vmem:[%s579 + $0x78] sm:$0xff]
                %612 = vst [vmem:[%s580 + $0xe8] sm:$0xff] %v611
              $region69: #{rnn_model_forward.5} parent=63 // loop_footer
                %s578 = sadd.s32 1, %s574
              $region70: #{rnn_model_forward.5} parent=63 // loop_footer_branch
                %573 = sbr.rel target = $region66
              $region71: #{rnn_model_forward.5} parent=63 // loop_exit
                _
            $region64: #{rnn_model_forward.5} parent=59 // pred_fallthru
              _
            // Predicated region
            $region72: #{rnn_model_forward.5} parent=59 // pred_check
              _
            $region73: #{rnn_model_forward.5} parent=59 // pred_check_branch
              %614 = sbr.rel target = $region75
            $region74: #{rnn_model_forward.5} parent=59 // pred_region
              _
            $region75: #{rnn_model_forward.5} parent=59 // pred_fallthru
              _
          $region60: #{rnn_model_forward.5} parent=55 // pred_fallthru
            _
          %615 = vnop
        $region56: #{rnn_model_forward.5} parent=31 // pred_fallthru
          _
      $region32: #{rnn_model_forward.5} parent=5 // pred_fallthru
        _
      %p616 = scmp.le.s32.totalorder 2, %s13
      // Predicated region
      $region76: #{rnn_model_forward.5} parent=5 // pred_check
        %p617 = pneg %p616
      $region77: #{rnn_model_forward.5} parent=5 // pred_check_branch
        %619 = sbr.rel (%p617) target = $region79
      $region78: #{rnn_model_forward.5} parent=5 // pred_region
        %s620 = ssub.s32 %s13, 2
        // Predicated region
        $region80: #{rnn_model_forward.5} parent=78 // pred_check
          %p621 = pneg %p145
        $region81: #{rnn_model_forward.5} parent=78 // pred_check_branch
          %623 = sbr.rel (%p621) target = $region83
        $region82: #{rnn_model_forward.5} parent=78 // pred_region
          %s624 = sand.u32 %s130, 1
          %s625 = sand.u32 %s130, 1
          %s626 = smul.addr %s625, 128
          %s627 = scalar_lea.vmem [#allocation8], %s626
        $region83: #{rnn_model_forward.5} parent=78 // pred_fallthru
          _
      $region79: #{rnn_model_forward.5} parent=5 // pred_fallthru
        _
    $region6: #{rnn_model_forward.5} parent=1 // loop_footer
      %s17 = sadd.s32 1, %s13
    $region7: #{rnn_model_forward.5} parent=1 // loop_footer_branch
      %12 = sbr.rel target = $region3
    $region8: #{rnn_model_forward.5} parent=1 // loop_exit
      _
    %628 = vsyncpa [#allocation4], 1
    %s629 = scalar_lea.sflag [#allocation4], 1
    %630 = vsyncpa %s629, 1
    %631 = vsyncpa [#allocation6], 1
    %s632 = scalar_lea.sflag [#allocation6], 1
    %633 = vsyncpa %s632, 1

// kernel: rnn_model_forward.6
$region0: #{rnn_model_forward.6}
  #allocation0 [shape = 'u32[]', space=smem, size = 0x4, offset = 0x4, fixed_abs, tag = 'smem constant byte address 0x4 - core index']
  #allocation1 [shape = 'u32[144,128]{1,0:T(1,128)}', space=vmem, size = 0x12000, scoped, tag = 'internal scratch']
  %s0 = inlined_call_operand.vmem [shape: f32[8,8,512], index: 0, kind: input, shape index: {}]
  %s1 = inlined_call_operand.vmem [shape: bf16[128,512], index: 1, kind: input, shape index: {}]
  %s2 = inlined_call_operand.vmem [shape: f32[8,8,128], index: 2, kind: output, shape index: {0}]
  %s3 = inlined_call_operand.vmem [shape: f32[8,128], index: 3, kind: output, shape index: {1}]
  %s4 = inlined_call_operand.vmem [shape: f32[8,128], index: 4, kind: output, shape index: {2}]
  %5 = xla_tuple %s2, %s3, %s4
  %s6 = sld [smem:[#allocation0]]
  $region38: #{rnn_model_forward.6} parent=0
    _
  %s8 = ssub.s32 1, %s6
  %s9 = scalar_select 0, %s8, %s6
  // Predicated region
  $region2: #{rnn_model_forward.6} parent=0 // pred_check
    _
  $region3: #{rnn_model_forward.6} parent=0 // pred_check_branch
    %11 = sbr.rel (0) target = $region5
  $region4: #{rnn_model_forward.6} parent=0 // pred_region
    _
  $region5: #{rnn_model_forward.6} parent=0 // pred_fallthru
    _
  // Predicated region
  $region6: #{rnn_model_forward.6} parent=0 // pred_check
    _
  $region7: #{rnn_model_forward.6} parent=0 // pred_check_branch
    %13 = sbr.rel (0) target = $region9
  $region8: #{rnn_model_forward.6} parent=0 // pred_region
    _
  $region9: #{rnn_model_forward.6} parent=0 // pred_fallthru
    _
  %p15 = scmp.eq.s32.totalorder 0, 0
  // Predicated region
  $region10: #{rnn_model_forward.6} parent=0 // pred_check
    %p16 = pneg %p15
  $region11: #{rnn_model_forward.6} parent=0 // pred_check_branch
    %18 = sbr.rel (%p16) target = $region13
  $region12: #{rnn_model_forward.6} parent=0 // pred_region
    %19 = vst [vmem:[%s3] sm:$0xff] 0.0
    %20 = vst [vmem:[%s4] sm:$0xff] 0.0
  $region13: #{rnn_model_forward.6} parent=0 // pred_fallthru
    _
  %v21 = vld [vmem:[%s1] sm:$0xff]
  %v22 = vld [vmem:[%s1 + $0x8] sm:$0xff]
  %v23 = vld [vmem:[%s1 + $0x10] sm:$0xff]
  %v24 = vld [vmem:[%s1 + $0x18] sm:$0xff]
  %v25 = vld [vmem:[%s1 + $0x20] sm:$0xff]
  %v26 = vld [vmem:[%s1 + $0x28] sm:$0xff]
  %v27 = vld [vmem:[%s1 + $0x30] sm:$0xff]
  %v28 = vld [vmem:[%s1 + $0x38] sm:$0xff]
  %v29 = vld [vmem:[%s1 + $0x40] sm:$0xff]
  %v30 = vld [vmem:[%s1 + $0x48] sm:$0xff]
  %v31 = vld [vmem:[%s1 + $0x50] sm:$0xff]
  %v32 = vld [vmem:[%s1 + $0x58] sm:$0xff]
  %v33 = vld [vmem:[%s1 + $0x60] sm:$0xff]
  %v34 = vld [vmem:[%s1 + $0x68] sm:$0xff]
  %v35 = vld [vmem:[%s1 + $0x70] sm:$0xff]
  %v36 = vld [vmem:[%s1 + $0x78] sm:$0xff]
  %v37 = vld [vmem:[%s1 + $0x80] sm:$0xff]
  %v38 = vld [vmem:[%s1 + $0x88] sm:$0xff]
  %v39 = vld [vmem:[%s1 + $0x90] sm:$0xff]
  %v40 = vld [vmem:[%s1 + $0x98] sm:$0xff]
  %v41 = vld [vmem:[%s1 + $0xa0] sm:$0xff]
  %v42 = vld [vmem:[%s1 + $0xa8] sm:$0xff]
  %v43 = vld [vmem:[%s1 + $0xb0] sm:$0xff]
  %v44 = vld [vmem:[%s1 + $0xb8] sm:$0xff]
  %v45 = vld [vmem:[%s1 + $0xc0] sm:$0xff]
  %v46 = vld [vmem:[%s1 + $0xc8] sm:$0xff]
  %v47 = vld [vmem:[%s1 + $0xd0] sm:$0xff]
  %v48 = vld [vmem:[%s1 + $0xd8] sm:$0xff]
  %v49 = vld [vmem:[%s1 + $0xe0] sm:$0xff]
  %v50 = vld [vmem:[%s1 + $0xe8] sm:$0xff]
  %v51 = vld [vmem:[%s1 + $0xf0] sm:$0xff]
  %v52 = vld [vmem:[%s1 + $0xf8] sm:$0xff]
  %v53 = vld [vmem:[%s3] sm:$0xff]
  %v54 = vld [vmem:[%s4] sm:$0xff]
  %v55 = vld [vmem:[%s0] sm:$0xff]
  %v56 = vld [vmem:[%s0 + $0x8] sm:$0xff]
  %v57 = vld [vmem:[%s0 + $0x10] sm:$0xff]
  %v58 = vld [vmem:[%s0 + $0x18] sm:$0xff]
  %v59 = vpack.c.bf16 %v53, %v53
  %v92 = vunpack.c.l.b16 %v21
  %v93 = vunpack.c.h.b16 %v21
  %v94 = vunpack.c.l.b16 %v22
  %v95 = vunpack.c.h.b16 %v22
  %v96 = vunpack.c.l.b16 %v23
  %v97 = vunpack.c.h.b16 %v23
  %v98 = vunpack.c.l.b16 %v24
  %v99 = vunpack.c.h.b16 %v24
  %v100 = vunpack.c.l.b16 %v25
  %v101 = vunpack.c.h.b16 %v25
  %v102 = vunpack.c.l.b16 %v26
  %v103 = vunpack.c.h.b16 %v26
  %v104 = vunpack.c.l.b16 %v27
  %v105 = vunpack.c.h.b16 %v27
  %v106 = vunpack.c.l.b16 %v28
  %v107 = vunpack.c.h.b16 %v28
  %v108 = vunpack.c.l.b16 %v29
  %v109 = vunpack.c.h.b16 %v29
  %v110 = vunpack.c.l.b16 %v30
  %v111 = vunpack.c.h.b16 %v30
  %v112 = vunpack.c.l.b16 %v31
  %v113 = vunpack.c.h.b16 %v31
  %v114 = vunpack.c.l.b16 %v32
  %v115 = vunpack.c.h.b16 %v32
  %v116 = vunpack.c.l.b16 %v33
  %v117 = vunpack.c.h.b16 %v33
  %v118 = vunpack.c.l.b16 %v34
  %v119 = vunpack.c.h.b16 %v34
  %v120 = vunpack.c.l.b16 %v35
  %v121 = vunpack.c.h.b16 %v35
  %v122 = vunpack.c.l.b16 %v36
  %v123 = vunpack.c.h.b16 %v36
  %v124 = vunpack.c.l.b16 %v37
  %v125 = vunpack.c.h.b16 %v37
  %v126 = vunpack.c.l.b16 %v38
  %v127 = vunpack.c.h.b16 %v38
  %v128 = vunpack.c.l.b16 %v39
  %v129 = vunpack.c.h.b16 %v39
  %v130 = vunpack.c.l.b16 %v40
  %v131 = vunpack.c.h.b16 %v40
  %v132 = vunpack.c.l.b16 %v41
  %v133 = vunpack.c.h.b16 %v41
  %v134 = vunpack.c.l.b16 %v42
  %v135 = vunpack.c.h.b16 %v42
  %v136 = vunpack.c.l.b16 %v43
  %v137 = vunpack.c.h.b16 %v43
  %v138 = vunpack.c.l.b16 %v44
  %v139 = vunpack.c.h.b16 %v44
  %v140 = vunpack.c.l.b16 %v45
  %v141 = vunpack.c.h.b16 %v45
  %v142 = vunpack.c.l.b16 %v46
  %v143 = vunpack.c.h.b16 %v46
  %v144 = vunpack.c.l.b16 %v47
  %v145 = vunpack.c.h.b16 %v47
  %v146 = vunpack.c.l.b16 %v48
  %v147 = vunpack.c.h.b16 %v48
  %v148 = vunpack.c.l.b16 %v49
  %v149 = vunpack.c.h.b16 %v49
  %v150 = vunpack.c.l.b16 %v50
  %v151 = vunpack.c.h.b16 %v50
  %v152 = vunpack.c.l.b16 %v51
  %v153 = vunpack.c.h.b16 %v51
  %v154 = vunpack.c.l.b16 %v52
  %v155 = vunpack.c.h.b16 %v52
  %v156 = vpack.c.b16 %v96, %v92
  %v157 = vpack.c.b16 %v97, %v93
  %v158 = vpack.c.b16 %v98, %v94
  %v159 = vpack.c.b16 %v99, %v95
  %v160 = vpack.c.b16 %v104, %v100
  %v161 = vpack.c.b16 %v105, %v101
  %v162 = vpack.c.b16 %v106, %v102
  %v163 = vpack.c.b16 %v107, %v103
  %v164 = vpack.c.b16 %v112, %v108
  %v165 = vpack.c.b16 %v113, %v109
  %v166 = vpack.c.b16 %v114, %v110
  %v167 = vpack.c.b16 %v115, %v111
  %v168 = vpack.c.b16 %v120, %v116
  %v169 = vpack.c.b16 %v121, %v117
  %v170 = vpack.c.b16 %v122, %v118
  %v171 = vpack.c.b16 %v123, %v119
  %v172 = vpack.c.b16 %v128, %v124
  %v173 = vpack.c.b16 %v129, %v125
  %v174 = vpack.c.b16 %v130, %v126
  %v175 = vpack.c.b16 %v131, %v127
  %v176 = vpack.c.b16 %v136, %v132
  %v177 = vpack.c.b16 %v137, %v133
  %v178 = vpack.c.b16 %v138, %v134
  %v179 = vpack.c.b16 %v139, %v135
  %v180 = vpack.c.b16 %v144, %v140
  %v181 = vpack.c.b16 %v145, %v141
  %v182 = vpack.c.b16 %v146, %v142
  %v183 = vpack.c.b16 %v147, %v143
  %v184 = vpack.c.b16 %v152, %v148
  %v185 = vpack.c.b16 %v153, %v149
  %v186 = vpack.c.b16 %v154, %v150
  %v187 = vpack.c.b16 %v155, %v151
  %220 = vmatprep.subr.bf16.mxu0 %v157
  %221 = vmatpush1.bf16.msra.mxu0 %v156
  %222 = vmatprep.subr.bf16.mxu0 %v161
  %223 = vmatpush1.bf16.msra.mxu0 %v160
  %224 = vmatprep.subr.bf16.mxu0 %v165
  %225 = vmatpush1.bf16.msra.mxu0 %v164
  %226 = vmatprep.subr.bf16.mxu0 %v169
  %227 = vmatpush1.bf16.msra.mxu0 %v168
  %228 = vmatprep.subr.bf16.mxu0 %v173
  %229 = vmatpush1.bf16.msra.mxu0 %v172
  %230 = vmatprep.subr.bf16.mxu0 %v177
  %231 = vmatpush1.bf16.msra.mxu0 %v176
  %232 = vmatprep.subr.bf16.mxu0 %v181
  %233 = vmatpush1.bf16.msra.mxu0 %v180
  %234 = vmatprep.subr.bf16.mxu0 %v185
  %235 = vmatpush1.bf16.msra.mxu0 %v184
  %236 = vmatprep.subr.bf16.mxu0 0
  %237 = vmatpush1.bf16.msra.mxu0 0
  %238 = vmatprep.subr.bf16.mxu0 0
  %239 = vmatpush1.bf16.msra.mxu0 0
  %240 = vmatprep.subr.bf16.mxu0 0
  %241 = vmatpush1.bf16.msra.mxu0 0
  %242 = vmatprep.subr.bf16.mxu0 0
  %243 = vmatpush1.bf16.msra.mxu0 0
  %244 = vmatprep.subr.bf16.mxu0 0
  %245 = vmatpush1.bf16.msra.mxu0 0
  %246 = vmatprep.subr.bf16.mxu0 0
  %247 = vmatpush1.bf16.msra.mxu0 0
  %248 = vmatprep.subr.bf16.mxu0 0
  %249 = vmatpush1.bf16.msra.mxu0 0
  %250 = vmatprep.subr.bf16.mxu0 0
  %251 = vmatpush1.bf16.msra.mxu0 0
  %252 = vmatprep.mubr.bf16.mxu0 0
  %253 = vmatmul.mubr.bf16.gmra.mrb[0].mxu0 %v59
  %v254 = vpop.f32.mrb[0].mxu0
  %v255 = vadd.f32 0.0, %v254
  %v256 = vpop.f32.mrb[0].mxu0
  %v257 = vadd.f32 0.0, %v256
  %v258 = vpop.f32.mrb[0].mxu0
  %v259 = vpop.f32.mrb[0].mxu0
  %260 = vdwg.mxu0
  %261 = vmatprep.subr.bf16.mxu0 %v159
  %262 = vmatpush1.bf16.msra.mxu0 %v158
  %263 = vmatprep.subr.bf16.mxu0 %v163
  %264 = vmatpush1.bf16.msra.mxu0 %v162
  %265 = vmatprep.subr.bf16.mxu0 %v167
  %266 = vmatpush1.bf16.msra.mxu0 %v166
  %267 = vmatprep.subr.bf16.mxu0 %v171
  %268 = vmatpush1.bf16.msra.mxu0 %v170
  %269 = vmatprep.subr.bf16.mxu0 %v175
  %270 = vmatpush1.bf16.msra.mxu0 %v174
  %271 = vmatprep.subr.bf16.mxu0 %v179
  %272 = vmatpush1.bf16.msra.mxu0 %v178
  %273 = vmatprep.subr.bf16.mxu0 %v183
  %274 = vmatpush1.bf16.msra.mxu0 %v182
  %275 = vmatprep.subr.bf16.mxu0 %v187
  %276 = vmatpush1.bf16.msra.mxu0 %v186
  %277 = vmatprep.subr.bf16.mxu0 0
  %278 = vmatpush1.bf16.msra.mxu0 0
  %279 = vmatprep.subr.bf16.mxu0 0
  %280 = vmatpush1.bf16.msra.mxu0 0
  %281 = vmatprep.subr.bf16.mxu0 0
  %282 = vmatpush1.bf16.msra.mxu0 0
  %283 = vmatprep.subr.bf16.mxu0 0
  %284 = vmatpush1.bf16.msra.mxu0 0
  %285 = vmatprep.subr.bf16.mxu0 0
  %286 = vmatpush1.bf16.msra.mxu0 0
  %287 = vmatprep.subr.bf16.mxu0 0
  %288 = vmatpush1.bf16.msra.mxu0 0
  %289 = vmatprep.subr.bf16.mxu0 0
  %290 = vmatpush1.bf16.msra.mxu0 0
  %291 = vmatprep.subr.bf16.mxu0 0
  %292 = vmatpush1.bf16.msra.mxu0 0
  %293 = vmatprep.mubr.bf16.mxu0 0
  %294 = vmatmul.mubr.bf16.gmra.mrb[0].mxu0 %v59
  %v295 = vpop.f32.mrb[0].mxu0
  %v296 = vadd.f32 0.0, %v295
  %v297 = vpop.f32.mrb[0].mxu0
  %v298 = vadd.f32 0.0, %v297
  %v299 = vpop.f32.mrb[0].mxu0
  %v300 = vpop.f32.mrb[0].mxu0
  %301 = vdwg.mxu0
  %v302 = vadd.f32 %v55, %v255
  %v303 = vadd.f32 %v56, %v257
  %v304 = vadd.f32 %v57, %v296
  %v305 = vadd.f32 %v58, %v298
  %v306 = vsub.f32 0.0, %v302
  %v307 = vmul.f32 %v306, 1.442695
  %v308 = vpow.pop %v307
  %v309 = vadd.f32 %v308, 1.0
  %v310 = vrcp.pop %v309
  %v311 = vsub.f32 0.0, %v303
  %v312 = vmul.f32 %v311, 1.442695
  %v313 = vpow.pop %v312
  %v314 = vadd.f32 %v313, 1.0
  %v315 = vrcp.pop %v314
  %v316 = vtanh.pop %v304
  %v317 = vsub.f32 0.0, %v305
  %v318 = vmul.f32 %v317, 1.442695
  %v319 = vpow.pop %v318
  %v320 = vadd.f32 %v319, 1.0
  %v321 = vrcp.pop %v320
  %v322 = vmul.f32 %v315, %v54
  %v323 = vmul.f32 %v310, %v316
  %v324 = vadd.f32 %v322, %v323
  %v325 = vtanh.pop %v324
  %v326 = vmul.f32 %v321, %v325
  %327 = vst [vmem:[%s2] sm:$0xff] %v326
  %s328 = scalar_lea.vmem %s0, 32
  %v329 = vld [vmem:[%s328] sm:$0xff]
  %v330 = vld [vmem:[%s328 + $0x8] sm:$0xff]
  %v331 = vld [vmem:[%s328 + $0x10] sm:$0xff]
  %v332 = vld [vmem:[%s328 + $0x18] sm:$0xff]
  %v333 = vpack.c.bf16 %v326, %v326
  %334 = vmatprep.subr.bf16.mxu0 %v157
  %335 = vmatpush1.bf16.msra.mxu0 %v156
  %336 = vmatprep.subr.bf16.mxu0 %v161
  %337 = vmatpush1.bf16.msra.mxu0 %v160
  %338 = vmatprep.subr.bf16.mxu0 %v165
  %339 = vmatpush1.bf16.msra.mxu0 %v164
  %340 = vmatprep.subr.bf16.mxu0 %v169
  %341 = vmatpush1.bf16.msra.mxu0 %v168
  %342 = vmatprep.subr.bf16.mxu0 %v173
  %343 = vmatpush1.bf16.msra.mxu0 %v172
  %344 = vmatprep.subr.bf16.mxu0 %v177
  %345 = vmatpush1.bf16.msra.mxu0 %v176
  %346 = vmatprep.subr.bf16.mxu0 %v181
  %347 = vmatpush1.bf16.msra.mxu0 %v180
  %348 = vmatprep.subr.bf16.mxu0 %v185
  %349 = vmatpush1.bf16.msra.mxu0 %v184
  %350 = vmatprep.subr.bf16.mxu0 0
  %351 = vmatpush1.bf16.msra.mxu0 0
  %352 = vmatprep.subr.bf16.mxu0 0
  %353 = vmatpush1.bf16.msra.mxu0 0
  %354 = vmatprep.subr.bf16.mxu0 0
  %355 = vmatpush1.bf16.msra.mxu0 0
  %356 = vmatprep.subr.bf16.mxu0 0
  %357 = vmatpush1.bf16.msra.mxu0 0
  %358 = vmatprep.subr.bf16.mxu0 0
  %359 = vmatpush1.bf16.msra.mxu0 0
  %360 = vmatprep.subr.bf16.mxu0 0
  %361 = vmatpush1.bf16.msra.mxu0 0
  %362 = vmatprep.subr.bf16.mxu0 0
  %363 = vmatpush1.bf16.msra.mxu0 0
  %364 = vmatprep.subr.bf16.mxu0 0
  %365 = vmatpush1.bf16.msra.mxu0 0
  %366 = vmatprep.mubr.bf16.mxu0 0
  %367 = vmatmul.mubr.bf16.gmra.mrb[0].mxu0 %v333
  %v368 = vpop.f32.mrb[0].mxu0
  %v369 = vadd.f32 0.0, %v368
  %v370 = vpop.f32.mrb[0].mxu0
  %v371 = vadd.f32 0.0, %v370
  %v372 = vpop.f32.mrb[0].mxu0
  %v373 = vpop.f32.mrb[0].mxu0
  %374 = vdwg.mxu0
  %375 = vmatprep.subr.bf16.mxu0 %v159
  %376 = vmatpush1.bf16.msra.mxu0 %v158
  %377 = vmatprep.subr.bf16.mxu0 %v163
  %378 = vmatpush1.bf16.msra.mxu0 %v162
  %379 = vmatprep.subr.bf16.mxu0 %v167
  %380 = vmatpush1.bf16.msra.mxu0 %v166
  %381 = vmatprep.subr.bf16.mxu0 %v171
  %382 = vmatpush1.bf16.msra.mxu0 %v170
  %383 = vmatprep.subr.bf16.mxu0 %v175
  %384 = vmatpush1.bf16.msra.mxu0 %v174
  %385 = vmatprep.subr.bf16.mxu0 %v179
  %386 = vmatpush1.bf16.msra.mxu0 %v178
  %387 = vmatprep.subr.bf16.mxu0 %v183
  %388 = vmatpush1.bf16.msra.mxu0 %v182
  %389 = vmatprep.subr.bf16.mxu0 %v187
  %390 = vmatpush1.bf16.msra.mxu0 %v186
  %391 = vmatprep.subr.bf16.mxu0 0
  %392 = vmatpush1.bf16.msra.mxu0 0
  %393 = vmatprep.subr.bf16.mxu0 0
  %394 = vmatpush1.bf16.msra.mxu0 0
  %395 = vmatprep.subr.bf16.mxu0 0
  %396 = vmatpush1.bf16.msra.mxu0 0
  %397 = vmatprep.subr.bf16.mxu0 0
  %398 = vmatpush1.bf16.msra.mxu0 0
  %399 = vmatprep.subr.bf16.mxu0 0
  %400 = vmatpush1.bf16.msra.mxu0 0
  %401 = vmatprep.subr.bf16.mxu0 0
  %402 = vmatpush1.bf16.msra.mxu0 0
  %403 = vmatprep.subr.bf16.mxu0 0
  %404 = vmatpush1.bf16.msra.mxu0 0
  %405 = vmatprep.subr.bf16.mxu0 0
  %406 = vmatpush1.bf16.msra.mxu0 0
  %407 = vmatprep.mubr.bf16.mxu0 0
  %408 = vmatmul.mubr.bf16.gmra.mrb[0].mxu0 %v333
  %v409 = vpop.f32.mrb[0].mxu0
  %v410 = vadd.f32 0.0, %v409
  %v411 = vpop.f32.mrb[0].mxu0
  %v412 = vadd.f32 0.0, %v411
  %v413 = vpop.f32.mrb[0].mxu0
  %v414 = vpop.f32.mrb[0].mxu0
  %415 = vdwg.mxu0
  %v416 = vadd.f32 %v329, %v369
  %v417 = vadd.f32 %v330, %v371
  %v418 = vadd.f32 %v331, %v410
  %v419 = vadd.f32 %v332, %v412
  %v420 = vsub.f32 0.0, %v416
  %v421 = vmul.f32 %v420, 1.442695
  %v422 = vpow.pop %v421
  %v423 = vadd.f32 %v422, 1.0
  %v424 = vrcp.pop %v423
  %v425 = vsub.f32 0.0, %v417
  %v426 = vmul.f32 %v425, 1.442695
  %v427 = vpow.pop %v426
  %v428 = vadd.f32 %v427, 1.0
  %v429 = vrcp.pop %v428
  %v430 = vtanh.pop %v418
  %v431 = vsub.f32 0.0, %v419
  %v432 = vmul.f32 %v431, 1.442695
  %v433 = vpow.pop %v432
  %v434 = vadd.f32 %v433, 1.0
  %v435 = vrcp.pop %v434
  %v436 = vmul.f32 %v429, %v324
  %v437 = vmul.f32 %v424, %v430
  %v438 = vadd.f32 %v436, %v437
  %v439 = vtanh.pop %v438
  %v440 = vmul.f32 %v435, %v439
  %s441 = scalar_lea.vmem %s2, 8
  %442 = vst [vmem:[%s441] sm:$0xff] %v440
  %s443 = scalar_lea.vmem %s0, 64
  %v444 = vld [vmem:[%s443] sm:$0xff]
  %v445 = vld [vmem:[%s443 + $0x8] sm:$0xff]
  %v446 = vld [vmem:[%s443 + $0x10] sm:$0xff]
  %v447 = vld [vmem:[%s443 + $0x18] sm:$0xff]
  %v448 = vpack.c.bf16 %v440, %v440
  %449 = vmatprep.subr.bf16.mxu0 %v157
  %450 = vmatpush1.bf16.msra.mxu0 %v156
  %451 = vmatprep.subr.bf16.mxu0 %v161
  %452 = vmatpush1.bf16.msra.mxu0 %v160
  %453 = vmatprep.subr.bf16.mxu0 %v165
  %454 = vmatpush1.bf16.msra.mxu0 %v164
  %455 = vmatprep.subr.bf16.mxu0 %v169
  %456 = vmatpush1.bf16.msra.mxu0 %v168
  %457 = vmatprep.subr.bf16.mxu0 %v173
  %458 = vmatpush1.bf16.msra.mxu0 %v172
  %459 = vmatprep.subr.bf16.mxu0 %v177
  %460 = vmatpush1.bf16.msra.mxu0 %v176
  %461 = vmatprep.subr.bf16.mxu0 %v181
  %462 = vmatpush1.bf16.msra.mxu0 %v180
  %463 = vmatprep.subr.bf16.mxu0 %v185
  %464 = vmatpush1.bf16.msra.mxu0 %v184
  %465 = vmatprep.subr.bf16.mxu0 0
  %466 = vmatpush1.bf16.msra.mxu0 0
  %467 = vmatprep.subr.bf16.mxu0 0
  %468 = vmatpush1.bf16.msra.mxu0 0
  %469 = vmatprep.subr.bf16.mxu0 0
  %470 = vmatpush1.bf16.msra.mxu0 0
  %471 = vmatprep.subr.bf16.mxu0 0
  %472 = vmatpush1.bf16.msra.mxu0 0
  %473 = vmatprep.subr.bf16.mxu0 0
  %474 = vmatpush1.bf16.msra.mxu0 0
  %475 = vmatprep.subr.bf16.mxu0 0
  %476 = vmatpush1.bf16.msra.mxu0 0
  %477 = vmatprep.subr.bf16.mxu0 0
  %478 = vmatpush1.bf16.msra.mxu0 0
  %479 = vmatprep.subr.bf16.mxu0 0
  %480 = vmatpush1.bf16.msra.mxu0 0
  %481 = vmatprep.mubr.bf16.mxu0 0
  %482 = vmatmul.mubr.bf16.gmra.mrb[0].mxu0 %v448
  %v483 = vpop.f32.mrb[0].mxu0
  %v484 = vadd.f32 0.0, %v483
  %v485 = vpop.f32.mrb[0].mxu0
  %v486 = vadd.f32 0.0, %v485
  %v487 = vpop.f32.mrb[0].mxu0
  %v488 = vpop.f32.mrb[0].mxu0
  %489 = vdwg.mxu0
  %490 = vmatprep.subr.bf16.mxu0 %v159
  %491 = vmatpush1.bf16.msra.mxu0 %v158
  %492 = vmatprep.subr.bf16.mxu0 %v163
  %493 = vmatpush1.bf16.msra.mxu0 %v162
  %494 = vmatprep.subr.bf16.mxu0 %v167
  %495 = vmatpush1.bf16.msra.mxu0 %v166
  %496 = vmatprep.subr.bf16.mxu0 %v171
  %497 = vmatpush1.bf16.msra.mxu0 %v170
  %498 = vmatprep.subr.bf16.mxu0 %v175
  %499 = vmatpush1.bf16.msra.mxu0 %v174
  %500 = vmatprep.subr.bf16.mxu0 %v179
  %501 = vmatpush1.bf16.msra.mxu0 %v178
  %502 = vmatprep.subr.bf16.mxu0 %v183
  %503 = vmatpush1.bf16.msra.mxu0 %v182
  %504 = vmatprep.subr.bf16.mxu0 %v187
  %505 = vmatpush1.bf16.msra.mxu0 %v186
  %506 = vmatprep.subr.bf16.mxu0 0
  %507 = vmatpush1.bf16.msra.mxu0 0
  %508 = vmatprep.subr.bf16.mxu0 0
  %509 = vmatpush1.bf16.msra.mxu0 0
  %510 = vmatprep.subr.bf16.mxu0 0
  %511 = vmatpush1.bf16.msra.mxu0 0
  %512 = vmatprep.subr.bf16.mxu0 0
  %513 = vmatpush1.bf16.msra.mxu0 0
  %514 = vmatprep.subr.bf16.mxu0 0
  %515 = vmatpush1.bf16.msra.mxu0 0
  %516 = vmatprep.subr.bf16.mxu0 0
  %517 = vmatpush1.bf16.msra.mxu0 0
  %518 = vmatprep.subr.bf16.mxu0 0
  %519 = vmatpush1.bf16.msra.mxu0 0
  %520 = vmatprep.subr.bf16.mxu0 0
  %521 = vmatpush1.bf16.msra.mxu0 0
  %522 = vmatprep.mubr.bf16.mxu0 0
  %523 = vmatmul.mubr.bf16.gmra.mrb[0].mxu0 %v448
  %v524 = vpop.f32.mrb[0].mxu0
  %v525 = vadd.f32 0.0, %v524
  %v526 = vpop.f32.mrb[0].mxu0
  %v527 = vadd.f32 0.0, %v526
  %v528 = vpop.f32.mrb[0].mxu0
  %v529 = vpop.f32.mrb[0].mxu0
  %530 = vdwg.mxu0
  %v531 = vadd.f32 %v444, %v484
  %v532 = vadd.f32 %v445, %v486
  %v533 = vadd.f32 %v446, %v525
  %v534 = vadd.f32 %v447, %v527
  %v535 = vsub.f32 0.0, %v531
  %v536 = vmul.f32 %v535, 1.442695
  %v537 = vpow.pop %v536
  %v538 = vadd.f32 %v537, 1.0
  %v539 = vrcp.pop %v538
  %v540 = vsub.f32 0.0, %v532
  %v541 = vmul.f32 %v540, 1.442695
  %v542 = vpow.pop %v541
  %v543 = vadd.f32 %v542, 1.0
  %v544 = vrcp.pop %v543
  %v545 = vtanh.pop %v533
  %v546 = vsub.f32 0.0, %v534
  %v547 = vmul.f32 %v546, 1.442695
  %v548 = vpow.pop %v547
  %v549 = vadd.f32 %v548, 1.0
  %v550 = vrcp.pop %v549
  %v551 = vmul.f32 %v544, %v438
  %v552 = vmul.f32 %v539, %v545
  %v553 = vadd.f32 %v551, %v552
  %v554 = vtanh.pop %v553
  %v555 = vmul.f32 %v550, %v554
  %s556 = scalar_lea.vmem %s2, 16
  %557 = vst [vmem:[%s556] sm:$0xff] %v555
  %s558 = scalar_lea.vmem %s0, 96
  %v559 = vld [vmem:[%s558] sm:$0xff]
  %v560 = vld [vmem:[%s558 + $0x8] sm:$0xff]
  %v561 = vld [vmem:[%s558 + $0x10] sm:$0xff]
  %v562 = vld [vmem:[%s558 + $0x18] sm:$0xff]
  %v563 = vpack.c.bf16 %v555, %v555
  %564 = vmatprep.subr.bf16.mxu0 %v157
  %565 = vmatpush1.bf16.msra.mxu0 %v156
  %566 = vmatprep.subr.bf16.mxu0 %v161
  %567 = vmatpush1.bf16.msra.mxu0 %v160
  %568 = vmatprep.subr.bf16.mxu0 %v165
  %569 = vmatpush1.bf16.msra.mxu0 %v164
  %570 = vmatprep.subr.bf16.mxu0 %v169
  %571 = vmatpush1.bf16.msra.mxu0 %v168
  %572 = vmatprep.subr.bf16.mxu0 %v173
  %573 = vmatpush1.bf16.msra.mxu0 %v172
  %574 = vmatprep.subr.bf16.mxu0 %v177
  %575 = vmatpush1.bf16.msra.mxu0 %v176
  %576 = vmatprep.subr.bf16.mxu0 %v181
  %577 = vmatpush1.bf16.msra.mxu0 %v180
  %578 = vmatprep.subr.bf16.mxu0 %v185
  %579 = vmatpush1.bf16.msra.mxu0 %v184
  %580 = vmatprep.subr.bf16.mxu0 0
  %581 = vmatpush1.bf16.msra.mxu0 0
  %582 = vmatprep.subr.bf16.mxu0 0
  %583 = vmatpush1.bf16.msra.mxu0 0
  %584 = vmatprep.subr.bf16.mxu0 0
  %585 = vmatpush1.bf16.msra.mxu0 0
  %586 = vmatprep.subr.bf16.mxu0 0
  %587 = vmatpush1.bf16.msra.mxu0 0
  %588 = vmatprep.subr.bf16.mxu0 0
  %589 = vmatpush1.bf16.msra.mxu0 0
  %590 = vmatprep.subr.bf16.mxu0 0
  %591 = vmatpush1.bf16.msra.mxu0 0
  %592 = vmatprep.subr.bf16.mxu0 0
  %593 = vmatpush1.bf16.msra.mxu0 0
  %594 = vmatprep.subr.bf16.mxu0 0
  %595 = vmatpush1.bf16.msra.mxu0 0
  %596 = vmatprep.mubr.bf16.mxu0 0
  %597 = vmatmul.mubr.bf16.gmra.mrb[0].mxu0 %v563
  %v598 = vpop.f32.mrb[0].mxu0
  %v599 = vadd.f32 0.0, %v598
  %v600 = vpop.f32.mrb[0].mxu0
  %v601 = vadd.f32 0.0, %v600
  %v602 = vpop.f32.mrb[0].mxu0
  %v603 = vpop.f32.mrb[0].mxu0
  %604 = vdwg.mxu0
  %605 = vmatprep.subr.bf16.mxu0 %v159
  %606 = vmatpush1.bf16.msra.mxu0 %v158
  %607 = vmatprep.subr.bf16.mxu0 %v163
  %608 = vmatpush1.bf16.msra.mxu0 %v162
  %609 = vmatprep.subr.bf16.mxu0 %v167
  %610 = vmatpush1.bf16.msra.mxu0 %v166
  %611 = vmatprep.subr.bf16.mxu0 %v171
  %612 = vmatpush1.bf16.msra.mxu0 %v170
  %613 = vmatprep.subr.bf16.mxu0 %v175
  %614 = vmatpush1.bf16.msra.mxu0 %v174
  %615 = vmatprep.subr.bf16.mxu0 %v179
  %616 = vmatpush1.bf16.msra.mxu0 %v178
  %617 = vmatprep.subr.bf16.mxu0 %v183
  %618 = vmatpush1.bf16.msra.mxu0 %v182
  %619 = vmatprep.subr.bf16.mxu0 %v187
  %620 = vmatpush1.bf16.msra.mxu0 %v186
  %621 = vmatprep.subr.bf16.mxu0 0
  %622 = vmatpush1.bf16.msra.mxu0 0
  %623 = vmatprep.subr.bf16.mxu0 0
  %624 = vmatpush1.bf16.msra.mxu0 0
  %625 = vmatprep.subr.bf16.mxu0 0
  %626 = vmatpush1.bf16.msra.mxu0 0
  %627 = vmatprep.subr.bf16.mxu0 0
  %628 = vmatpush1.bf16.msra.mxu0 0
  %629 = vmatprep.subr.bf16.mxu0 0
  %630 = vmatpush1.bf16.msra.mxu0 0
  %631 = vmatprep.subr.bf16.mxu0 0
  %632 = vmatpush1.bf16.msra.mxu0 0
  %633 = vmatprep.subr.bf16.mxu0 0
  %634 = vmatpush1.bf16.msra.mxu0 0
  %635 = vmatprep.subr.bf16.mxu0 0
  %636 = vmatpush1.bf16.msra.mxu0 0
  %637 = vmatprep.mubr.bf16.mxu0 0
  %638 = vmatmul.mubr.bf16.gmra.mrb[0].mxu0 %v563
  %v639 = vpop.f32.mrb[0].mxu0
  %v640 = vadd.f32 0.0, %v639
  %v641 = vpop.f32.mrb[0].mxu0
  %v642 = vadd.f32 0.0, %v641
  %v643 = vpop.f32.mrb[0].mxu0
  %v644 = vpop.f32.mrb[0].mxu0
  %645 = vdwg.mxu0
  %v646 = vadd.f32 %v559, %v599
  %v647 = vadd.f32 %v560, %v601
  %v648 = vadd.f32 %v561, %v640
  %v649 = vadd.f32 %v562, %v642
  %v650 = vsub.f32 0.0, %v646
  %v651 = vmul.f32 %v650, 1.442695
  %v652 = vpow.pop %v651
  %v653 = vadd.f32 %v652, 1.0
  %v654 = vrcp.pop %v653
  %v655 = vsub.f32 0.0, %v647
  %v656 = vmul.f32 %v655, 1.442695
  %v657 = vpow.pop %v656
  %v658 = vadd.f32 %v657, 1.0
  %v659 = vrcp.pop %v658
  %v660 = vtanh.pop %v648
  %v661 = vsub.f32 0.0, %v649
  %v662 = vmul.f32 %v661, 1.442695
  %v663 = vpow.pop %v662
  %v664 = vadd.f32 %v663, 1.0
  %v665 = vrcp.pop %v664
  %v666 = vmul.f32 %v659, %v553
  %v667 = vmul.f32 %v654, %v660
  %v668 = vadd.f32 %v666, %v667
  %v669 = vtanh.pop %v668
  %v670 = vmul.f32 %v665, %v669
  %s671 = scalar_lea.vmem %s2, 24
  %672 = vst [vmem:[%s671] sm:$0xff] %v670
  %s673 = scalar_lea.vmem %s0, 128
  %v674 = vld [vmem:[%s673] sm:$0xff]
  %v675 = vld [vmem:[%s673 + $0x8] sm:$0xff]
  %v676 = vld [vmem:[%s673 + $0x10] sm:$0xff]
  %v677 = vld [vmem:[%s673 + $0x18] sm:$0xff]
  %v678 = vpack.c.bf16 %v670, %v670
  %679 = vmatprep.subr.bf16.mxu0 %v157
  %680 = vmatpush1.bf16.msra.mxu0 %v156
  %681 = vmatprep.subr.bf16.mxu0 %v161
  %682 = vmatpush1.bf16.msra.mxu0 %v160
  %683 = vmatprep.subr.bf16.mxu0 %v165
  %684 = vmatpush1.bf16.msra.mxu0 %v164
  %685 = vmatprep.subr.bf16.mxu0 %v169
  %686 = vmatpush1.bf16.msra.mxu0 %v168
  %687 = vmatprep.subr.bf16.mxu0 %v173
  %688 = vmatpush1.bf16.msra.mxu0 %v172
  %689 = vmatprep.subr.bf16.mxu0 %v177
  %690 = vmatpush1.bf16.msra.mxu0 %v176
  %691 = vmatprep.subr.bf16.mxu0 %v181
  %692 = vmatpush1.bf16.msra.mxu0 %v180
  %693 = vmatprep.subr.bf16.mxu0 %v185
  %694 = vmatpush1.bf16.msra.mxu0 %v184
  %695 = vmatprep.subr.bf16.mxu0 0
  %696 = vmatpush1.bf16.msra.mxu0 0
  %697 = vmatprep.subr.bf16.mxu0 0
  %698 = vmatpush1.bf16.msra.mxu0 0
  %699 = vmatprep.subr.bf16.mxu0 0
  %700 = vmatpush1.bf16.msra.mxu0 0
  %701 = vmatprep.subr.bf16.mxu0 0
  %702 = vmatpush1.bf16.msra.mxu0 0
  %703 = vmatprep.subr.bf16.mxu0 0
  %704 = vmatpush1.bf16.msra.mxu0 0
  %705 = vmatprep.subr.bf16.mxu0 0
  %706 = vmatpush1.bf16.msra.mxu0 0
  %707 = vmatprep.subr.bf16.mxu0 0
  %708 = vmatpush1.bf16.msra.mxu0 0
  %709 = vmatprep.subr.bf16.mxu0 0
  %710 = vmatpush1.bf16.msra.mxu0 0
  %711 = vmatprep.mubr.bf16.mxu0 0
  %712 = vmatmul.mubr.bf16.gmra.mrb[0].mxu0 %v678
  %v713 = vpop.f32.mrb[0].mxu0
  %v714 = vadd.f32 0.0, %v713
  %v715 = vpop.f32.mrb[0].mxu0
  %v716 = vadd.f32 0.0, %v715
  %v717 = vpop.f32.mrb[0].mxu0
  %v718 = vpop.f32.mrb[0].mxu0
  %719 = vdwg.mxu0
  %720 = vmatprep.subr.bf16.mxu0 %v159
  %721 = vmatpush1.bf16.msra.mxu0 %v158
  %722 = vmatprep.subr.bf16.mxu0 %v163
  %723 = vmatpush1.bf16.msra.mxu0 %v162
  %724 = vmatprep.subr.bf16.mxu0 %v167
  %725 = vmatpush1.bf16.msra.mxu0 %v166
  %726 = vmatprep.subr.bf16.mxu0 %v171
  %727 = vmatpush1.bf16.msra.mxu0 %v170
  %728 = vmatprep.subr.bf16.mxu0 %v175
  %729 = vmatpush1.bf16.msra.mxu0 %v174
  %730 = vmatprep.subr.bf16.mxu0 %v179
  %731 = vmatpush1.bf16.msra.mxu0 %v178
  %732 = vmatprep.subr.bf16.mxu0 %v183
  %733 = vmatpush1.bf16.msra.mxu0 %v182
  %734 = vmatprep.subr.bf16.mxu0 %v187
  %735 = vmatpush1.bf16.msra.mxu0 %v186
  %736 = vmatprep.subr.bf16.mxu0 0
  %737 = vmatpush1.bf16.msra.mxu0 0
  %738 = vmatprep.subr.bf16.mxu0 0
  %739 = vmatpush1.bf16.msra.mxu0 0
  %740 = vmatprep.subr.bf16.mxu0 0
  %741 = vmatpush1.bf16.msra.mxu0 0
  %742 = vmatprep.subr.bf16.mxu0 0
  %743 = vmatpush1.bf16.msra.mxu0 0
  %744 = vmatprep.subr.bf16.mxu0 0
  %745 = vmatpush1.bf16.msra.mxu0 0
  %746 = vmatprep.subr.bf16.mxu0 0
  %747 = vmatpush1.bf16.msra.mxu0 0
  %748 = vmatprep.subr.bf16.mxu0 0
  %749 = vmatpush1.bf16.msra.mxu0 0
  %750 = vmatprep.subr.bf16.mxu0 0
  %751 = vmatpush1.bf16.msra.mxu0 0
  %752 = vmatprep.mubr.bf16.mxu0 0
  %753 = vmatmul.mubr.bf16.gmra.mrb[0].mxu0 %v678
  %v754 = vpop.f32.mrb[0].mxu0
  %v755 = vadd.f32 0.0, %v754
  %v756 = vpop.f32.mrb[0].mxu0
  %v757 = vadd.f32 0.0, %v756
  %v758 = vpop.f32.mrb[0].mxu0
  %v759 = vpop.f32.mrb[0].mxu0
  %760 = vdwg.mxu0
  %v761 = vadd.f32 %v674, %v714
  %v762 = vadd.f32 %v675, %v716
  %v763 = vadd.f32 %v676, %v755
  %v764 = vadd.f32 %v677, %v757
  %v765 = vsub.f32 0.0, %v761
  %v766 = vmul.f32 %v765, 1.442695
  %v767 = vpow.pop %v766
  %v768 = vadd.f32 %v767, 1.0
  %v769 = vrcp.pop %v768
  %v770 = vsub.f32 0.0, %v762
  %v771 = vmul.f32 %v770, 1.442695
  %v772 = vpow.pop %v771
  %v773 = vadd.f32 %v772, 1.0
  %v774 = vrcp.pop %v773
  %v775 = vtanh.pop %v763
  %v776 = vsub.f32 0.0, %v764
  %v777 = vmul.f32 %v776, 1.442695
  %v778 = vpow.pop %v777
  %v779 = vadd.f32 %v778, 1.0
  %v780 = vrcp.pop %v779
  %v781 = vmul.f32 %v774, %v668
  %v782 = vmul.f32 %v769, %v775
  %v783 = vadd.f32 %v781, %v782
  %v784 = vtanh.pop %v783
  %v785 = vmul.f32 %v780, %v784
  %s786 = scalar_lea.vmem %s2, 32
  %787 = vst [vmem:[%s786] sm:$0xff] %v785
  %s788 = scalar_lea.vmem %s0, 160
  %v789 = vld [vmem:[%s788] sm:$0xff]
  %v790 = vld [vmem:[%s788 + $0x8] sm:$0xff]
  %v791 = vld [vmem:[%s788 + $0x10] sm:$0xff]
  %v792 = vld [vmem:[%s788 + $0x18] sm:$0xff]
  %v793 = vpack.c.bf16 %v785, %v785
  %794 = vmatprep.subr.bf16.mxu0 %v157
  %795 = vmatpush1.bf16.msra.mxu0 %v156
  %796 = vmatprep.subr.bf16.mxu0 %v161
  %797 = vmatpush1.bf16.msra.mxu0 %v160
  %798 = vmatprep.subr.bf16.mxu0 %v165
  %799 = vmatpush1.bf16.msra.mxu0 %v164
  %800 = vmatprep.subr.bf16.mxu0 %v169
  %801 = vmatpush1.bf16.msra.mxu0 %v168
  %802 = vmatprep.subr.bf16.mxu0 %v173
  %803 = vmatpush1.bf16.msra.mxu0 %v172
  %804 = vmatprep.subr.bf16.mxu0 %v177
  %805 = vmatpush1.bf16.msra.mxu0 %v176
  %806 = vmatprep.subr.bf16.mxu0 %v181
  %807 = vmatpush1.bf16.msra.mxu0 %v180
  %808 = vmatprep.subr.bf16.mxu0 %v185
  %809 = vmatpush1.bf16.msra.mxu0 %v184
  %810 = vmatprep.subr.bf16.mxu0 0
  %811 = vmatpush1.bf16.msra.mxu0 0
  %812 = vmatprep.subr.bf16.mxu0 0
  %813 = vmatpush1.bf16.msra.mxu0 0
  %814 = vmatprep.subr.bf16.mxu0 0
  %815 = vmatpush1.bf16.msra.mxu0 0
  %816 = vmatprep.subr.bf16.mxu0 0
  %817 = vmatpush1.bf16.msra.mxu0 0
  %818 = vmatprep.subr.bf16.mxu0 0
  %819 = vmatpush1.bf16.msra.mxu0 0
  %820 = vmatprep.subr.bf16.mxu0 0
  %821 = vmatpush1.bf16.msra.mxu0 0
  %822 = vmatprep.subr.bf16.mxu0 0
  %823 = vmatpush1.bf16.msra.mxu0 0
  %824 = vmatprep.subr.bf16.mxu0 0
  %825 = vmatpush1.bf16.msra.mxu0 0
  %826 = vmatprep.mubr.bf16.mxu0 0
  %827 = vmatmul.mubr.bf16.gmra.mrb[0].mxu0 %v793
  %v828 = vpop.f32.mrb[0].mxu0
  %v829 = vadd.f32 0.0, %v828
  %v830 = vpop.f32.mrb[0].mxu0
  %v831 = vadd.f32 0.0, %v830
  %v832 = vpop.f32.mrb[0].mxu0
  %v833 = vpop.f32.mrb[0].mxu0
  %834 = vdwg.mxu0
  %835 = vmatprep.subr.bf16.mxu0 %v159
  %836 = vmatpush1.bf16.msra.mxu0 %v158
  %837 = vmatprep.subr.bf16.mxu0 %v163
  %838 = vmatpush1.bf16.msra.mxu0 %v162
  %839 = vmatprep.subr.bf16.mxu0 %v167
  %840 = vmatpush1.bf16.msra.mxu0 %v166
  %841 = vmatprep.subr.bf16.mxu0 %v171
  %842 = vmatpush1.bf16.msra.mxu0 %v170
  %843 = vmatprep.subr.bf16.mxu0 %v175
  %844 = vmatpush1.bf16.msra.mxu0 %v174
  %845 = vmatprep.subr.bf16.mxu0 %v179
  %846 = vmatpush1.bf16.msra.mxu0 %v178
  %847 = vmatprep.subr.bf16.mxu0 %v183
  %848 = vmatpush1.bf16.msra.mxu0 %v182
  %849 = vmatprep.subr.bf16.mxu0 %v187
  %850 = vmatpush1.bf16.msra.mxu0 %v186
  %851 = vmatprep.subr.bf16.mxu0 0
  %852 = vmatpush1.bf16.msra.mxu0 0
  %853 = vmatprep.subr.bf16.mxu0 0
  %854 = vmatpush1.bf16.msra.mxu0 0
  %855 = vmatprep.subr.bf16.mxu0 0
  %856 = vmatpush1.bf16.msra.mxu0 0
  %857 = vmatprep.subr.bf16.mxu0 0
  %858 = vmatpush1.bf16.msra.mxu0 0
  %859 = vmatprep.subr.bf16.mxu0 0
  %860 = vmatpush1.bf16.msra.mxu0 0
  %861 = vmatprep.subr.bf16.mxu0 0
  %862 = vmatpush1.bf16.msra.mxu0 0
  %863 = vmatprep.subr.bf16.mxu0 0
  %864 = vmatpush1.bf16.msra.mxu0 0
  %865 = vmatprep.subr.bf16.mxu0 0
  %866 = vmatpush1.bf16.msra.mxu0 0
  %867 = vmatprep.mubr.bf16.mxu0 0
  %868 = vmatmul.mubr.bf16.gmra.mrb[0].mxu0 %v793
  %v869 = vpop.f32.mrb[0].mxu0
  %v870 = vadd.f32 0.0, %v869
  %v871 = vpop.f32.mrb[0].mxu0
  %v872 = vadd.f32 0.0, %v871
  %v873 = vpop.f32.mrb[0].mxu0
  %v874 = vpop.f32.mrb[0].mxu0
  %875 = vdwg.mxu0
  %v876 = vadd.f32 %v789, %v829
  %v877 = vadd.f32 %v790, %v831
  %v878 = vadd.f32 %v791, %v870
  %v879 = vadd.f32 %v792, %v872
  %v880 = vsub.f32 0.0, %v876
  %v881 = vmul.f32 %v880, 1.442695
  %v882 = vpow.pop %v881
  %v883 = vadd.f32 %v882, 1.0
  %v884 = vrcp.pop %v883
  %v885 = vsub.f32 0.0, %v877
  %v886 = vmul.f32 %v885, 1.442695
  %v887 = vpow.pop %v886
  %v888 = vadd.f32 %v887, 1.0
  %v889 = vrcp.pop %v888
  %v890 = vtanh.pop %v878
  %v891 = vsub.f32 0.0, %v879
  %v892 = vmul.f32 %v891, 1.442695
  %v893 = vpow.pop %v892
  %v894 = vadd.f32 %v893, 1.0
  %v895 = vrcp.pop %v894
  %v896 = vmul.f32 %v889, %v783
  %v897 = vmul.f32 %v884, %v890
  %v898 = vadd.f32 %v896, %v897
  %v899 = vtanh.pop %v898
  %v900 = vmul.f32 %v895, %v899
  %s901 = scalar_lea.vmem %s2, 40
  %902 = vst [vmem:[%s901] sm:$0xff] %v900
  %s903 = scalar_lea.vmem %s0, 192
  %v904 = vld [vmem:[%s903] sm:$0xff]
  %v905 = vld [vmem:[%s903 + $0x8] sm:$0xff]
  %v906 = vld [vmem:[%s903 + $0x10] sm:$0xff]
  %v907 = vld [vmem:[%s903 + $0x18] sm:$0xff]
  %v908 = vpack.c.bf16 %v900, %v900
  %909 = vmatprep.subr.bf16.mxu0 %v157
  %910 = vmatpush1.bf16.msra.mxu0 %v156
  %911 = vmatprep.subr.bf16.mxu0 %v161
  %912 = vmatpush1.bf16.msra.mxu0 %v160
  %913 = vmatprep.subr.bf16.mxu0 %v165
  %914 = vmatpush1.bf16.msra.mxu0 %v164
  %915 = vmatprep.subr.bf16.mxu0 %v169
  %916 = vmatpush1.bf16.msra.mxu0 %v168
  %917 = vmatprep.subr.bf16.mxu0 %v173
  %918 = vmatpush1.bf16.msra.mxu0 %v172
  %919 = vmatprep.subr.bf16.mxu0 %v177
  %920 = vmatpush1.bf16.msra.mxu0 %v176
  %921 = vmatprep.subr.bf16.mxu0 %v181
  %922 = vmatpush1.bf16.msra.mxu0 %v180
  %923 = vmatprep.subr.bf16.mxu0 %v185
  %924 = vmatpush1.bf16.msra.mxu0 %v184
  %925 = vmatprep.subr.bf16.mxu0 0
  %926 = vmatpush1.bf16.msra.mxu0 0
  %927 = vmatprep.subr.bf16.mxu0 0
  %928 = vmatpush1.bf16.msra.mxu0 0
  %929 = vmatprep.subr.bf16.mxu0 0
  %930 = vmatpush1.bf16.msra.mxu0 0
  %931 = vmatprep.subr.bf16.mxu0 0
  %932 = vmatpush1.bf16.msra.mxu0 0
  %933 = vmatprep.subr.bf16.mxu0 0
  %934 = vmatpush1.bf16.msra.mxu0 0
  %935 = vmatprep.subr.bf16.mxu0 0
  %936 = vmatpush1.bf16.msra.mxu0 0
  %937 = vmatprep.subr.bf16.mxu0 0
  %938 = vmatpush1.bf16.msra.mxu0 0
  %939 = vmatprep.subr.bf16.mxu0 0
  %940 = vmatpush1.bf16.msra.mxu0 0
  %941 = vmatprep.mubr.bf16.mxu0 0
  %942 = vmatmul.mubr.bf16.gmra.mrb[0].mxu0 %v908
  %v943 = vpop.f32.mrb[0].mxu0
  %v944 = vadd.f32 0.0, %v943
  %v945 = vpop.f32.mrb[0].mxu0
  %v946 = vadd.f32 0.0, %v945
  %v947 = vpop.f32.mrb[0].mxu0
  %v948 = vpop.f32.mrb[0].mxu0
  %949 = vdwg.mxu0
  %950 = vmatprep.subr.bf16.mxu0 %v159
  %951 = vmatpush1.bf16.msra.mxu0 %v158
  %952 = vmatprep.subr.bf16.mxu0 %v163
  %953 = vmatpush1.bf16.msra.mxu0 %v162
  %954 = vmatprep.subr.bf16.mxu0 %v167
  %955 = vmatpush1.bf16.msra.mxu0 %v166
  %956 = vmatprep.subr.bf16.mxu0 %v171
  %957 = vmatpush1.bf16.msra.mxu0 %v170
  %958 = vmatprep.subr.bf16.mxu0 %v175
  %959 = vmatpush1.bf16.msra.mxu0 %v174
  %960 = vmatprep.subr.bf16.mxu0 %v179
  %961 = vmatpush1.bf16.msra.mxu0 %v178
  %962 = vmatprep.subr.bf16.mxu0 %v183
  %963 = vmatpush1.bf16.msra.mxu0 %v182
  %964 = vmatprep.subr.bf16.mxu0 %v187
  %965 = vmatpush1.bf16.msra.mxu0 %v186
  %966 = vmatprep.subr.bf16.mxu0 0
  %967 = vmatpush1.bf16.msra.mxu0 0
  %968 = vmatprep.subr.bf16.mxu0 0
  %969 = vmatpush1.bf16.msra.mxu0 0
  %970 = vmatprep.subr.bf16.mxu0 0
  %971 = vmatpush1.bf16.msra.mxu0 0
  %972 = vmatprep.subr.bf16.mxu0 0
  %973 = vmatpush1.bf16.msra.mxu0 0
  %974 = vmatprep.subr.bf16.mxu0 0
  %975 = vmatpush1.bf16.msra.mxu0 0
  %976 = vmatprep.subr.bf16.mxu0 0
  %977 = vmatpush1.bf16.msra.mxu0 0
  %978 = vmatprep.subr.bf16.mxu0 0
  %979 = vmatpush1.bf16.msra.mxu0 0
  %980 = vmatprep.subr.bf16.mxu0 0
  %981 = vmatpush1.bf16.msra.mxu0 0
  %982 = vmatprep.mubr.bf16.mxu0 0
  %983 = vmatmul.mubr.bf16.gmra.mrb[0].mxu0 %v908
  %v984 = vpop.f32.mrb[0].mxu0
  %v985 = vadd.f32 0.0, %v984
  %v986 = vpop.f32.mrb[0].mxu0
  %v987 = vadd.f32 0.0, %v986
  %v988 = vpop.f32.mrb[0].mxu0
  %v989 = vpop.f32.mrb[0].mxu0
  %990 = vdwg.mxu0
  %v991 = vadd.f32 %v904, %v944
  %v992 = vadd.f32 %v905, %v946
  %v993 = vadd.f32 %v906, %v985
  %v994 = vadd.f32 %v907, %v987
  %v995 = vsub.f32 0.0, %v991
  %v996 = vmul.f32 %v995, 1.442695
  %v997 = vpow.pop %v996
  %v998 = vadd.f32 %v997, 1.0
  %v999 = vrcp.pop %v998
  %v1000 = vsub.f32 0.0, %v992
  %v1001 = vmul.f32 %v1000, 1.442695
  %v1002 = vpow.pop %v1001
  %v1003 = vadd.f32 %v1002, 1.0
  %v1004 = vrcp.pop %v1003
  %v1005 = vtanh.pop %v993
  %v1006 = vsub.f32 0.0, %v994
  %v1007 = vmul.f32 %v1006, 1.442695
  %v1008 = vpow.pop %v1007
  %v1009 = vadd.f32 %v1008, 1.0
  %v1010 = vrcp.pop %v1009
  %v1011 = vmul.f32 %v1004, %v898
  %v1012 = vmul.f32 %v999, %v1005
  %v1013 = vadd.f32 %v1011, %v1012
  %v1014 = vtanh.pop %v1013
  %v1015 = vmul.f32 %v1010, %v1014
  %s1016 = scalar_lea.vmem %s2, 48
  %1017 = vst [vmem:[%s1016] sm:$0xff] %v1015
  %s1018 = scalar_lea.vmem %s0, 224
  %v1019 = vld [vmem:[%s1018] sm:$0xff]
  %v1020 = vld [vmem:[%s1018 + $0x8] sm:$0xff]
  %v1021 = vld [vmem:[%s1018 + $0x10] sm:$0xff]
  %v1022 = vld [vmem:[%s1018 + $0x18] sm:$0xff]
  %v1023 = vpack.c.bf16 %v1015, %v1015
  %1024 = vmatprep.subr.bf16.mxu0 %v157
  %1025 = vmatpush1.bf16.msra.mxu0 %v156
  %1026 = vmatprep.subr.bf16.mxu0 %v161
  %1027 = vmatpush1.bf16.msra.mxu0 %v160
  %1028 = vmatprep.subr.bf16.mxu0 %v165
  %1029 = vmatpush1.bf16.msra.mxu0 %v164
  %1030 = vmatprep.subr.bf16.mxu0 %v169
  %1031 = vmatpush1.bf16.msra.mxu0 %v168
  %1032 = vmatprep.subr.bf16.mxu0 %v173
  %1033 = vmatpush1.bf16.msra.mxu0 %v172
  %1034 = vmatprep.subr.bf16.mxu0 %v177
  %1035 = vmatpush1.bf16.msra.mxu0 %v176
  %1036 = vmatprep.subr.bf16.mxu0 %v181
  %1037 = vmatpush1.bf16.msra.mxu0 %v180
  %1038 = vmatprep.subr.bf16.mxu0 %v185
  %1039 = vmatpush1.bf16.msra.mxu0 %v184
  %1040 = vmatprep.subr.bf16.mxu0 0
  %1041 = vmatpush1.bf16.msra.mxu0 0
  %1042 = vmatprep.subr.bf16.mxu0 0
  %1043 = vmatpush1.bf16.msra.mxu0 0
  %1044 = vmatprep.subr.bf16.mxu0 0
  %1045 = vmatpush1.bf16.msra.mxu0 0
  %1046 = vmatprep.subr.bf16.mxu0 0
  %1047 = vmatpush1.bf16.msra.mxu0 0
  %1048 = vmatprep.subr.bf16.mxu0 0
  %1049 = vmatpush1.bf16.msra.mxu0 0
  %1050 = vmatprep.subr.bf16.mxu0 0
  %1051 = vmatpush1.bf16.msra.mxu0 0
  %1052 = vmatprep.subr.bf16.mxu0 0
  %1053 = vmatpush1.bf16.msra.mxu0 0
  %1054 = vmatprep.subr.bf16.mxu0 0
  %1055 = vmatpush1.bf16.msra.mxu0 0
  %1056 = vmatprep.mubr.bf16.mxu0 0
  %1057 = vmatmul.mubr.bf16.gmra.mrb[0].mxu0 %v1023
  %v1058 = vpop.f32.mrb[0].mxu0
  %v1059 = vadd.f32 0.0, %v1058
  %v1060 = vpop.f32.mrb[0].mxu0
  %v1061 = vadd.f32 0.0, %v1060
  %v1062 = vpop.f32.mrb[0].mxu0
  %v1063 = vpop.f32.mrb[0].mxu0
  %1064 = vdwg.mxu0
  %1065 = vmatprep.subr.bf16.mxu0 %v159
  %1066 = vmatpush1.bf16.msra.mxu0 %v158
  %1067 = vmatprep.subr.bf16.mxu0 %v163
  %1068 = vmatpush1.bf16.msra.mxu0 %v162
  %1069 = vmatprep.subr.bf16.mxu0 %v167
  %1070 = vmatpush1.bf16.msra.mxu0 %v166
  %1071 = vmatprep.subr.bf16.mxu0 %v171
  %1072 = vmatpush1.bf16.msra.mxu0 %v170
  %1073 = vmatprep.subr.bf16.mxu0 %v175
  %1074 = vmatpush1.bf16.msra.mxu0 %v174
  %1075 = vmatprep.subr.bf16.mxu0 %v179
  %1076 = vmatpush1.bf16.msra.mxu0 %v178
  %1077 = vmatprep.subr.bf16.mxu0 %v183
  %1078 = vmatpush1.bf16.msra.mxu0 %v182
  %1079 = vmatprep.subr.bf16.mxu0 %v187
  %1080 = vmatpush1.bf16.msra.mxu0 %v186
  %1081 = vmatprep.subr.bf16.mxu0 0
  %1082 = vmatpush1.bf16.msra.mxu0 0
  %1083 = vmatprep.subr.bf16.mxu0 0
  %1084 = vmatpush1.bf16.msra.mxu0 0
  %1085 = vmatprep.subr.bf16.mxu0 0
  %1086 = vmatpush1.bf16.msra.mxu0 0
  %1087 = vmatprep.subr.bf16.mxu0 0
  %1088 = vmatpush1.bf16.msra.mxu0 0
  %1089 = vmatprep.subr.bf16.mxu0 0
  %1090 = vmatpush1.bf16.msra.mxu0 0
  %1091 = vmatprep.subr.bf16.mxu0 0
  %1092 = vmatpush1.bf16.msra.mxu0 0
  %1093 = vmatprep.subr.bf16.mxu0 0
  %1094 = vmatpush1.bf16.msra.mxu0 0
  %1095 = vmatprep.subr.bf16.mxu0 0
  %1096 = vmatpush1.bf16.msra.mxu0 0
  %1097 = vmatprep.mubr.bf16.mxu0 0
  %1098 = vmatmul.mubr.bf16.gmra.mrb[0].mxu0 %v1023
  %v1099 = vpop.f32.mrb[0].mxu0
  %v1100 = vadd.f32 0.0, %v1099
  %v1101 = vpop.f32.mrb[0].mxu0
  %v1102 = vadd.f32 0.0, %v1101
  %v1103 = vpop.f32.mrb[0].mxu0
  %v1104 = vpop.f32.mrb[0].mxu0
  %1105 = vdwg.mxu0
  %v1106 = vadd.f32 %v1019, %v1059
  %v1107 = vadd.f32 %v1020, %v1061
  %v1108 = vadd.f32 %v1021, %v1100
  %v1109 = vadd.f32 %v1022, %v1102
  %v1110 = vsub.f32 0.0, %v1106
  %v1111 = vmul.f32 %v1110, 1.442695
  %v1112 = vpow.pop %v1111
  %v1113 = vadd.f32 %v1112, 1.0
  %v1114 = vrcp.pop %v1113
  %v1115 = vsub.f32 0.0, %v1107
  %v1116 = vmul.f32 %v1115, 1.442695
  %v1117 = vpow.pop %v1116
  %v1118 = vadd.f32 %v1117, 1.0
  %v1119 = vrcp.pop %v1118
  %v1120 = vtanh.pop %v1108
  %v1121 = vsub.f32 0.0, %v1109
  %v1122 = vmul.f32 %v1121, 1.442695
  %v1123 = vpow.pop %v1122
  %v1124 = vadd.f32 %v1123, 1.0
  %v1125 = vrcp.pop %v1124
  %v1126 = vmul.f32 %v1119, %v1013
  %v1127 = vmul.f32 %v1114, %v1120
  %v1128 = vadd.f32 %v1126, %v1127
  %v1129 = vtanh.pop %v1128
  %v1130 = vmul.f32 %v1125, %v1129
  %s1131 = scalar_lea.vmem %s2, 56
  %1132 = vst [vmem:[%s1131] sm:$0xff] %v1130
  %1133 = vst [vmem:[%s3] sm:$0xff] %v1130
  %1134 = vst [vmem:[%s4] sm:$0xff] %v1128
  // Predicated region
  $region14: #{rnn_model_forward.6} parent=0 // pred_check
    _
  $region15: #{rnn_model_forward.6} parent=0 // pred_check_branch
    %1136 = sbr.rel (0) target = $region17
  $region16: #{rnn_model_forward.6} parent=0 // pred_region
    _
  $region17: #{rnn_model_forward.6} parent=0 // pred_fallthru
    _
  // Predicated region
  $region18: #{rnn_model_forward.6} parent=0 // pred_check
    _
  $region19: #{rnn_model_forward.6} parent=0 // pred_check_branch
    %1138 = sbr.rel (0) target = $region21
  $region20: #{rnn_model_forward.6} parent=0 // pred_region
    _
  $region21: #{rnn_model_forward.6} parent=0 // pred_fallthru
    _
  // Predicated region
  $region22: #{rnn_model_forward.6} parent=0 // pred_check
    _
  $region23: #{rnn_model_forward.6} parent=0 // pred_check_branch
    %1140 = sbr.rel (0) target = $region25
  $region24: #{rnn_model_forward.6} parent=0 // pred_region
    _
  $region25: #{rnn_model_forward.6} parent=0 // pred_fallthru
    _
  // Predicated region
  $region26: #{rnn_model_forward.6} parent=0 // pred_check
    _
  $region27: #{rnn_model_forward.6} parent=0 // pred_check_branch
    %1142 = sbr.rel (0) target = $region29
  $region28: #{rnn_model_forward.6} parent=0 // pred_region
    _
  $region29: #{rnn_model_forward.6} parent=0 // pred_fallthru
    _
  // Predicated region
  $region30: #{rnn_model_forward.6} parent=0 // pred_check
    _
  $region31: #{rnn_model_forward.6} parent=0 // pred_check_branch
    %1144 = sbr.rel (0) target = $region33
  $region32: #{rnn_model_forward.6} parent=0 // pred_region
    _
  $region33: #{rnn_model_forward.6} parent=0 // pred_fallthru
    _
  // Predicated region
  $region34: #{rnn_model_forward.6} parent=0 // pred_check
    _
  $region35: #{rnn_model_forward.6} parent=0 // pred_check_branch
    %1146 = sbr.rel (0) target = $region37
  $region36: #{rnn_model_forward.6} parent=0 // pred_region
    _
  $region37: #{rnn_model_forward.6} parent=0 // pred_fallthru
    _

</llo_original>
